<compile_context>
chip_gen: v5e
topology: v5e:2x2
jax: 0.10.0
libtpu: 0.0.40
codegen_flags: <defaults>
</compile_context>

<pallas_src>
import functools

import jax
import jax.numpy as jnp
from jax.experimental import pallas as pl
from jax.experimental.pallas import tpu as pltpu


# ----------------------------- helpers ---------------------------------------


def _round_up(n, m):
    return ((n + m - 1) // m) * m


def _pad2(a, rows, cols):
    pr, pc = rows - a.shape[0], cols - a.shape[1]
    if pr or pc:
        a = jnp.pad(a, ((0, pr), (0, pc)))
    return a


# ----------------------------- kernel ----------------------------------------


def _autoencoder_kernel(
    x_ref, noise_ref,
    enc_w_ref, enc_b_ref,
    mu_w_ref, mu_b_ref,
    dec_w_ref, dec_b_ref,
    head_w_ref, head_b_ref,
    z0_ref, heads_ref,
    xx_sc, hd_sc, z0_sc,
    *, d0,
):
    j = pl.program_id(1)            # head-output tile index (innermost axis)
    tm = x_ref.shape[0]
    tile_h = heads_ref.shape[1]

    # ---- encoder / enc_mu / decoder: computed once per batch tile (j == 0) ----
    @pl.when(j == 0)
    def _():
        x = x_ref[...]
        # Stack [noisy ; clean] rows so enc/mu weights stream the MXU once per
        # batch tile.  The stacked input lives in a reused bf16 VMEM scratch.
        # TODO(synk): optionally generate the Gaussian noise in-kernel
        # (pltpu.prng_seed + pltpu.stateful_normal) to halve input DMA bytes;
        # kept as an explicit input here to preserve the reference check.
        xx_sc[:tm, :] = (x + noise_ref[...] * 1.5).astype(xx_sc.dtype)
        xx_sc[tm:, :] = x.astype(xx_sc.dtype)

        hh = jnp.maximum(
            jnp.dot(xx_sc[...], enc_w_ref[...],
                    preferred_element_type=jnp.float32) + enc_b_ref[...],
            0.0,
        )
        zz = (
            jnp.dot(hh.astype(mu_w_ref.dtype), mu_w_ref[...],
                    preferred_element_type=jnp.float32) + mu_b_ref[...]
        )
        z0_sc[...] = zz[tm:]                       # clean-branch latent
        hd = jnp.maximum(
            jnp.dot(zz[:tm].astype(dec_w_ref.dtype), dec_w_ref[...],
                    preferred_element_type=jnp.float32) + dec_b_ref[...],
            0.0,
        )
        hd_sc[...] = hd.astype(hd_sc.dtype)        # reused for every head tile

    # ---- ZINB heads: one N-tile of the fused [mean | disp | pi] matmul ----
    lin = (
        jnp.dot(hd_sc[...], head_w_ref[...], preferred_element_type=jnp.float32)
        + head_b_ref[...]
    )
    col = jax.lax.broadcasted_iota(jnp.int32, lin.shape, 1) + j * tile_h
    # MeanAct: clamp(exp(x), 1e-5, 1e6)
    mean_v = jnp.clip(jnp.exp(lin), 1e-5, 1e6)
    # DispAct: clamp(softplus(x), 1e-4, 1e4) -- numerically stable softplus
    sp = jnp.maximum(lin, 0.0) + jnp.log1p(jnp.exp(-jnp.abs(lin)))
    disp_v = jnp.clip(sp, 1e-4, 1e4)
    # pi: sigmoid (EUP transcendental path)
    pi_v = jax.nn.sigmoid(lin)
    heads_ref[...] = jnp.where(col < d0, mean_v,
                               jnp.where(col < 2 * d0, disp_v, pi_v))

    # z0 output block index is constant across j -> write it on the last step.
    @pl.when(j == pl.num_programs(1) - 1)
    def _():
        z0_ref[...] = z0_sc[...]


# ----------------------------- parameter prep (one-time) ----------------------


def prepare_params(params, *, weight_dtype=jnp.bfloat16, head_tile=512):
    """Pad, pack and cast the weights ONCE (hoisted out of the forward call).

    Weights are stored [in, out].  The three ZINB heads are concatenated
    unpadded ([mean|disp|pi] = 3*D0 columns) and padded once, which shrinks the
    head matmul / writeback when D0 is not a 128 multiple.
    """
    D0, D1 = params["enc_w"].shape
    D2 = params["mu_w"].shape[1]
    LANE = 128
    D0p, D1p, D2p = _round_up(D0, LANE), _round_up(D1, LANE), _round_up(D2, LANE)

    H = 3 * D0
    Hp = _round_up(H, LANE)
    if Hp <= head_tile:
        tile_h = Hp
    else:
        tile_h = _round_up(head_tile, LANE)
        Hp = _round_up(Hp, tile_h)

    head_w = jnp.concatenate(
        [params["mean_w"], params["disp_w"], params["pi_w"]], axis=1)   # (D1, 3*D0)
    head_b = jnp.concatenate(
        [params["mean_b"], params["disp_b"], params["pi_b"]], axis=1)   # (1, 3*D0)

    prepped = dict(
        enc_w=_pad2(params["enc_w"], D0p, D1p).astype(weight_dtype),
        enc_b=_pad2(params["enc_b"], 1, D1p).astype(jnp.float32),
        mu_w=_pad2(params["mu_w"], D1p, D2p).astype(weight_dtype),
        mu_b=_pad2(params["mu_b"], 1, D2p).astype(jnp.float32),
        dec_w=_pad2(params["dec_w"], D2p, D1p).astype(weight_dtype),
        dec_b=_pad2(params["dec_b"], 1, D1p).astype(jnp.float32),
        head_w=_pad2(head_w, D1p, Hp).astype(weight_dtype),
        head_b=_pad2(head_b, 1, Hp).astype(jnp.float32),
    )
    dims = dict(D0=D0, D1=D1, D2=D2, D0p=D0p, D1p=D1p, D2p=D2p,
                Hp=Hp, tile_h=tile_h)
    return prepped, dims


# ----------------------------- VMEM budget ------------------------------------


def _vmem_limit_bytes(tile_m, tile_h, d0p, d1p, d2p, wbytes):
    f32 = 4
    b = 0
    b += 2 * (tile_m * d0p * f32) * 2                    # x, noise (2 buffers)
    b += (d0p * d1p + d1p * d2p + d2p * d1p) * wbytes    # enc/mu/dec weights (1 buffer)
    b += 8 * (d1p + d2p + d1p) * f32                     # biases (sublane padded)
    b += (d1p * tile_h * wbytes + 8 * tile_h * f32) * 2  # head w/b tiles (2 buffers)
    b += (tile_m * d2p + tile_m * tile_h) * f32 * 2      # z0 / heads outputs
    b += 2 * tile_m * d0p * wbytes                       # stacked-input scratch
    b += tile_m * d1p * wbytes                           # hd scratch
    b += tile_m * d2p * f32                              # z0 scratch
    # 2x headroom for in-kernel f32 temporaries (hh/zz/lin/activations);
    # 16 MiB floor, capped at v7x's 64 MiB physical VMEM (fine on v5e/v6e too).
    return int(min(64 * 2**20, max(16 * 2**20, 2 * b)))


# ----------------------------- wrapper ----------------------------------------


def autoencoder_forward(x, noise, prepped, dims, *, batch_tile=256):
    """x, noise: [B, D0] float32.  prepped/dims: output of prepare_params."""
    B = x.shape[0]
    D0, D2 = dims["D0"], dims["D2"]
    D0p, D1p, D2p = dims["D0p"], dims["D1p"], dims["D2p"]
    Hp, tile_h = dims["Hp"], dims["tile_h"]
    wdt = prepped["enc_w"].dtype
    wbytes = jnp.dtype(wdt).itemsize

    # Batch tile: force multiple of 8 (sublane constraint) and keep >= 2 grid
    # steps when the batch allows so v7x's second TensorCore gets work.
    tile_m = max(8, _round_up(min(batch_tile, B), 8))
    if _round_up(B, tile_m) // tile_m < 2 and tile_m >= 16:
        tile_m = _round_up(tile_m // 2, 8)
    Bp = _round_up(B, tile_m)

    xp = _pad2(x, Bp, D0p)
    noisep = _pad2(noise, Bp, D0p)

    grid = (Bp // tile_m, Hp // tile_h)

    def batch_spec(d):
        return pl.BlockSpec((tile_m, d), lambda i, j: (i, 0))

    def const_spec(shape):
        # block index never changes -> single-buffer to halve resident VMEM.
        return pl.BlockSpec(shape, lambda i, j: (0,) * len(shape),
                            pipeline_mode=pl.Buffered(1))

    in_specs = [
        batch_spec(D0p),                                  # x
        batch_spec(D0p),                                  # noise
        const_spec((D0p, D1p)), const_spec((1, D1p)),     # enc
        const_spec((D1p, D2p)), const_spec((1, D2p)),     # mu
        const_spec((D2p, D1p)), const_spec((1, D1p)),     # dec
        pl.BlockSpec((D1p, tile_h), lambda i, j: (0, j)),  # head weight tile
        pl.BlockSpec((1, tile_h), lambda i, j: (0, j)),    # head bias tile
    ]
    out_specs = [
        pl.BlockSpec((tile_m, D2p), lambda i, j: (i, 0)),     # z0 (padded)
        pl.BlockSpec((tile_m, tile_h), lambda i, j: (i, j)),  # packed mean|disp|pi
    ]
    out_shape = [
        jax.ShapeDtypeStruct((Bp, D2p), jnp.float32),
        jax.ShapeDtypeStruct((Bp, Hp), jnp.float32),
    ]
    scratch_shapes = [
        pltpu.VMEM((2 * tile_m, D0p), wdt),        # stacked noisy/clean rows
        pltpu.VMEM((tile_m, D1p), wdt),            # decoder hidden (matmul dtype)
        pltpu.VMEM((tile_m, D2p), jnp.float32),    # clean-branch latent
    ]

    fn = pl.pallas_call(
        functools.partial(_autoencoder_kernel, d0=D0),
        out_shape=out_shape,
        grid_spec=pltpu.PrefetchScalarGridSpec(
            num_scalar_prefetch=0,
            grid=grid,
            in_specs=in_specs,
            out_specs=out_specs,
            scratch_shapes=scratch_shapes,
        ),
        compiler_params=pltpu.CompilerParams(
            dimension_semantics=("parallel", "arbitrary"),
            vmem_limit_bytes=_vmem_limit_bytes(
                tile_m, tile_h, D0p, D1p, D2p, wbytes),
        ),
    )
    z0p, headsp = fn(
        xp, noisep,
        prepped["enc_w"], prepped["enc_b"],
        prepped["mu_w"], prepped["mu_b"],
        prepped["dec_w"], prepped["dec_b"],
        prepped["head_w"], prepped["head_b"],
    )

    z0 = z0p[:B, :D2]
    mean = headsp[:B, 0:D0]
    disp = headsp[:B, D0:2 * D0]
    pi = headsp[:B, 2 * D0:3 * D0]
    return [z0, mean, disp, pi]


# ----------------------------- parameter init ---------------------------------


def init_params(key, layer):
    """PyTorch-style Linear init: U(-1/sqrt(fan_in), 1/sqrt(fan_in)).

    layer: [Input_dim, hidden, Latent_dim]. Weights stored as [in, out].
    """
    D0, D1, D2 = layer

    def linear_params(k, fan_in, fan_out):
        kw, kb = jax.random.split(k)
        bound = 1.0 / jnp.sqrt(float(fan_in))
        w = jax.random.uniform(kw, (fan_in, fan_out), jnp.float32, -bound, bound)
        b = jax.random.uniform(kb, (1, fan_out), jnp.float32, -bound, bound)
        return w, b

    keys = jax.random.split(key, 6)
    enc_w, enc_b = linear_params(keys[0], D0, D1)     # encoder: Linear(D0, D1) + ReLU
    mu_w, mu_b = linear_params(keys[1], D1, D2)       # _enc_mu
    dec_w, dec_b = linear_params(keys[2], D2, D1)     # decoder: Linear(D2, D1) + ReLU
    mean_w, mean_b = linear_params(keys[3], D1, D0)   # _dec_mean
    disp_w, disp_b = linear_params(keys[4], D1, D0)   # _dec_disp
    pi_w, pi_b = linear_params(keys[5], D1, D0)       # _dec_pi
    return dict(
        enc_w=enc_w, enc_b=enc_b,
        mu_w=mu_w, mu_b=mu_b,
        dec_w=dec_w, dec_b=dec_b,
        mean_w=mean_w, mean_b=mean_b,
        disp_w=disp_w, disp_b=disp_b,
        pi_w=pi_w, pi_b=pi_b,
    )


# ----------------------------- reference (pure JAX) ----------------------------


def reference_forward(x, noise, p, matmul_dtype=jnp.float32):
    """Pure-JAX reference. matmul_dtype mirrors the kernel's MXU precision
    (bf16 operands, f32 accumulation) so the comparison isolates kernel bugs
    from the expected mixed-precision rounding."""

    def lin(v, w, b):
        return jnp.dot(v.astype(matmul_dtype), w.astype(matmul_dtype),
                       preferred_element_type=jnp.float32) + b

    xn = x + noise * 1.5
    h = jax.nn.relu(lin(xn, p["enc_w"], p["enc_b"]))
    z = lin(h, p["mu_w"], p["mu_b"])
    hd = jax.nn.relu(lin(z, p["dec_w"], p["dec_b"]))
    mean = jnp.clip(jnp.exp(lin(hd, p["mean_w"], p["mean_b"])), 1e-5, 1e6)
    disp = jnp.clip(jax.nn.softplus(lin(hd, p["disp_w"], p["disp_b"])), 1e-4, 1e4)
    pi = jax.nn.sigmoid(lin(hd, p["pi_w"], p["pi_b"]))
    h0 = jax.nn.relu(lin(x, p["enc_w"], p["enc_b"]))
    z0 = lin(h0, p["mu_w"], p["mu_b"])
    return [z0, mean, disp, pi]


# ----------------------------- main ---------------------------------------------


if __name__ == "__main__":
    # cfg.Layer = [Input_dim, hidden, Latent_dim]
    LAYER = [64, 32, 16]
    BATCH = 256  # 128-row tiles -> 2 parallel batch-grid steps

    key = jax.random.PRNGKey(0)
    k_param, k_x, k_noise = jax.random.split(key, 3)

    params = init_params(k_param, LAYER)
    x = jax.random.normal(k_x, (BATCH, LAYER[0]), jnp.float32)
    # th.randn_like(x) sampled host-side (deterministic); scaled by 1.5 in-kernel.
    noise = jax.random.normal(k_noise, (BATCH, LAYER[0]), jnp.float32)

    # One-time parameter prep (padding / head packing / bf16 cast) hoisted out
    # of the forward path.
    prepped, dims = prepare_params(params)

    outs = autoencoder_forward(x, noise, prepped, dims, batch_tile=256)
    jax.block_until_ready(outs)

    # Sanity check vs. a pure-JAX reference using the same bf16-MXU / f32-accum
    # precision policy (tolerance loosened vs. the old pure-f32 path).
    refs = reference_forward(x, noise, params, matmul_dtype=jnp.bfloat16)
    for got, want in zip(outs, refs):
        assert got.shape == want.shape, "shape mismatch vs reference"
        assert jnp.allclose(got, want, atol=1e-2, rtol=1e-2), \
            float(jnp.max(jnp.abs(got - want)))

    print("KERNEL_OK")
</pallas_src>

<mosaic_0001>
module attributes {stable_mosaic.version = 11 : i64} {
  func.func @_autoencoder_kernel(%arg0: i32, %arg1: i32, %arg2: memref<128x128xf32, #tpu.memory_space<vmem>>, %arg3: memref<128x128xf32, #tpu.memory_space<vmem>>, %arg4: memref<128x128xbf16, #tpu.memory_space<vmem>>, %arg5: memref<1x128xf32, #tpu.memory_space<vmem>>, %arg6: memref<128x128xbf16, #tpu.memory_space<vmem>>, %arg7: memref<1x128xf32, #tpu.memory_space<vmem>>, %arg8: memref<128x128xbf16, #tpu.memory_space<vmem>>, %arg9: memref<1x128xf32, #tpu.memory_space<vmem>>, %arg10: memref<128x256xbf16, #tpu.memory_space<vmem>>, %arg11: memref<1x256xf32, #tpu.memory_space<vmem>>, %arg12: memref<128x128xf32, #tpu.memory_space<vmem>>, %arg13: memref<128x256xf32, #tpu.memory_space<vmem>>, %arg14: memref<256x128xbf16, #tpu.memory_space<vmem>>, %arg15: memref<128x128xbf16, #tpu.memory_space<vmem>>, %arg16: memref<128x128xf32, #tpu.memory_space<vmem>>) attributes {dimension_semantics = [#tpu.dimension_semantics<parallel>, #tpu.dimension_semantics<arbitrary>], iteration_bounds = array<i64: 2, 1>, scalar_prefetch = 0 : i64, scratch_operands = 3 : i64, tpu.core_type = #tpu.core_type<tc>, window_params = [{transform_indices = @transform_0, window_bounds = array<i64: 128, 128>}, {transform_indices = @transform_1, window_bounds = array<i64: 128, 128>}, {pipeline_mode = #tpu.pipeline_mode<synchronous>, transform_indices = @transform_2, window_bounds = array<i64: 128, 128>}, {pipeline_mode = #tpu.pipeline_mode<synchronous>, transform_indices = @transform_3, window_bounds = array<i64: 1, 128>}, {pipeline_mode = #tpu.pipeline_mode<synchronous>, transform_indices = @transform_4, window_bounds = array<i64: 128, 128>}, {pipeline_mode = #tpu.pipeline_mode<synchronous>, transform_indices = @transform_5, window_bounds = array<i64: 1, 128>}, {pipeline_mode = #tpu.pipeline_mode<synchronous>, transform_indices = @transform_6, window_bounds = array<i64: 128, 128>}, {pipeline_mode = #tpu.pipeline_mode<synchronous>, transform_indices = @transform_7, window_bounds = array<i64: 1, 128>}, {transform_indices = @transform_8, window_bounds = array<i64: 128, 256>}, {transform_indices = @transform_9, window_bounds = array<i64: 1, 256>}, {transform_indices = @transform_10, window_bounds = array<i64: 128, 128>}, {transform_indices = @transform_11, window_bounds = array<i64: 128, 256>}]} {
    %c0_i32 = arith.constant 0 : i32
    %0 = arith.cmpi eq, %arg1, %c0_i32 : i32
    %1 = arith.extui %0 : i1 to i32
    %c0_i32_0 = arith.constant 0 : i32
    %2 = arith.cmpi ne, %1, %c0_i32_0 : i32
    scf.if %2 {
      %c0_17 = arith.constant 0 : index
      %c0_18 = arith.constant 0 : index
      %45 = vector.load %arg2[%c0_17, %c0_18] : memref<128x128xf32, #tpu.memory_space<vmem>>, vector<128x128xf32>
      %c0_19 = arith.constant 0 : index
      %c0_20 = arith.constant 0 : index
      %46 = vector.load %arg3[%c0_19, %c0_20] : memref<128x128xf32, #tpu.memory_space<vmem>>, vector<128x128xf32>
      %cst_21 = arith.constant 1.500000e+00 : f32
      %47 = vector.broadcast %cst_21 : f32 to vector<128x128xf32>
      %48 = arith.mulf %46, %47 : vector<128x128xf32>
      %49 = arith.addf %45, %48 : vector<128x128xf32>
      %50 = arith.truncf %49 : vector<128x128xf32> to vector<128x128xbf16>
      %c0_22 = arith.constant 0 : index
      %c0_23 = arith.constant 0 : index
      %51 = vector.load %arg14[%c0_22, %c0_23] : memref<256x128xbf16, #tpu.memory_space<vmem>>, vector<128x128xbf16>
      tpu.vector_store %arg14[%c0_22, %c0_23], %50 {strides = array<i32>} : memref<256x128xbf16, #tpu.memory_space<vmem>>, vector<128x128xbf16>,
      %52 = arith.truncf %45 : vector<128x128xf32> to vector<128x128xbf16>
      %c128 = arith.constant 128 : index
      %c0_24 = arith.constant 0 : index
      %53 = vector.load %arg14[%c128, %c0_24] : memref<256x128xbf16, #tpu.memory_space<vmem>>, vector<128x128xbf16>
      tpu.vector_store %arg14[%c128, %c0_24], %52 {strides = array<i32>} : memref<256x128xbf16, #tpu.memory_space<vmem>>, vector<128x128xbf16>,
      %c0_25 = arith.constant 0 : index
      %c0_26 = arith.constant 0 : index
      %54 = vector.load %arg14[%c0_25, %c0_26] : memref<256x128xbf16, #tpu.memory_space<vmem>>, vector<256x128xbf16>
      %c0_27 = arith.constant 0 : index
      %c0_28 = arith.constant 0 : index
      %55 = vector.load %arg4[%c0_27, %c0_28] : memref<128x128xbf16, #tpu.memory_space<vmem>>, vector<128x128xbf16>
      %cst_29 = arith.constant dense<0.000000e+00> : vector<256x128xf32>
      %56 = tpu.matmul %54, %55, %cst_29 {dimension_numbers = #tpu.dot_dimension_numbers<[1], [0], [0], [1], [0, 0, 1, 1], [], []>} : vector<256x128xbf16>, vector<128x128xbf16>, vector<256x128xf32> -> vector<256x128xf32>
      %c0_30 = arith.constant 0 : index
      %c0_31 = arith.constant 0 : index
      %57 = vector.load %arg5[%c0_30, %c0_31] : memref<1x128xf32, #tpu.memory_space<vmem>>, vector<1x128xf32>
      %58 = vector.broadcast %57 : vector<1x128xf32> to vector<256x128xf32>
      %59 = arith.addf %56, %58 : vector<256x128xf32>
      %cst_32 = arith.constant 0.000000e+00 : f32
      %60 = vector.broadcast %cst_32 : f32 to vector<256x128xf32>
      %61 = arith.maximumf %59, %60 : vector<256x128xf32>
      %62 = arith.truncf %61 : vector<256x128xf32> to vector<256x128xbf16>
      %c0_33 = arith.constant 0 : index
      %c0_34 = arith.constant 0 : index
      %63 = vector.load %arg6[%c0_33, %c0_34] : memref<128x128xbf16, #tpu.memory_space<vmem>>, vector<128x128xbf16>
      %cst_35 = arith.constant dense<0.000000e+00> : vector<256x128xf32>
      %64 = tpu.matmul %62, %63, %cst_35 {dimension_numbers = #tpu.dot_dimension_numbers<[1], [0], [0], [1], [0, 0, 1, 1], [], []>} : vector<256x128xbf16>, vector<128x128xbf16>, vector<256x128xf32> -> vector<256x128xf32>
      %c0_36 = arith.constant 0 : index
      %c0_37 = arith.constant 0 : index
      %65 = vector.load %arg7[%c0_36, %c0_37] : memref<1x128xf32, #tpu.memory_space<vmem>>, vector<1x128xf32>
      %66 = vector.broadcast %65 : vector<1x128xf32> to vector<256x128xf32>
      %67 = arith.addf %64, %66 : vector<256x128xf32>
      %68 = vector.extract_strided_slice %67 {offsets = [128, 0], sizes = [128, 128], strides = [1, 1]} : vector<256x128xf32> to vector<128x128xf32>
      %c0_38 = arith.constant 0 : index
      %c0_39 = arith.constant 0 : index
      %69 = vector.load %arg16[%c0_38, %c0_39] : memref<128x128xf32, #tpu.memory_space<vmem>>, vector<128x128xf32>
      tpu.vector_store %arg16[%c0_38, %c0_39], %68 {strides = array<i32>} : memref<128x128xf32, #tpu.memory_space<vmem>>, vector<128x128xf32>,
      %70 = vector.extract_strided_slice %67 {offsets = [0, 0], sizes = [128, 128], strides = [1, 1]} : vector<256x128xf32> to vector<128x128xf32>
      %71 = arith.truncf %70 : vector<128x128xf32> to vector<128x128xbf16>
      %c0_40 = arith.constant 0 : index
      %c0_41 = arith.constant 0 : index
      %72 = vector.load %arg8[%c0_40, %c0_41] : memref<128x128xbf16, #tpu.memory_space<vmem>>, vector<128x128xbf16>
      %cst_42 = arith.constant dense<0.000000e+00> : vector<128x128xf32>
      %73 = tpu.matmul %71, %72, %cst_42 {dimension_numbers = #tpu.dot_dimension_numbers<[1], [0], [0], [1], [0, 0, 1, 1], [], []>} : vector<128x128xbf16>, vector<128x128xbf16>, vector<128x128xf32> -> vector<128x128xf32>
      %c0_43 = arith.constant 0 : index
      %c0_44 = arith.constant 0 : index
      %74 = vector.load %arg9[%c0_43, %c0_44] : memref<1x128xf32, #tpu.memory_space<vmem>>, vector<1x128xf32>
      %75 = vector.broadcast %74 : vector<1x128xf32> to vector<128x128xf32>
      %76 = arith.addf %73, %75 : vector<128x128xf32>
      %cst_45 = arith.constant 0.000000e+00 : f32
      %77 = vector.broadcast %cst_45 : f32 to vector<128x128xf32>
      %78 = arith.maximumf %76, %77 : vector<128x128xf32>
      %79 = arith.truncf %78 : vector<128x128xf32> to vector<128x128xbf16>
      %c0_46 = arith.constant 0 : index
      %c0_47 = arith.constant 0 : index
      %80 = vector.load %arg15[%c0_46, %c0_47] : memref<128x128xbf16, #tpu.memory_space<vmem>>, vector<128x128xbf16>
      tpu.vector_store %arg15[%c0_46, %c0_47], %79 {strides = array<i32>} : memref<128x128xbf16, #tpu.memory_space<vmem>>, vector<128x128xbf16>,
    } else {
    }
    %c0 = arith.constant 0 : index
    %c0_1 = arith.constant 0 : index
    %3 = vector.load %arg15[%c0, %c0_1] : memref<128x128xbf16, #tpu.memory_space<vmem>>, vector<128x128xbf16>
    %c0_2 = arith.constant 0 : index
    %c0_3 = arith.constant 0 : index
    %4 = vector.load %arg10[%c0_2, %c0_3] : memref<128x256xbf16, #tpu.memory_space<vmem>>, vector<128x256xbf16>
    %cst = arith.constant dense<0.000000e+00> : vector<128x256xf32>
    %5 = tpu.matmul %3, %4, %cst {dimension_numbers = #tpu.dot_dimension_numbers<[1], [0], [0], [1], [0, 0, 1, 1], [], []>} : vector<128x128xbf16>, vector<128x256xbf16>, vector<128x256xf32> -> vector<128x256xf32>
    %c0_4 = arith.constant 0 : index
    %c0_5 = arith.constant 0 : index
    %6 = vector.load %arg11[%c0_4, %c0_5] : memref<1x256xf32, #tpu.memory_space<vmem>>, vector<1x256xf32>
    %7 = vector.broadcast %6 : vector<1x256xf32> to vector<128x256xf32>
    %8 = arith.addf %5, %7 : vector<128x256xf32>
    %9 = tpu.iota {dimensions = array<i32: 1>} : vector<128x256xi32>
    %c256_i32 = arith.constant 256 : i32
    %10 = arith.muli %arg1, %c256_i32 : i32
    %11 = vector.broadcast %10 : i32 to vector<128x256xi32>
    %12 = arith.addi %9, %11 : vector<128x256xi32>
    %13 = math.exp %8 : vector<128x256xf32>
    %cst_6 = arith.constant 9.99999974E-6 : f32
    %cst_7 = arith.constant 1.000000e+06 : f32
    %14 = vector.broadcast %cst_6 : f32 to vector<128x256xf32>
    %15 = arith.maximumf %14, %13 : vector<128x256xf32>
    %16 = vector.broadcast %cst_7 : f32 to vector<128x256xf32>
    %17 = arith.minimumf %16, %15 : vector<128x256xf32>
    %cst_8 = arith.constant 0.000000e+00 : f32
    %18 = vector.broadcast %cst_8 : f32 to vector<128x256xf32>
    %19 = arith.maximumf %8, %18 : vector<128x256xf32>
    %20 = math.absf %8 : vector<128x256xf32>
    %cst_9 = arith.constant 0.000000e+00 : f32
    %21 = vector.broadcast %cst_9 : f32 to vector<128x256xf32>
    %22 = arith.subf %21, %20 : vector<128x256xf32>
    %23 = math.exp %22 : vector<128x256xf32>
    %24 = math.log1p %23 : vector<128x256xf32>
    %25 = arith.addf %19, %24 : vector<128x256xf32>
    %cst_10 = arith.constant 9.99999974E-5 : f32
    %cst_11 = arith.constant 1.000000e+04 : f32
    %26 = vector.broadcast %cst_10 : f32 to vector<128x256xf32>
    %27 = arith.maximumf %26, %25 : vector<128x256xf32>
    %28 = vector.broadcast %cst_11 : f32 to vector<128x256xf32>
    %29 = arith.minimumf %28, %27 : vector<128x256xf32>
    %30 = arith.negf %8 : vector<128x256xf32>
    %31 = math.exp %30 : vector<128x256xf32>
    %cst_12 = arith.constant 1.000000e+00 : f32
    %32 = vector.broadcast %cst_12 : f32 to vector<128x256xf32>
    %33 = arith.addf %32, %31 : vector<128x256xf32>
    %34 = arith.divf %32, %33 : vector<128x256xf32>
    %c64_i32 = arith.constant 64 : i32
    %35 = vector.broadcast %c64_i32 : i32 to vector<128x256xi32>
    %36 = arith.cmpi slt, %12, %35 : vector<128x256xi32>
    %c128_i32 = arith.constant 128 : i32
    %37 = vector.broadcast %c128_i32 : i32 to vector<128x256xi32>
    %38 = arith.cmpi slt, %12, %37 : vector<128x256xi32>
    %39 = arith.select %38, %29, %34 : vector<128x256xi1>, vector<128x256xf32>
    %40 = arith.select %36, %17, %39 : vector<128x256xi1>, vector<128x256xf32>
    %c0_13 = arith.constant 0 : index
    %c0_14 = arith.constant 0 : index
    %41 = vector.load %arg13[%c0_13, %c0_14] : memref<128x256xf32, #tpu.memory_space<vmem>>, vector<128x256xf32>
    tpu.vector_store %arg13[%c0_13, %c0_14], %40 {strides = array<i32>} : memref<128x256xf32, #tpu.memory_space<vmem>>, vector<128x256xf32>,
    %c0_i32_15 = arith.constant 0 : i32
    %42 = arith.cmpi eq, %arg1, %c0_i32_15 : i32
    %43 = arith.extui %42 : i1 to i32
    %c0_i32_16 = arith.constant 0 : i32
    %44 = arith.cmpi ne, %43, %c0_i32_16 : i32
    scf.if %44 {
      %c0_17 = arith.constant 0 : index
      %c0_18 = arith.constant 0 : index
      %45 = vector.load %arg16[%c0_17, %c0_18] : memref<128x128xf32, #tpu.memory_space<vmem>>, vector<128x128xf32>
      %c0_19 = arith.constant 0 : index
      %c0_20 = arith.constant 0 : index
      %46 = vector.load %arg12[%c0_19, %c0_20] : memref<128x128xf32, #tpu.memory_space<vmem>>, vector<128x128xf32>
      tpu.vector_store %arg12[%c0_19, %c0_20], %45 {strides = array<i32>} : memref<128x128xf32, #tpu.memory_space<vmem>>, vector<128x128xf32>,
    } else {
    }
    return
  }
  func.func @transform_0(%arg0: i32, %arg1: i32) -> (i32, i32) {
    %c0_i32 = arith.constant 0 : i32
    %c0_i32_0 = arith.constant 0 : i32
    return %arg0, %c0_i32 : i32, i32
  }
  func.func @transform_1(%arg0: i32, %arg1: i32) -> (i32, i32) {
    %c0_i32 = arith.constant 0 : i32
    %c0_i32_0 = arith.constant 0 : i32
    return %arg0, %c0_i32 : i32, i32
  }
  func.func @transform_2(%arg0: i32, %arg1: i32) -> (i32, i32) {
    %c0_i32 = arith.constant 0 : i32
    %c0_i32_0 = arith.constant 0 : i32
    %c0_i32_1 = arith.constant 0 : i32
    return %c0_i32, %c0_i32_0 : i32, i32
  }
  func.func @transform_3(%arg0: i32, %arg1: i32) -> (i32, i32) {
    %c0_i32 = arith.constant 0 : i32
    %c0_i32_0 = arith.constant 0 : i32
    %c0_i32_1 = arith.constant 0 : i32
    return %c0_i32, %c0_i32_0 : i32, i32
  }
  func.func @transform_4(%arg0: i32, %arg1: i32) -> (i32, i32) {
    %c0_i32 = arith.constant 0 : i32
    %c0_i32_0 = arith.constant 0 : i32
    %c0_i32_1 = arith.constant 0 : i32
    return %c0_i32, %c0_i32_0 : i32, i32
  }
  func.func @transform_5(%arg0: i32, %arg1: i32) -> (i32, i32) {
    %c0_i32 = arith.constant 0 : i32
    %c0_i32_0 = arith.constant 0 : i32
    %c0_i32_1 = arith.constant 0 : i32
    return %c0_i32, %c0_i32_0 : i32, i32
  }
  func.func @transform_6(%arg0: i32, %arg1: i32) -> (i32, i32) {
    %c0_i32 = arith.constant 0 : i32
    %c0_i32_0 = arith.constant 0 : i32
    %c0_i32_1 = arith.constant 0 : i32
    return %c0_i32, %c0_i32_0 : i32, i32
  }
  func.func @transform_7(%arg0: i32, %arg1: i32) -> (i32, i32) {
    %c0_i32 = arith.constant 0 : i32
    %c0_i32_0 = arith.constant 0 : i32
    %c0_i32_1 = arith.constant 0 : i32
    return %c0_i32, %c0_i32_0 : i32, i32
  }
  func.func @transform_8(%arg0: i32, %arg1: i32) -> (i32, i32) {
    %c0_i32 = arith.constant 0 : i32
    %c0_i32_0 = arith.constant 0 : i32
    return %c0_i32, %arg1 : i32, i32
  }
  func.func @transform_9(%arg0: i32, %arg1: i32) -> (i32, i32) {
    %c0_i32 = arith.constant 0 : i32
    %c0_i32_0 = arith.constant 0 : i32
    return %c0_i32, %arg1 : i32, i32
  }
  func.func @transform_10(%arg0: i32, %arg1: i32) -> (i32, i32) {
    %c0_i32 = arith.constant 0 : i32
    %c0_i32_0 = arith.constant 0 : i32
    return %arg0, %c0_i32 : i32, i32
  }
  func.func @transform_11(%arg0: i32, %arg1: i32) -> (i32, i32) {
    %c0_i32 = arith.constant 0 : i32
    return %arg0, %arg1 : i32, i32
  }
}

</mosaic_0001>

<llo_original>
// kernel: tpu_custom_call.1
$region0: #{tpu_custom_call.1}
  #allocation0 [shape = 'u32[]', space=smem, size = 0x4, offset = 0x4, fixed_abs, tag = 'smem constant byte address 0x4 - core index']
  #allocation1 [shape = 'u32[72,128]{1,0:T(1,128)}', space=vmem, size = 0x9000, scoped, tag = 'internal scratch']
  #allocation2 [shape = 'bf16[256,128]{1,0:T(8,128)(2,1)}', space=vmem, size = 0x10000, scoped, tag = 'scratch operand']
  #allocation3 [shape = 'bf16[128,128]{1,0:T(8,128)(2,1)}', space=vmem, size = 0x8000, scoped, tag = 'scratch operand']
  #allocation4 [shape = 'f32[128,128]{1,0:T(8,128)}', space=vmem, size = 0x10000, scoped, tag = 'scratch operand']
  %s0 = inlined_call_operand.hbm [shape: f32[256,128], index: 0, kind: input, shape index: {}]
  %s1 = inlined_call_operand.hbm [shape: f32[256,128], index: 1, kind: input, shape index: {}]
  %s2 = inlined_call_operand.hbm [shape: bf16[128,128], index: 2, kind: input, shape index: {}]
  %s3 = inlined_call_operand.vmem [shape: f32[1,128], index: 3, kind: input, shape index: {}]
  %s4 = inlined_call_operand.hbm [shape: bf16[128,128], index: 4, kind: input, shape index: {}]
  %s5 = inlined_call_operand.vmem [shape: f32[1,128], index: 5, kind: input, shape index: {}]
  %s6 = inlined_call_operand.hbm [shape: bf16[128,128], index: 6, kind: input, shape index: {}]
  %s7 = inlined_call_operand.vmem [shape: f32[1,128], index: 7, kind: input, shape index: {}]
  %s8 = inlined_call_operand.hbm [shape: bf16[128,256], index: 8, kind: input, shape index: {}]
  %s9 = inlined_call_operand.vmem [shape: f32[1,256], index: 9, kind: input, shape index: {}]
  %s10 = inlined_call_operand.hbm [shape: f32[256,128], index: 10, kind: output, shape index: {0}]
  %s11 = inlined_call_operand.hbm [shape: f32[256,256], index: 11, kind: output, shape index: {1}]
  %12 = xla_tuple %s10, %s11
  %s13 = sld [smem:[#allocation0]]
  $region113: #{tpu_custom_call.1} parent=0
    _
  %s15 = ssub.s32 1, %s13
  %s16 = scalar_select 0, %s15, %s13
  $region1: #{tpu_custom_call.1} parent=0
    #allocation5 [shape = 'u8[131072]{0}', space=vmem, size = 0x20000, scoped, tag = 'input window, operand 0']
    #allocation6 [shape = 's32[2]{0}', space=sflag, size = 0x8, scoped, tag = 'scoped memory for tpu_custom_call.1']
    #allocation7 [shape = 's32[2]{0}', space=sflag, size = 0x8, scoped, tag = 'scoped memory for tpu_custom_call.1']
    #allocation8 [shape = 'u8[131072]{0}', space=vmem, size = 0x20000, scoped, tag = 'input window, operand 1']
    #allocation9 [shape = 's32[2]{0}', space=sflag, size = 0x8, scoped, tag = 'scoped memory for tpu_custom_call.1']
    #allocation10 [shape = 'u8[32768]{0}', space=vmem, size = 0x8000, scoped, tag = 'input window, operand 2, single buffered']
    #allocation11 [shape = 'u8[32768]{0}', space=vmem, size = 0x8000, scoped, tag = 'input window, operand 4, single buffered']
    #allocation12 [shape = 's32[1]{0}', space=sflag, size = 0x4, scoped, tag = 'scoped memory for tpu_custom_call.1']
    #allocation13 [shape = 'u8[32768]{0}', space=vmem, size = 0x8000, scoped, tag = 'input window, operand 6, single buffered']
    #allocation14 [shape = 'u8[65536]{0}', space=vmem, size = 0x10000, scoped, tag = 'input window, operand 8, single buffered']
    #allocation15 [shape = 's32[1]{0}', space=sflag, size = 0x4, scoped, tag = 'scoped memory for tpu_custom_call.1']
    #allocation16 [shape = 'u8[131072]{0}', space=vmem, size = 0x20000, scoped, tag = 'output window, operand 0']
    #allocation17 [shape = 'u8[262144]{0}', space=vmem, size = 0x40000, scoped, tag = 'output window, operand 1']
    #allocation18 [shape = 's32[2]{0}', space=sflag, size = 0x8, scoped, tag = 'scoped memory for tpu_custom_call.1']
    %17 = vsyncpa [#allocation6], 0
    %s18 = scalar_lea.sflag [#allocation6], 1
    %19 = vsyncpa %s18, 0
    %20 = vsyncpa [#allocation9], 0
    %s21 = scalar_lea.sflag [#allocation9], 1
    %22 = vsyncpa %s21, 0
    %23 = vsyncpa [#allocation12], 0
    %24 = vsyncpa [#allocation15], 0
    %25 = vsyncpa [#allocation7], 0
    %s26 = scalar_lea.sflag [#allocation7], 1
    %27 = vsyncpa %s26, 0
    %28 = vsyncpa [#allocation18], 0
    %s29 = scalar_lea.sflag [#allocation18], 1
    %30 = vsyncpa %s29, 0
    loop: start=0, step=1, limit=4
    $region2: #{tpu_custom_call.1} parent=1 // loop_pre_header
      _
    $region3: #{tpu_custom_call.1} parent=1 // loop_header
      %s32 = sphi 0, %s36
      %p33 = scmp.ge.s32.totalorder %s32, 4
      %s39 = sphi 0, %s51
      %s40 = sphi 0, %s47
      %s41 = sphi 0, %s39
      %s42 = sphi 0, %s40
      %s43 = sphi 0, %s41
      %s44 = sphi 0, %s42
      %s54 = sphi 0, %s56
      %s57 = sphi 0, %s54
      %s58 = sphi 0, %s57
      %s74 = sphi 0, %s58
      %s80 = sphi 0, %s82
      %s83 = sphi 0, %s80
      %s84 = sphi 0, %s83
      %s100 = sphi 0, %s84
      %s104 = sphi 0, %s104
      %s106 = sphi 0, %s104
      %s107 = sphi 0, %s106
      %s121 = sphi 0, %s107
      %s125 = sphi 0, %s125
      %s127 = sphi 0, %s125
      %s128 = sphi 0, %s127
      %s142 = sphi 0, %s128
      %s146 = sphi 0, %s146
      %s148 = sphi 0, %s146
      %s149 = sphi 0, %s148
      %s163 = sphi 0, %s149
      %s167 = sphi 0, %s167
      %s169 = sphi 0, %s167
      %s170 = sphi 0, %s169
      %s184 = sphi 0, %s170
      %s188 = sphi 0, %s188
      %s190 = sphi 0, %s188
      %s191 = sphi 0, %s190
      %s205 = sphi 0, %s191
      %s209 = sphi 0, %s209
      %s211 = sphi 0, %s209
      %s212 = sphi 0, %s211
      %s226 = sphi 0, %s212
      %s232 = sphi 0, %s234
      %s235 = sphi 0, %s232
      %s236 = sphi 0, %s235
      %s252 = sphi 0, %s236
      %s258 = sphi 0, %s260
      %s261 = sphi 0, %s258
      %s262 = sphi 0, %s261
      %s278 = sphi 0, %s262
      %s284 = sphi 0, %s286
      %s287 = sphi 0, %s284
      %s288 = sphi 0, %s287
      %s304 = sphi 0, %s288
      %s312 = sphi 0, %s314
      %s315 = sphi 0, %s312
      %s316 = sphi 0, %s315
      %s332 = sphi 0, %s316
    $region4: #{tpu_custom_call.1} parent=1 // loop_header_branch
      %35 = sbr.rel (%p33) target = $region8
    $region5: #{tpu_custom_call.1} parent=1 // loop_body
      %s37 = ssub.s32 %s32, 1
      %s38 = ssub.s32 %s32, 2
      %s45 = sadd.s32 1, %s40
      %p46 = scmp.ge.s32.totalorder %s45, 1
      %s47 = scalar_select %p46, 0, %s45
      %s48 = sadd.s32 1, %s39
      %s49 = scalar_select %p46, %s48, %s39
      %p50 = scmp.ge.s32.totalorder %s49, 2
      %s51 = scalar_select %p50, 0, %s49
      %s52 = ssub.s32 %s39, %s51
      %p53 = scmp.eq.s32.totalorder %s52, 0
      %s55 = sadd.s32 %s54, 1
      %s56 = scalar_select %p53, %s54, %s55
      %p59 = pneg %p53
      %p60 = scmp.eq.s32.totalorder %s32, 1
      %p61 = por %p59, %p60
      %p62 = scmp.ne.s32.totalorder %s54, %s57
      %p63 = scmp.eq.s32.totalorder %s32, 0
      %p64 = por %p62, %p63
      %p65 = scmp.ne.s32.totalorder %s54, %s57
      %p66 = scmp.eq.s32.totalorder %s37, 1
      %p67 = por %p65, %p66
      %p68 = scmp.ne.s32.totalorder %s57, %s58
      %p69 = scmp.eq.s32.totalorder %s37, 0
      %p70 = por %p68, %p69
      %p71 = scmp.ne.s32.totalorder %s57, %s58
      %p72 = scmp.eq.s32.totalorder %s38, 1
      %p73 = por %p71, %p72
      %p75 = scmp.ne.s32.totalorder %s58, %s74
      %p76 = scmp.eq.s32.totalorder %s38, 0
      %p77 = por %p75, %p76
      %s78 = ssub.s32 %s39, %s51
      %p79 = scmp.eq.s32.totalorder %s78, 0
      %s81 = sadd.s32 %s80, 1
      %s82 = scalar_select %p79, %s80, %s81
      %p85 = pneg %p79
      %p86 = scmp.eq.s32.totalorder %s32, 1
      %p87 = por %p85, %p86
      %p88 = scmp.ne.s32.totalorder %s80, %s83
      %p89 = scmp.eq.s32.totalorder %s32, 0
      %p90 = por %p88, %p89
      %p91 = scmp.ne.s32.totalorder %s80, %s83
      %p92 = scmp.eq.s32.totalorder %s37, 1
      %p93 = por %p91, %p92
      %p94 = scmp.ne.s32.totalorder %s83, %s84
      %p95 = scmp.eq.s32.totalorder %s37, 0
      %p96 = por %p94, %p95
      %p97 = scmp.ne.s32.totalorder %s83, %s84
      %p98 = scmp.eq.s32.totalorder %s38, 1
      %p99 = por %p97, %p98
      %p101 = scmp.ne.s32.totalorder %s84, %s100
      %p102 = scmp.eq.s32.totalorder %s38, 0
      %p103 = por %p101, %p102
      %s105 = sadd.s32 %s104, 1
      %p108 = scmp.eq.s32.totalorder %s32, 1
      %p109 = scmp.ne.s32.totalorder %s104, %s106
      %p110 = scmp.eq.s32.totalorder %s32, 0
      %p111 = por %p109, %p110
      %p112 = scmp.ne.s32.totalorder %s104, %s106
      %p113 = scmp.eq.s32.totalorder %s37, 1
      %p114 = por %p112, %p113
      %p115 = scmp.ne.s32.totalorder %s106, %s107
      %p116 = scmp.eq.s32.totalorder %s37, 0
      %p117 = por %p115, %p116
      %p118 = scmp.ne.s32.totalorder %s106, %s107
      %p119 = scmp.eq.s32.totalorder %s38, 1
      %p120 = por %p118, %p119
      %p122 = scmp.ne.s32.totalorder %s107, %s121
      %p123 = scmp.eq.s32.totalorder %s38, 0
      %p124 = por %p122, %p123
      %s126 = sadd.s32 %s125, 1
      %p129 = scmp.eq.s32.totalorder %s32, 1
      %p130 = scmp.ne.s32.totalorder %s125, %s127
      %p131 = scmp.eq.s32.totalorder %s32, 0
      %p132 = por %p130, %p131
      %p133 = scmp.ne.s32.totalorder %s125, %s127
      %p134 = scmp.eq.s32.totalorder %s37, 1
      %p135 = por %p133, %p134
      %p136 = scmp.ne.s32.totalorder %s127, %s128
      %p137 = scmp.eq.s32.totalorder %s37, 0
      %p138 = por %p136, %p137
      %p139 = scmp.ne.s32.totalorder %s127, %s128
      %p140 = scmp.eq.s32.totalorder %s38, 1
      %p141 = por %p139, %p140
      %p143 = scmp.ne.s32.totalorder %s128, %s142
      %p144 = scmp.eq.s32.totalorder %s38, 0
      %p145 = por %p143, %p144
      %s147 = sadd.s32 %s146, 1
      %p150 = scmp.eq.s32.totalorder %s32, 1
      %p151 = scmp.ne.s32.totalorder %s146, %s148
      %p152 = scmp.eq.s32.totalorder %s32, 0
      %p153 = por %p151, %p152
      %p154 = scmp.ne.s32.totalorder %s146, %s148
      %p155 = scmp.eq.s32.totalorder %s37, 1
      %p156 = por %p154, %p155
      %p157 = scmp.ne.s32.totalorder %s148, %s149
      %p158 = scmp.eq.s32.totalorder %s37, 0
      %p159 = por %p157, %p158
      %p160 = scmp.ne.s32.totalorder %s148, %s149
      %p161 = scmp.eq.s32.totalorder %s38, 1
      %p162 = por %p160, %p161
      %p164 = scmp.ne.s32.totalorder %s149, %s163
      %p165 = scmp.eq.s32.totalorder %s38, 0
      %p166 = por %p164, %p165
      %s168 = sadd.s32 %s167, 1
      %p171 = scmp.eq.s32.totalorder %s32, 1
      %p172 = scmp.ne.s32.totalorder %s167, %s169
      %p173 = scmp.eq.s32.totalorder %s32, 0
      %p174 = por %p172, %p173
      %p175 = scmp.ne.s32.totalorder %s167, %s169
      %p176 = scmp.eq.s32.totalorder %s37, 1
      %p177 = por %p175, %p176
      %p178 = scmp.ne.s32.totalorder %s169, %s170
      %p179 = scmp.eq.s32.totalorder %s37, 0
      %p180 = por %p178, %p179
      %p181 = scmp.ne.s32.totalorder %s169, %s170
      %p182 = scmp.eq.s32.totalorder %s38, 1
      %p183 = por %p181, %p182
      %p185 = scmp.ne.s32.totalorder %s170, %s184
      %p186 = scmp.eq.s32.totalorder %s38, 0
      %p187 = por %p185, %p186
      %s189 = sadd.s32 %s188, 1
      %p192 = scmp.eq.s32.totalorder %s32, 1
      %p193 = scmp.ne.s32.totalorder %s188, %s190
      %p194 = scmp.eq.s32.totalorder %s32, 0
      %p195 = por %p193, %p194
      %p196 = scmp.ne.s32.totalorder %s188, %s190
      %p197 = scmp.eq.s32.totalorder %s37, 1
      %p198 = por %p196, %p197
      %p199 = scmp.ne.s32.totalorder %s190, %s191
      %p200 = scmp.eq.s32.totalorder %s37, 0
      %p201 = por %p199, %p200
      %p202 = scmp.ne.s32.totalorder %s190, %s191
      %p203 = scmp.eq.s32.totalorder %s38, 1
      %p204 = por %p202, %p203
      %p206 = scmp.ne.s32.totalorder %s191, %s205
      %p207 = scmp.eq.s32.totalorder %s38, 0
      %p208 = por %p206, %p207
      %s210 = sadd.s32 %s209, 1
      %p213 = scmp.eq.s32.totalorder %s32, 1
      %p214 = scmp.ne.s32.totalorder %s209, %s211
      %p215 = scmp.eq.s32.totalorder %s32, 0
      %p216 = por %p214, %p215
      %p217 = scmp.ne.s32.totalorder %s209, %s211
      %p218 = scmp.eq.s32.totalorder %s37, 1
      %p219 = por %p217, %p218
      %p220 = scmp.ne.s32.totalorder %s211, %s212
      %p221 = scmp.eq.s32.totalorder %s37, 0
      %p222 = por %p220, %p221
      %p223 = scmp.ne.s32.totalorder %s211, %s212
      %p224 = scmp.eq.s32.totalorder %s38, 1
      %p225 = por %p223, %p224
      %p227 = scmp.ne.s32.totalorder %s212, %s226
      %p228 = scmp.eq.s32.totalorder %s38, 0
      %p229 = por %p227, %p228
      %s230 = ssub.s32 %s40, %s47
      %p231 = scmp.eq.s32.totalorder %s230, 0
      %s233 = sadd.s32 %s232, 1
      %s234 = scalar_select %p231, %s232, %s233
      %p237 = pneg %p231
      %p238 = scmp.eq.s32.totalorder %s32, 1
      %p239 = por %p237, %p238
      %p240 = scmp.ne.s32.totalorder %s232, %s235
      %p241 = scmp.eq.s32.totalorder %s32, 0
      %p242 = por %p240, %p241
      %p243 = scmp.ne.s32.totalorder %s232, %s235
      %p244 = scmp.eq.s32.totalorder %s37, 1
      %p245 = por %p243, %p244
      %p246 = scmp.ne.s32.totalorder %s235, %s236
      %p247 = scmp.eq.s32.totalorder %s37, 0
      %p248 = por %p246, %p247
      %p249 = scmp.ne.s32.totalorder %s235, %s236
      %p250 = scmp.eq.s32.totalorder %s38, 1
      %p251 = por %p249, %p250
      %p253 = scmp.ne.s32.totalorder %s236, %s252
      %p254 = scmp.eq.s32.totalorder %s38, 0
      %p255 = por %p253, %p254
      %s256 = ssub.s32 %s40, %s47
      %p257 = scmp.eq.s32.totalorder %s256, 0
      %s259 = sadd.s32 %s258, 1
      %s260 = scalar_select %p257, %s258, %s259
      %p263 = pneg %p257
      %p264 = scmp.eq.s32.totalorder %s32, 1
      %p265 = por %p263, %p264
      %p266 = scmp.ne.s32.totalorder %s258, %s261
      %p267 = scmp.eq.s32.totalorder %s32, 0
      %p268 = por %p266, %p267
      %p269 = scmp.ne.s32.totalorder %s258, %s261
      %p270 = scmp.eq.s32.totalorder %s37, 1
      %p271 = por %p269, %p270
      %p272 = scmp.ne.s32.totalorder %s261, %s262
      %p273 = scmp.eq.s32.totalorder %s37, 0
      %p274 = por %p272, %p273
      %p275 = scmp.ne.s32.totalorder %s261, %s262
      %p276 = scmp.eq.s32.totalorder %s38, 1
      %p277 = por %p275, %p276
      %p279 = scmp.ne.s32.totalorder %s262, %s278
      %p280 = scmp.eq.s32.totalorder %s38, 0
      %p281 = por %p279, %p280
      %s282 = ssub.s32 %s39, %s51
      %p283 = scmp.eq.s32.totalorder %s282, 0
      %s285 = sadd.s32 %s284, 1
      %s286 = scalar_select %p283, %s284, %s285
      %p289 = pneg %p283
      %p290 = scmp.eq.s32.totalorder %s32, 1
      %p291 = por %p289, %p290
      %p292 = scmp.ne.s32.totalorder %s284, %s287
      %p293 = scmp.eq.s32.totalorder %s32, 0
      %p294 = por %p292, %p293
      %p295 = scmp.ne.s32.totalorder %s284, %s287
      %p296 = scmp.eq.s32.totalorder %s37, 1
      %p297 = por %p295, %p296
      %p298 = scmp.ne.s32.totalorder %s287, %s288
      %p299 = scmp.eq.s32.totalorder %s37, 0
      %p300 = por %p298, %p299
      %p301 = scmp.ne.s32.totalorder %s287, %s288
      %p302 = scmp.eq.s32.totalorder %s38, 1
      %p303 = por %p301, %p302
      %p305 = scmp.ne.s32.totalorder %s288, %s304
      %p306 = scmp.eq.s32.totalorder %s38, 0
      %p307 = por %p305, %p306
      %s308 = ssub.s32 %s39, %s51
      %s309 = ssub.s32 %s40, %s47
      %s310 = sor.u32 %s308, %s309
      %p311 = scmp.eq.s32.totalorder %s310, 0
      %s313 = sadd.s32 %s312, 1
      %s314 = scalar_select %p311, %s312, %s313
      %p317 = pneg %p311
      %p318 = scmp.eq.s32.totalorder %s32, 1
      %p319 = por %p317, %p318
      %p320 = scmp.ne.s32.totalorder %s312, %s315
      %p321 = scmp.eq.s32.totalorder %s32, 0
      %p322 = por %p320, %p321
      %p323 = scmp.ne.s32.totalorder %s312, %s315
      %p324 = scmp.eq.s32.totalorder %s37, 1
      %p325 = por %p323, %p324
      %p326 = scmp.ne.s32.totalorder %s315, %s316
      %p327 = scmp.eq.s32.totalorder %s37, 0
      %p328 = por %p326, %p327
      %p329 = scmp.ne.s32.totalorder %s315, %s316
      %p330 = scmp.eq.s32.totalorder %s38, 1
      %p331 = por %p329, %p330
      %p333 = scmp.ne.s32.totalorder %s316, %s332
      %p334 = scmp.eq.s32.totalorder %s38, 0
      %p335 = por %p333, %p334
      %p336 = scmp.le.s32.totalorder 1, %s32
      %p337 = scmp.lt.s32.totalorder %s32, 3
      %p338 = pnand %p336, %p337
      %p339 = pneg %p338
      // Predicated region
      $region9: #{tpu_custom_call.1} parent=5 // pred_check
        _
      $region10: #{tpu_custom_call.1} parent=5 // pred_check_branch
        %341 = sbr.rel (%p338) target = $region12
      $region11: #{tpu_custom_call.1} parent=5 // pred_region
        %s342 = ssub.s32 %s32, 1
        // Predicated region
        $region13: #{tpu_custom_call.1} parent=11 // pred_check
          %p343 = pneg %p117
        $region14: #{tpu_custom_call.1} parent=11 // pred_check_branch
          %345 = sbr.rel (%p343) target = $region16
        $region15: #{tpu_custom_call.1} parent=11 // pred_region
          %347 = vsyncadd [#allocation9], 0
          %s348 = sshll.u32 %s2, 4
          %s349 = int_to_ptr.hbm [resolvable:$true] %s348
          %s350 = sshll.u32 [#allocation10], 4
          %s351 = int_to_ptr.vmem [resolvable:$true] %s350
          %356 = dma.hbm_to_vmem [thread:$0]  %s349, 1024, %s351, [#allocation9], 64, 64, 4
        $region16: #{tpu_custom_call.1} parent=11 // pred_fallthru
          _
        // Predicated region
        $region17: #{tpu_custom_call.1} parent=11 // pred_check
          %p357 = pneg %p138
        $region18: #{tpu_custom_call.1} parent=11 // pred_check_branch
          %359 = sbr.rel (%p357) target = $region20
        $region19: #{tpu_custom_call.1} parent=11 // pred_region
          _
        $region20: #{tpu_custom_call.1} parent=11 // pred_fallthru
          _
        // Predicated region
        $region21: #{tpu_custom_call.1} parent=11 // pred_check
          %p360 = pneg %p159
        $region22: #{tpu_custom_call.1} parent=11 // pred_check_branch
          %362 = sbr.rel (%p360) target = $region24
        $region23: #{tpu_custom_call.1} parent=11 // pred_region
          %364 = vsyncadd [#allocation12], 0
          %s365 = sshll.u32 %s4, 4
          %s366 = int_to_ptr.hbm [resolvable:$true] %s365
          %s367 = sshll.u32 [#allocation11], 4
          %s368 = int_to_ptr.vmem [resolvable:$true] %s367
          %373 = dma.hbm_to_vmem [thread:$0]  %s366, 1024, %s368, [#allocation12], 64, 64, 4
        $region24: #{tpu_custom_call.1} parent=11 // pred_fallthru
          _
        // Predicated region
        $region25: #{tpu_custom_call.1} parent=11 // pred_check
          %p374 = pneg %p180
        $region26: #{tpu_custom_call.1} parent=11 // pred_check_branch
          %376 = sbr.rel (%p374) target = $region28
        $region27: #{tpu_custom_call.1} parent=11 // pred_region
          _
        $region28: #{tpu_custom_call.1} parent=11 // pred_fallthru
          _
        // Predicated region
        $region29: #{tpu_custom_call.1} parent=11 // pred_check
          %p377 = pneg %p201
        $region30: #{tpu_custom_call.1} parent=11 // pred_check_branch
          %379 = sbr.rel (%p377) target = $region32
        $region31: #{tpu_custom_call.1} parent=11 // pred_region
          %381 = vsyncadd [#allocation12], 0
          %s382 = sshll.u32 %s6, 4
          %s383 = int_to_ptr.hbm [resolvable:$true] %s382
          %s384 = sshll.u32 [#allocation13], 4
          %s385 = int_to_ptr.vmem [resolvable:$true] %s384
          %390 = dma.hbm_to_vmem [thread:$0]  %s383, 1024, %s385, [#allocation12], 64, 64, 4
        $region32: #{tpu_custom_call.1} parent=11 // pred_fallthru
          _
        // Predicated region
        $region33: #{tpu_custom_call.1} parent=11 // pred_check
          %p391 = pneg %p222
        $region34: #{tpu_custom_call.1} parent=11 // pred_check_branch
          %393 = sbr.rel (%p391) target = $region36
        $region35: #{tpu_custom_call.1} parent=11 // pred_region
          _
        $region36: #{tpu_custom_call.1} parent=11 // pred_fallthru
          _
        // Predicated region
        $region37: #{tpu_custom_call.1} parent=11 // pred_check
          %p394 = pneg %p248
        $region38: #{tpu_custom_call.1} parent=11 // pred_check_branch
          %396 = sbr.rel (%p394) target = $region40
        $region39: #{tpu_custom_call.1} parent=11 // pred_region
          %s397 = smul.u32 2, %s42
          %399 = vsyncadd [#allocation15], 0
          %s400 = smul.addr %s397, 4
          %s401 = scalar_lea.hbm %s8, %s400
          %s402 = sshll.u32 %s401, 4
          %s403 = int_to_ptr.hbm [resolvable:$true] %s402
          %s404 = sshll.u32 [#allocation14], 4
          %s405 = int_to_ptr.vmem [resolvable:$true] %s404
          %410 = dma.hbm_to_vmem [thread:$0]  %s403, 2048, %s405, [#allocation15], 128, 128, 8
        $region40: #{tpu_custom_call.1} parent=11 // pred_fallthru
          _
        // Predicated region
        $region41: #{tpu_custom_call.1} parent=11 // pred_check
          %p411 = pneg %p274
        $region42: #{tpu_custom_call.1} parent=11 // pred_check_branch
          %413 = sbr.rel (%p411) target = $region44
        $region43: #{tpu_custom_call.1} parent=11 // pred_region
          %s414 = smul.u32 2, %s42
          %p415 = scmp.lt.s32.totalorder %s414, 1
          %s416 = scalar_select %p415, %s414, 1
          %s417 = scalar_lea.vmem %s9, %s416
          %s418 = smul.u32 2, %s42
        $region44: #{tpu_custom_call.1} parent=11 // pred_fallthru
          _
      $region12: #{tpu_custom_call.1} parent=5 // pred_fallthru
        _
      %p419 = scmp.lt.s32.totalorder %s32, 2
      // Predicated region
      $region45: #{tpu_custom_call.1} parent=5 // pred_check
        %p420 = pneg %p419
      $region46: #{tpu_custom_call.1} parent=5 // pred_check_branch
        %422 = sbr.rel (%p420) target = $region48
      $region47: #{tpu_custom_call.1} parent=5 // pred_region
        // Predicated region
        $region49: #{tpu_custom_call.1} parent=47 // pred_check
          %p423 = pneg %p64
        $region50: #{tpu_custom_call.1} parent=47 // pred_check_branch
          %425 = sbr.rel (%p423) target = $region52
        $region51: #{tpu_custom_call.1} parent=47 // pred_region
          %s426 = sand.u32 %s54, 1
          %s427 = scalar_lea.sflag [#allocation6], %s426
          %s428 = sand.u32 %s54, 1
          %s429 = smul.addr %s428, 128
          %s430 = scalar_lea.vmem [#allocation5], %s429
          %s431 = smul.u32 16, %s39
          %433 = vsyncadd %s427, 0
          %s434 = smul.addr %s431, 8
          %s435 = scalar_lea.hbm %s0, %s434
          %s436 = sshll.u32 %s435, 4
          %s437 = int_to_ptr.hbm [resolvable:$true] %s436
          %s438 = sshll.u32 %s430, 4
          %s439 = int_to_ptr.vmem [resolvable:$true] %s438
          %444 = dma.hbm_to_vmem [thread:$0]  %s437, 2048, %s439, %s427, 128, 128, 8
        $region52: #{tpu_custom_call.1} parent=47 // pred_fallthru
          _
        // Predicated region
        $region53: #{tpu_custom_call.1} parent=47 // pred_check
          %p445 = pneg %p90
        $region54: #{tpu_custom_call.1} parent=47 // pred_check_branch
          %447 = sbr.rel (%p445) target = $region56
        $region55: #{tpu_custom_call.1} parent=47 // pred_region
          %s448 = sand.u32 %s32, 1
          %s449 = scalar_lea.sflag [#allocation9], %s448
          %s450 = sand.u32 %s80, 1
          %s451 = smul.addr %s450, 128
          %s452 = scalar_lea.vmem [#allocation8], %s451
          %s453 = smul.u32 16, %s39
          %455 = vsyncadd %s449, 0
          %s456 = smul.addr %s453, 8
          %s457 = scalar_lea.hbm %s1, %s456
          %s458 = sshll.u32 %s457, 4
          %s459 = int_to_ptr.hbm [resolvable:$true] %s458
          %s460 = sshll.u32 %s452, 4
          %s461 = int_to_ptr.vmem [resolvable:$true] %s460
          %466 = dma.hbm_to_vmem [thread:$0]  %s459, 2048, %s461, %s449, 128, 128, 8
        $region56: #{tpu_custom_call.1} parent=47 // pred_fallthru
          _
      $region48: #{tpu_custom_call.1} parent=5 // pred_fallthru
        _
      %p467 = scmp.le.s32.totalorder 1, %s32
      %p468 = scmp.lt.s32.totalorder %s32, 3
      %p469 = pnand %p467, %p468
      %p470 = pneg %p469
      // Predicated region
      $region57: #{tpu_custom_call.1} parent=5 // pred_check
        _
      $region58: #{tpu_custom_call.1} parent=5 // pred_check_branch
        %472 = sbr.rel (%p469) target = $region60
      $region59: #{tpu_custom_call.1} parent=5 // pred_region
        %s473 = ssub.s32 %s32, 1
        %s474 = sand.u32 %s57, 1
        %s475 = scalar_lea.sflag [#allocation6], %s474
        %s476 = sand.u32 %s57, 1
        %s477 = smul.addr %s476, 128
        %s478 = scalar_lea.vmem [#allocation5], %s477
        // Predicated region
        $region61: #{tpu_custom_call.1} parent=59 // pred_check
          %p479 = pneg %p70
        $region62: #{tpu_custom_call.1} parent=59 // pred_check_branch
          %481 = sbr.rel (%p479) target = $region64
        $region63: #{tpu_custom_call.1} parent=59 // pred_region
          %483 = dma.done %s475, 2048
        $region64: #{tpu_custom_call.1} parent=59 // pred_fallthru
          _
        %s484 = sand.u32 %s37, 1
        %s485 = scalar_lea.sflag [#allocation9], %s484
        %s486 = sand.u32 %s83, 1
        %s487 = smul.addr %s486, 128
        %s488 = scalar_lea.vmem [#allocation8], %s487
        // Predicated region
        $region65: #{tpu_custom_call.1} parent=59 // pred_check
          %p489 = pneg %p96
        $region66: #{tpu_custom_call.1} parent=59 // pred_check_branch
          %491 = sbr.rel (%p489) target = $region68
        $region67: #{tpu_custom_call.1} parent=59 // pred_region
          %493 = dma.done %s485, 2048
        $region68: #{tpu_custom_call.1} parent=59 // pred_fallthru
          _
        // Predicated region
        $region69: #{tpu_custom_call.1} parent=59 // pred_check
          %p494 = pneg %p117
        $region70: #{tpu_custom_call.1} parent=59 // pred_check_branch
          %496 = sbr.rel (%p494) target = $region72
        $region71: #{tpu_custom_call.1} parent=59 // pred_region
          %498 = dma.done [#allocation9], 1024
        $region72: #{tpu_custom_call.1} parent=59 // pred_fallthru
          _
        // Predicated region
        $region73: #{tpu_custom_call.1} parent=59 // pred_check
          %p499 = pneg %p159
        $region74: #{tpu_custom_call.1} parent=59 // pred_check_branch
          %501 = sbr.rel (%p499) target = $region76
        $region75: #{tpu_custom_call.1} parent=59 // pred_region
          %503 = dma.done [#allocation12], 1024
        $region76: #{tpu_custom_call.1} parent=59 // pred_fallthru
          _
        // Predicated region
        $region77: #{tpu_custom_call.1} parent=59 // pred_check
          %p504 = pneg %p201
        $region78: #{tpu_custom_call.1} parent=59 // pred_check_branch
          %506 = sbr.rel (%p504) target = $region80
        $region79: #{tpu_custom_call.1} parent=59 // pred_region
          %508 = dma.done [#allocation12], 1024
        $region80: #{tpu_custom_call.1} parent=59 // pred_fallthru
          _
        // Predicated region
        $region81: #{tpu_custom_call.1} parent=59 // pred_check
          %p509 = pneg %p248
        $region82: #{tpu_custom_call.1} parent=59 // pred_check_branch
          %511 = sbr.rel (%p509) target = $region84
        $region83: #{tpu_custom_call.1} parent=59 // pred_region
          %513 = dma.done [#allocation15], 2048
        $region84: #{tpu_custom_call.1} parent=59 // pred_fallthru
          _
        %s514 = sand.u32 %s57, 1
        %s515 = scalar_lea.sflag [#allocation6], %s514
        %s516 = sand.u32 %s57, 1
        %s517 = smul.addr %s516, 128
        %s518 = scalar_lea.vmem [#allocation5], %s517
        %p519 = pneg %p70
        %p520 = pneg %p67
        %s521 = sand.u32 %s37, 1
        %s522 = scalar_lea.sflag [#allocation9], %s521
        %s523 = sand.u32 %s83, 1
        %s524 = smul.addr %s523, 128
        %s525 = scalar_lea.vmem [#allocation8], %s524
        %p526 = pneg %p96
        %p527 = pneg %p93
        %p528 = pneg %p117
        %p529 = pneg %p114
        %p530 = pneg %p138
        %p531 = pneg %p135
        %p532 = pneg %p159
        %p533 = pneg %p156
        %p534 = pneg %p180
        %p535 = pneg %p177
        %p536 = pneg %p201
        %p537 = pneg %p198
        %p538 = pneg %p222
        %p539 = pneg %p219
        %p540 = pneg %p248
        %p541 = pneg %p245
        %s542 = smul.u32 2, %s42
        %p543 = scmp.lt.s32.totalorder %s542, 1
        %s544 = scalar_select %p543, %s542, 1
        %s545 = scalar_lea.vmem %s9, %s544
        %p546 = pneg %p274
        %p547 = pneg %p271
        %p548 = pneg %p300
        %p549 = pneg %p297
        %s550 = sand.u32 %s287, 1
        %s551 = scalar_lea.sflag [#allocation7], %s550
        %s552 = sand.u32 %s287, 1
        %s553 = smul.addr %s552, 128
        %s554 = scalar_lea.vmem [#allocation16], %s553
        %p555 = pneg %p328
        %p556 = pneg %p325
        %s557 = sand.u32 %s315, 1
        %s558 = scalar_lea.sflag [#allocation18], %s557
        %s559 = sand.u32 %s315, 1
        %s560 = smul.addr %s559, 256
        %s561 = scalar_lea.vmem [#allocation17], %s560
        %s562 = smul.u32 16, %s41
        %s563 = smul.u32 16, %s41
        %s564 = smul.u32 2, %s42
        %s565 = smul.u32 2, %s42
        %p566 = scmp.lt.s32.totalorder %s565, 1
        %s567 = scalar_select %p566, %s565, 1
        %s568 = scalar_lea.vmem %s9, %s567
        %s569 = smul.u32 2, %s42
        %s570 = smul.u32 16, %s41
        %s571 = smul.u32 16, %s41
        %s572 = smul.u32 2, %s42
        %p573 = scmp.eq.s32.totalorder %s42, 0
        // Predicated region
        $region85: #{tpu_custom_call.1} parent=59 // pred_check
          %p574 = pneg %p573
        $region86: #{tpu_custom_call.1} parent=59 // pred_check_branch
          %576 = sbr.rel (%p574) target = $region88
        $region87: #{tpu_custom_call.1} parent=59 // pred_region
          %v577 = vld [vmem:[%s478] sm:$0xff]
          %v578 = vld [vmem:[%s478 + $0x8] sm:$0xff]
          %v579 = vld [vmem:[%s478 + $0x10] sm:$0xff]
          %v580 = vld [vmem:[%s478 + $0x18] sm:$0xff]
          %v581 = vld [vmem:[%s478 + $0x20] sm:$0xff]
          %v582 = vld [vmem:[%s478 + $0x28] sm:$0xff]
          %v583 = vld [vmem:[%s478 + $0x30] sm:$0xff]
          %v584 = vld [vmem:[%s478 + $0x38] sm:$0xff]
          %v585 = vld [vmem:[%s478 + $0x40] sm:$0xff]
          %v586 = vld [vmem:[%s478 + $0x48] sm:$0xff]
          %v587 = vld [vmem:[%s478 + $0x50] sm:$0xff]
          %v588 = vld [vmem:[%s478 + $0x58] sm:$0xff]
          %v589 = vld [vmem:[%s478 + $0x60] sm:$0xff]
          %v590 = vld [vmem:[%s478 + $0x68] sm:$0xff]
          %v591 = vld [vmem:[%s478 + $0x70] sm:$0xff]
          %v592 = vld [vmem:[%s478 + $0x78] sm:$0xff]
          %v593 = vld [vmem:[%s488] sm:$0xff]
          %v594 = vld [vmem:[%s488 + $0x8] sm:$0xff]
          %v595 = vld [vmem:[%s488 + $0x10] sm:$0xff]
          %v596 = vld [vmem:[%s488 + $0x18] sm:$0xff]
          %v597 = vld [vmem:[%s488 + $0x20] sm:$0xff]
          %v598 = vld [vmem:[%s488 + $0x28] sm:$0xff]
          %v599 = vld [vmem:[%s488 + $0x30] sm:$0xff]
          %v600 = vld [vmem:[%s488 + $0x38] sm:$0xff]
          %v601 = vld [vmem:[%s488 + $0x40] sm:$0xff]
          %v602 = vld [vmem:[%s488 + $0x48] sm:$0xff]
          %v603 = vld [vmem:[%s488 + $0x50] sm:$0xff]
          %v604 = vld [vmem:[%s488 + $0x58] sm:$0xff]
          %v605 = vld [vmem:[%s488 + $0x60] sm:$0xff]
          %v606 = vld [vmem:[%s488 + $0x68] sm:$0xff]
          %v607 = vld [vmem:[%s488 + $0x70] sm:$0xff]
          %v608 = vld [vmem:[%s488 + $0x78] sm:$0xff]
          %v609 = vmul.f32 %v593, 1.5
          %v610 = vmul.f32 %v594, 1.5
          %v611 = vmul.f32 %v595, 1.5
          %v612 = vmul.f32 %v596, 1.5
          %v613 = vmul.f32 %v597, 1.5
          %v614 = vmul.f32 %v598, 1.5
          %v615 = vmul.f32 %v599, 1.5
          %v616 = vmul.f32 %v600, 1.5
          %v617 = vmul.f32 %v601, 1.5
          %v618 = vmul.f32 %v602, 1.5
          %v619 = vmul.f32 %v603, 1.5
          %v620 = vmul.f32 %v604, 1.5
          %v621 = vmul.f32 %v605, 1.5
          %v622 = vmul.f32 %v606, 1.5
          %v623 = vmul.f32 %v607, 1.5
          %v624 = vmul.f32 %v608, 1.5
          %v625 = vadd.f32 %v577, %v609
          %v626 = vadd.f32 %v578, %v610
          %v627 = vadd.f32 %v579, %v611
          %v628 = vadd.f32 %v580, %v612
          %v629 = vadd.f32 %v581, %v613
          %v630 = vadd.f32 %v582, %v614
          %v631 = vadd.f32 %v583, %v615
          %v632 = vadd.f32 %v584, %v616
          %v633 = vadd.f32 %v585, %v617
          %v634 = vadd.f32 %v586, %v618
          %v635 = vadd.f32 %v587, %v619
          %v636 = vadd.f32 %v588, %v620
          %v637 = vadd.f32 %v589, %v621
          %v638 = vadd.f32 %v590, %v622
          %v639 = vadd.f32 %v591, %v623
          %v640 = vadd.f32 %v592, %v624
          %v641 = vpack.c.bf16 %v625, %v625
          %v642 = vpack.c.bf16 %v626, %v626
          %v643 = vpack.c.bf16 %v627, %v627
          %v644 = vpack.c.bf16 %v628, %v628
          %v645 = vpack.c.bf16 %v629, %v629
          %v646 = vpack.c.bf16 %v630, %v630
          %v647 = vpack.c.bf16 %v631, %v631
          %v648 = vpack.c.bf16 %v632, %v632
          %v649 = vpack.c.bf16 %v633, %v633
          %v650 = vpack.c.bf16 %v634, %v634
          %v651 = vpack.c.bf16 %v635, %v635
          %v652 = vpack.c.bf16 %v636, %v636
          %v653 = vpack.c.bf16 %v637, %v637
          %v654 = vpack.c.bf16 %v638, %v638
          %v655 = vpack.c.bf16 %v639, %v639
          %v656 = vpack.c.bf16 %v640, %v640
          %657 = vst [vmem:[#allocation2] sm:$0xf] %v641
          %658 = vst [vmem:[#allocation2 + $0x4] sm:$0xf] %v642
          %659 = vst [vmem:[#allocation2 + $0x8] sm:$0xf] %v643
          %660 = vst [vmem:[#allocation2 + $0xc] sm:$0xf] %v644
          %661 = vst [vmem:[#allocation2 + $0x10] sm:$0xf] %v645
          %662 = vst [vmem:[#allocation2 + $0x14] sm:$0xf] %v646
          %663 = vst [vmem:[#allocation2 + $0x18] sm:$0xf] %v647
          %664 = vst [vmem:[#allocation2 + $0x1c] sm:$0xf] %v648
          %665 = vst [vmem:[#allocation2 + $0x20] sm:$0xf] %v649
          %666 = vst [vmem:[#allocation2 + $0x24] sm:$0xf] %v650
          %667 = vst [vmem:[#allocation2 + $0x28] sm:$0xf] %v651
          %668 = vst [vmem:[#allocation2 + $0x2c] sm:$0xf] %v652
          %669 = vst [vmem:[#allocation2 + $0x30] sm:$0xf] %v653
          %670 = vst [vmem:[#allocation2 + $0x34] sm:$0xf] %v654
          %671 = vst [vmem:[#allocation2 + $0x38] sm:$0xf] %v655
          %672 = vst [vmem:[#allocation2 + $0x3c] sm:$0xf] %v656
          %v673 = vpack.c.bf16 %v577, %v577
          %v674 = vpack.c.bf16 %v578, %v578
          %v675 = vpack.c.bf16 %v579, %v579
          %v676 = vpack.c.bf16 %v580, %v580
          %v677 = vpack.c.bf16 %v581, %v581
          %v678 = vpack.c.bf16 %v582, %v582
          %v679 = vpack.c.bf16 %v583, %v583
          %v680 = vpack.c.bf16 %v584, %v584
          %v681 = vpack.c.bf16 %v585, %v585
          %v682 = vpack.c.bf16 %v586, %v586
          %v683 = vpack.c.bf16 %v587, %v587
          %v684 = vpack.c.bf16 %v588, %v588
          %v685 = vpack.c.bf16 %v589, %v589
          %v686 = vpack.c.bf16 %v590, %v590
          %v687 = vpack.c.bf16 %v591, %v591
          %v688 = vpack.c.bf16 %v592, %v592
          %689 = vst [vmem:[#allocation2 + $0x40] sm:$0xf] %v673
          %690 = vst [vmem:[#allocation2 + $0x44] sm:$0xf] %v674
          %691 = vst [vmem:[#allocation2 + $0x48] sm:$0xf] %v675
          %692 = vst [vmem:[#allocation2 + $0x4c] sm:$0xf] %v676
          %693 = vst [vmem:[#allocation2 + $0x50] sm:$0xf] %v677
          %694 = vst [vmem:[#allocation2 + $0x54] sm:$0xf] %v678
          %695 = vst [vmem:[#allocation2 + $0x58] sm:$0xf] %v679
          %696 = vst [vmem:[#allocation2 + $0x5c] sm:$0xf] %v680
          %697 = vst [vmem:[#allocation2 + $0x60] sm:$0xf] %v681
          %698 = vst [vmem:[#allocation2 + $0x64] sm:$0xf] %v682
          %699 = vst [vmem:[#allocation2 + $0x68] sm:$0xf] %v683
          %700 = vst [vmem:[#allocation2 + $0x6c] sm:$0xf] %v684
          %701 = vst [vmem:[#allocation2 + $0x70] sm:$0xf] %v685
          %702 = vst [vmem:[#allocation2 + $0x74] sm:$0xf] %v686
          %703 = vst [vmem:[#allocation2 + $0x78] sm:$0xf] %v687
          %704 = vst [vmem:[#allocation2 + $0x7c] sm:$0xf] %v688
          %v705 = vld [vmem:[#allocation2] sm:$0xf]
          %v706 = vld [vmem:[#allocation2 + $0x4] sm:$0xf]
          %v707 = vld [vmem:[#allocation2 + $0x8] sm:$0xf]
          %v708 = vld [vmem:[#allocation2 + $0xc] sm:$0xf]
          %v709 = vld [vmem:[#allocation2 + $0x10] sm:$0xf]
          %v710 = vld [vmem:[#allocation2 + $0x14] sm:$0xf]
          %v711 = vld [vmem:[#allocation2 + $0x18] sm:$0xf]
          %v712 = vld [vmem:[#allocation2 + $0x1c] sm:$0xf]
          %v713 = vld [vmem:[#allocation2 + $0x20] sm:$0xf]
          %v714 = vld [vmem:[#allocation2 + $0x24] sm:$0xf]
          %v715 = vld [vmem:[#allocation2 + $0x28] sm:$0xf]
          %v716 = vld [vmem:[#allocation2 + $0x2c] sm:$0xf]
          %v717 = vld [vmem:[#allocation2 + $0x30] sm:$0xf]
          %v718 = vld [vmem:[#allocation2 + $0x34] sm:$0xf]
          %v719 = vld [vmem:[#allocation2 + $0x38] sm:$0xf]
          %v720 = vld [vmem:[#allocation2 + $0x3c] sm:$0xf]
          %v721 = vld [vmem:[#allocation2 + $0x40] sm:$0xf]
          %v722 = vld [vmem:[#allocation2 + $0x44] sm:$0xf]
          %v723 = vld [vmem:[#allocation2 + $0x48] sm:$0xf]
          %v724 = vld [vmem:[#allocation2 + $0x4c] sm:$0xf]
          %v725 = vld [vmem:[#allocation2 + $0x50] sm:$0xf]
          %v726 = vld [vmem:[#allocation2 + $0x54] sm:$0xf]
          %v727 = vld [vmem:[#allocation2 + $0x58] sm:$0xf]
          %v728 = vld [vmem:[#allocation2 + $0x5c] sm:$0xf]
          %v729 = vld [vmem:[#allocation2 + $0x60] sm:$0xf]
          %v730 = vld [vmem:[#allocation2 + $0x64] sm:$0xf]
          %v731 = vld [vmem:[#allocation2 + $0x68] sm:$0xf]
          %v732 = vld [vmem:[#allocation2 + $0x6c] sm:$0xf]
          %v733 = vld [vmem:[#allocation2 + $0x70] sm:$0xf]
          %v734 = vld [vmem:[#allocation2 + $0x74] sm:$0xf]
          %v735 = vld [vmem:[#allocation2 + $0x78] sm:$0xf]
          %v736 = vld [vmem:[#allocation2 + $0x7c] sm:$0xf]
          %v737 = vld [vmem:[#allocation10] sm:$0xf]
          %v738 = vld [vmem:[#allocation10 + $0x4] sm:$0xf]
          %v739 = vld [vmem:[#allocation10 + $0x8] sm:$0xf]
          %v740 = vld [vmem:[#allocation10 + $0xc] sm:$0xf]
          %v741 = vld [vmem:[#allocation10 + $0x10] sm:$0xf]
          %v742 = vld [vmem:[#allocation10 + $0x14] sm:$0xf]
          %v743 = vld [vmem:[#allocation10 + $0x18] sm:$0xf]
          %v744 = vld [vmem:[#allocation10 + $0x1c] sm:$0xf]
          %v745 = vld [vmem:[#allocation10 + $0x20] sm:$0xf]
          %v746 = vld [vmem:[#allocation10 + $0x24] sm:$0xf]
          %v747 = vld [vmem:[#allocation10 + $0x28] sm:$0xf]
          %v748 = vld [vmem:[#allocation10 + $0x2c] sm:$0xf]
          %v749 = vld [vmem:[#allocation10 + $0x30] sm:$0xf]
          %v750 = vld [vmem:[#allocation10 + $0x34] sm:$0xf]
          %v751 = vld [vmem:[#allocation10 + $0x38] sm:$0xf]
          %v752 = vld [vmem:[#allocation10 + $0x3c] sm:$0xf]
          %v753 = vld [vmem:[%s3] sm:$0x1]
          %v755 = vperm.slane %v753, 0
          %v789 = vunpack.c.l.b16 %v705
          %v790 = vunpack.c.l.b16 %v706
          %v791 = vunpack.c.l.b16 %v707
          %v792 = vunpack.c.l.b16 %v708
          %v793 = vunpack.c.l.b16 %v709
          %v794 = vunpack.c.l.b16 %v710
          %v795 = vunpack.c.l.b16 %v711
          %v796 = vunpack.c.l.b16 %v712
          %v797 = vunpack.c.l.b16 %v713
          %v798 = vunpack.c.l.b16 %v714
          %v799 = vunpack.c.l.b16 %v715
          %v800 = vunpack.c.l.b16 %v716
          %v801 = vunpack.c.l.b16 %v717
          %v802 = vunpack.c.l.b16 %v718
          %v803 = vunpack.c.l.b16 %v719
          %v804 = vunpack.c.l.b16 %v720
          %v805 = vunpack.c.l.b16 %v721
          %v806 = vunpack.c.l.b16 %v722
          %v807 = vunpack.c.l.b16 %v723
          %v808 = vunpack.c.l.b16 %v724
          %v809 = vunpack.c.l.b16 %v725
          %v810 = vunpack.c.l.b16 %v726
          %v811 = vunpack.c.l.b16 %v727
          %v812 = vunpack.c.l.b16 %v728
          %v813 = vunpack.c.l.b16 %v729
          %v814 = vunpack.c.l.b16 %v730
          %v815 = vunpack.c.l.b16 %v731
          %v816 = vunpack.c.l.b16 %v732
          %v817 = vunpack.c.l.b16 %v733
          %v818 = vunpack.c.l.b16 %v734
          %v819 = vunpack.c.l.b16 %v735
          %v820 = vunpack.c.l.b16 %v736
          %v821 = vpack.c.b16 %v790, %v789
          %v822 = vpack.c.b16 %v792, %v791
          %v823 = vpack.c.b16 %v794, %v793
          %v824 = vpack.c.b16 %v796, %v795
          %v825 = vpack.c.b16 %v798, %v797
          %v826 = vpack.c.b16 %v800, %v799
          %v827 = vpack.c.b16 %v802, %v801
          %v828 = vpack.c.b16 %v804, %v803
          %v829 = vpack.c.b16 %v806, %v805
          %v830 = vpack.c.b16 %v808, %v807
          %v831 = vpack.c.b16 %v810, %v809
          %v832 = vpack.c.b16 %v812, %v811
          %v833 = vpack.c.b16 %v814, %v813
          %v834 = vpack.c.b16 %v816, %v815
          %v835 = vpack.c.b16 %v818, %v817
          %v836 = vpack.c.b16 %v820, %v819
          %v869 = vunpack.c.l.b16 %v737
          %v870 = vunpack.c.l.b16 %v738
          %v871 = vunpack.c.l.b16 %v739
          %v872 = vunpack.c.l.b16 %v740
          %v873 = vunpack.c.l.b16 %v741
          %v874 = vunpack.c.l.b16 %v742
          %v875 = vunpack.c.l.b16 %v743
          %v876 = vunpack.c.l.b16 %v744
          %v877 = vunpack.c.l.b16 %v745
          %v878 = vunpack.c.l.b16 %v746
          %v879 = vunpack.c.l.b16 %v747
          %v880 = vunpack.c.l.b16 %v748
          %v881 = vunpack.c.l.b16 %v749
          %v882 = vunpack.c.l.b16 %v750
          %v883 = vunpack.c.l.b16 %v751
          %v884 = vunpack.c.l.b16 %v752
          %v885 = vpack.c.b16 %v870, %v869
          %v886 = vpack.c.b16 %v872, %v871
          %v887 = vpack.c.b16 %v874, %v873
          %v888 = vpack.c.b16 %v876, %v875
          %v889 = vpack.c.b16 %v878, %v877
          %v890 = vpack.c.b16 %v880, %v879
          %v891 = vpack.c.b16 %v882, %v881
          %v892 = vpack.c.b16 %v884, %v883
          %901 = vmatpush.bf16.msra.mxu0 %v892
          %902 = vmatpush.bf16.msra.mxu0 %v891
          %903 = vmatpush.bf16.msra.mxu0 %v890
          %904 = vmatpush.bf16.msra.mxu0 %v889
          %905 = vmatpush.bf16.msra.mxu0 %v888
          %906 = vmatpush.bf16.msra.mxu0 %v887
          %907 = vmatpush.bf16.msra.mxu0 %v886
          %908 = vmatpush.bf16.msra.mxu0 %v885
          %909 = vmatmul.bf16.gmra.mxu0 %v821
          %v910 = vpop.f32.mrf.mxu0
          %v911 = vadd.f32 %v755, %v910
          %v912 = vpop.f32.mrf.mxu0
          %v913 = vadd.f32 %v755, %v912
          %914 = vmatmul.bf16.gmra.mxu0 %v822
          %v915 = vpop.f32.mrf.mxu0
          %v916 = vadd.f32 %v755, %v915
          %v917 = vpop.f32.mrf.mxu0
          %v918 = vadd.f32 %v755, %v917
          %919 = vmatmul.bf16.gmra.mxu0 %v823
          %v920 = vpop.f32.mrf.mxu0
          %v921 = vadd.f32 %v755, %v920
          %v922 = vpop.f32.mrf.mxu0
          %v923 = vadd.f32 %v755, %v922
          %924 = vmatmul.bf16.gmra.mxu0 %v824
          %v925 = vpop.f32.mrf.mxu0
          %v926 = vadd.f32 %v755, %v925
          %v927 = vpop.f32.mrf.mxu0
          %v928 = vadd.f32 %v755, %v927
          %929 = vmatmul.bf16.gmra.mxu0 %v825
          %v930 = vpop.f32.mrf.mxu0
          %v931 = vadd.f32 %v755, %v930
          %v932 = vpop.f32.mrf.mxu0
          %v933 = vadd.f32 %v755, %v932
          %934 = vmatmul.bf16.gmra.mxu0 %v826
          %v935 = vpop.f32.mrf.mxu0
          %v936 = vadd.f32 %v755, %v935
          %v937 = vpop.f32.mrf.mxu0
          %v938 = vadd.f32 %v755, %v937
          %939 = vmatmul.bf16.gmra.mxu0 %v827
          %v940 = vpop.f32.mrf.mxu0
          %v941 = vadd.f32 %v755, %v940
          %v942 = vpop.f32.mrf.mxu0
          %v943 = vadd.f32 %v755, %v942
          %944 = vmatmul.bf16.gmra.mxu0 %v828
          %v945 = vpop.f32.mrf.mxu0
          %v946 = vadd.f32 %v755, %v945
          %v947 = vpop.f32.mrf.mxu0
          %v948 = vadd.f32 %v755, %v947
          %949 = vmatmul.bf16.gmra.mxu0 %v829
          %v950 = vpop.f32.mrf.mxu0
          %v951 = vadd.f32 %v755, %v950
          %v952 = vpop.f32.mrf.mxu0
          %v953 = vadd.f32 %v755, %v952
          %954 = vmatmul.bf16.gmra.mxu0 %v830
          %v955 = vpop.f32.mrf.mxu0
          %v956 = vadd.f32 %v755, %v955
          %v957 = vpop.f32.mrf.mxu0
          %v958 = vadd.f32 %v755, %v957
          %959 = vmatmul.bf16.gmra.mxu0 %v831
          %v960 = vpop.f32.mrf.mxu0
          %v961 = vadd.f32 %v755, %v960
          %v962 = vpop.f32.mrf.mxu0
          %v963 = vadd.f32 %v755, %v962
          %964 = vmatmul.bf16.gmra.mxu0 %v832
          %v965 = vpop.f32.mrf.mxu0
          %v966 = vadd.f32 %v755, %v965
          %v967 = vpop.f32.mrf.mxu0
          %v968 = vadd.f32 %v755, %v967
          %969 = vmatmul.bf16.gmra.mxu0 %v833
          %v970 = vpop.f32.mrf.mxu0
          %v971 = vadd.f32 %v755, %v970
          %v972 = vpop.f32.mrf.mxu0
          %v973 = vadd.f32 %v755, %v972
          %974 = vmatmul.bf16.gmra.mxu0 %v834
          %v975 = vpop.f32.mrf.mxu0
          %v976 = vadd.f32 %v755, %v975
          %v977 = vpop.f32.mrf.mxu0
          %v978 = vadd.f32 %v755, %v977
          %979 = vmatmul.bf16.gmra.mxu0 %v835
          %v980 = vpop.f32.mrf.mxu0
          %v981 = vadd.f32 %v755, %v980
          %v982 = vpop.f32.mrf.mxu0
          %v983 = vadd.f32 %v755, %v982
          %984 = vmatmul.bf16.gmra.mxu0 %v836
          %v985 = vpop.f32.mrf.mxu0
          %v986 = vadd.f32 %v755, %v985
          %v987 = vpop.f32.mrf.mxu0
          %v988 = vadd.f32 %v755, %v987
          %989 = vdwg.mxu0
          %v990 = vmax.f32 %v911, 0.0
          %v991 = vmax.f32 %v913, 0.0
          %v992 = vmax.f32 %v916, 0.0
          %v993 = vmax.f32 %v918, 0.0
          %v994 = vmax.f32 %v921, 0.0
          %v995 = vmax.f32 %v923, 0.0
          %v996 = vmax.f32 %v926, 0.0
          %v997 = vmax.f32 %v928, 0.0
          %v998 = vmax.f32 %v931, 0.0
          %v999 = vmax.f32 %v933, 0.0
          %v1000 = vmax.f32 %v936, 0.0
          %v1001 = vmax.f32 %v938, 0.0
          %v1002 = vmax.f32 %v941, 0.0
          %v1003 = vmax.f32 %v943, 0.0
          %v1004 = vmax.f32 %v946, 0.0
          %v1005 = vmax.f32 %v948, 0.0
          %v1006 = vmax.f32 %v951, 0.0
          %v1007 = vmax.f32 %v953, 0.0
          %v1008 = vmax.f32 %v956, 0.0
          %v1009 = vmax.f32 %v958, 0.0
          %v1010 = vmax.f32 %v961, 0.0
          %v1011 = vmax.f32 %v963, 0.0
          %v1012 = vmax.f32 %v966, 0.0
          %v1013 = vmax.f32 %v968, 0.0
          %v1014 = vmax.f32 %v971, 0.0
          %v1015 = vmax.f32 %v973, 0.0
          %v1016 = vmax.f32 %v976, 0.0
          %v1017 = vmax.f32 %v978, 0.0
          %v1018 = vmax.f32 %v981, 0.0
          %v1019 = vmax.f32 %v983, 0.0
          %v1020 = vmax.f32 %v986, 0.0
          %v1021 = vmax.f32 %v988, 0.0
          %v1022 = vpack.c.bf16 %v991, %v990
          %v1023 = vpack.c.bf16 %v993, %v992
          %v1024 = vpack.c.bf16 %v995, %v994
          %v1025 = vpack.c.bf16 %v997, %v996
          %v1026 = vpack.c.bf16 %v999, %v998
          %v1027 = vpack.c.bf16 %v1001, %v1000
          %v1028 = vpack.c.bf16 %v1003, %v1002
          %v1029 = vpack.c.bf16 %v1005, %v1004
          %v1030 = vpack.c.bf16 %v1007, %v1006
          %v1031 = vpack.c.bf16 %v1009, %v1008
          %v1032 = vpack.c.bf16 %v1011, %v1010
          %v1033 = vpack.c.bf16 %v1013, %v1012
          %v1034 = vpack.c.bf16 %v1015, %v1014
          %v1035 = vpack.c.bf16 %v1017, %v1016
          %v1036 = vpack.c.bf16 %v1019, %v1018
          %v1037 = vpack.c.bf16 %v1021, %v1020
          %v1038 = vld [vmem:[#allocation11] sm:$0xf]
          %v1039 = vld [vmem:[#allocation11 + $0x4] sm:$0xf]
          %v1040 = vld [vmem:[#allocation11 + $0x8] sm:$0xf]
          %v1041 = vld [vmem:[#allocation11 + $0xc] sm:$0xf]
          %v1042 = vld [vmem:[#allocation11 + $0x10] sm:$0xf]
          %v1043 = vld [vmem:[#allocation11 + $0x14] sm:$0xf]
          %v1044 = vld [vmem:[#allocation11 + $0x18] sm:$0xf]
          %v1045 = vld [vmem:[#allocation11 + $0x1c] sm:$0xf]
          %v1046 = vld [vmem:[#allocation11 + $0x20] sm:$0xf]
          %v1047 = vld [vmem:[#allocation11 + $0x24] sm:$0xf]
          %v1048 = vld [vmem:[#allocation11 + $0x28] sm:$0xf]
          %v1049 = vld [vmem:[#allocation11 + $0x2c] sm:$0xf]
          %v1050 = vld [vmem:[#allocation11 + $0x30] sm:$0xf]
          %v1051 = vld [vmem:[#allocation11 + $0x34] sm:$0xf]
          %v1052 = vld [vmem:[#allocation11 + $0x38] sm:$0xf]
          %v1053 = vld [vmem:[#allocation11 + $0x3c] sm:$0xf]
          %v1054 = vld [vmem:[%s5] sm:$0x1]
          %v1056 = vperm.slane %v1054, 0
          %v1074 = vunpack.c.l.b16 %v1038
          %v1075 = vunpack.c.l.b16 %v1039
          %v1076 = vunpack.c.l.b16 %v1040
          %v1077 = vunpack.c.l.b16 %v1041
          %v1078 = vunpack.c.l.b16 %v1042
          %v1079 = vunpack.c.l.b16 %v1043
          %v1080 = vunpack.c.l.b16 %v1044
          %v1081 = vunpack.c.l.b16 %v1045
          %v1082 = vunpack.c.l.b16 %v1046
          %v1083 = vunpack.c.l.b16 %v1047
          %v1084 = vunpack.c.l.b16 %v1048
          %v1085 = vunpack.c.l.b16 %v1049
          %v1086 = vunpack.c.l.b16 %v1050
          %v1087 = vunpack.c.l.b16 %v1051
          %v1088 = vunpack.c.l.b16 %v1052
          %v1089 = vunpack.c.l.b16 %v1053
          %v1090 = vpack.c.b16 %v1075, %v1074
          %v1091 = vpack.c.b16 %v1077, %v1076
          %v1092 = vpack.c.b16 %v1079, %v1078
          %v1093 = vpack.c.b16 %v1081, %v1080
          %v1094 = vpack.c.b16 %v1083, %v1082
          %v1095 = vpack.c.b16 %v1085, %v1084
          %v1096 = vpack.c.b16 %v1087, %v1086
          %v1097 = vpack.c.b16 %v1089, %v1088
          %1106 = vmatpush.bf16.msra.mxu0 %v1097
          %1107 = vmatpush.bf16.msra.mxu0 %v1096
          %1108 = vmatpush.bf16.msra.mxu0 %v1095
          %1109 = vmatpush.bf16.msra.mxu0 %v1094
          %1110 = vmatpush.bf16.msra.mxu0 %v1093
          %1111 = vmatpush.bf16.msra.mxu0 %v1092
          %1112 = vmatpush.bf16.msra.mxu0 %v1091
          %1113 = vmatpush.bf16.msra.mxu0 %v1090
          %1114 = vmatmul.bf16.gmra.mxu0 %v1022
          %v1115 = vpop.f32.mrf.mxu0
          %v1116 = vadd.f32 %v1056, %v1115
          %v1117 = vpop.f32.mrf.mxu0
          %v1118 = vadd.f32 %v1056, %v1117
          %1119 = vmatmul.bf16.gmra.mxu0 %v1023
          %v1120 = vpop.f32.mrf.mxu0
          %v1121 = vadd.f32 %v1056, %v1120
          %v1122 = vpop.f32.mrf.mxu0
          %v1123 = vadd.f32 %v1056, %v1122
          %1124 = vmatmul.bf16.gmra.mxu0 %v1024
          %v1125 = vpop.f32.mrf.mxu0
          %v1126 = vadd.f32 %v1056, %v1125
          %v1127 = vpop.f32.mrf.mxu0
          %v1128 = vadd.f32 %v1056, %v1127
          %1129 = vmatmul.bf16.gmra.mxu0 %v1025
          %v1130 = vpop.f32.mrf.mxu0
          %v1131 = vadd.f32 %v1056, %v1130
          %v1132 = vpop.f32.mrf.mxu0
          %v1133 = vadd.f32 %v1056, %v1132
          %1134 = vmatmul.bf16.gmra.mxu0 %v1026
          %v1135 = vpop.f32.mrf.mxu0
          %v1136 = vadd.f32 %v1056, %v1135
          %v1137 = vpop.f32.mrf.mxu0
          %v1138 = vadd.f32 %v1056, %v1137
          %1139 = vmatmul.bf16.gmra.mxu0 %v1027
          %v1140 = vpop.f32.mrf.mxu0
          %v1141 = vadd.f32 %v1056, %v1140
          %v1142 = vpop.f32.mrf.mxu0
          %v1143 = vadd.f32 %v1056, %v1142
          %1144 = vmatmul.bf16.gmra.mxu0 %v1028
          %v1145 = vpop.f32.mrf.mxu0
          %v1146 = vadd.f32 %v1056, %v1145
          %v1147 = vpop.f32.mrf.mxu0
          %v1148 = vadd.f32 %v1056, %v1147
          %1149 = vmatmul.bf16.gmra.mxu0 %v1029
          %v1150 = vpop.f32.mrf.mxu0
          %v1151 = vadd.f32 %v1056, %v1150
          %v1152 = vpop.f32.mrf.mxu0
          %v1153 = vadd.f32 %v1056, %v1152
          %1154 = vmatmul.bf16.gmra.mxu0 %v1030
          %v1155 = vpop.f32.mrf.mxu0
          %v1156 = vadd.f32 %v1056, %v1155
          %v1157 = vpop.f32.mrf.mxu0
          %v1158 = vadd.f32 %v1056, %v1157
          %1159 = vmatmul.bf16.gmra.mxu0 %v1031
          %v1160 = vpop.f32.mrf.mxu0
          %v1161 = vadd.f32 %v1056, %v1160
          %v1162 = vpop.f32.mrf.mxu0
          %v1163 = vadd.f32 %v1056, %v1162
          %1164 = vmatmul.bf16.gmra.mxu0 %v1032
          %v1165 = vpop.f32.mrf.mxu0
          %v1166 = vadd.f32 %v1056, %v1165
          %v1167 = vpop.f32.mrf.mxu0
          %v1168 = vadd.f32 %v1056, %v1167
          %1169 = vmatmul.bf16.gmra.mxu0 %v1033
          %v1170 = vpop.f32.mrf.mxu0
          %v1171 = vadd.f32 %v1056, %v1170
          %v1172 = vpop.f32.mrf.mxu0
          %v1173 = vadd.f32 %v1056, %v1172
          %1174 = vmatmul.bf16.gmra.mxu0 %v1034
          %v1175 = vpop.f32.mrf.mxu0
          %v1176 = vadd.f32 %v1056, %v1175
          %v1177 = vpop.f32.mrf.mxu0
          %v1178 = vadd.f32 %v1056, %v1177
          %1179 = vmatmul.bf16.gmra.mxu0 %v1035
          %v1180 = vpop.f32.mrf.mxu0
          %v1181 = vadd.f32 %v1056, %v1180
          %v1182 = vpop.f32.mrf.mxu0
          %v1183 = vadd.f32 %v1056, %v1182
          %1184 = vmatmul.bf16.gmra.mxu0 %v1036
          %v1185 = vpop.f32.mrf.mxu0
          %v1186 = vadd.f32 %v1056, %v1185
          %v1187 = vpop.f32.mrf.mxu0
          %v1188 = vadd.f32 %v1056, %v1187
          %1189 = vmatmul.bf16.gmra.mxu0 %v1037
          %v1190 = vpop.f32.mrf.mxu0
          %v1191 = vadd.f32 %v1056, %v1190
          %v1192 = vpop.f32.mrf.mxu0
          %v1193 = vadd.f32 %v1056, %v1192
          %1194 = vdwg.mxu0
          %1195 = vst [vmem:[#allocation4] sm:$0xff] %v1156
          %1196 = vst [vmem:[#allocation4 + $0x8] sm:$0xff] %v1158
          %1197 = vst [vmem:[#allocation4 + $0x10] sm:$0xff] %v1161
          %1198 = vst [vmem:[#allocation4 + $0x18] sm:$0xff] %v1163
          %1199 = vst [vmem:[#allocation4 + $0x20] sm:$0xff] %v1166
          %1200 = vst [vmem:[#allocation4 + $0x28] sm:$0xff] %v1168
          %1201 = vst [vmem:[#allocation4 + $0x30] sm:$0xff] %v1171
          %1202 = vst [vmem:[#allocation4 + $0x38] sm:$0xff] %v1173
          %1203 = vst [vmem:[#allocation4 + $0x40] sm:$0xff] %v1176
          %1204 = vst [vmem:[#allocation4 + $0x48] sm:$0xff] %v1178
          %1205 = vst [vmem:[#allocation4 + $0x50] sm:$0xff] %v1181
          %1206 = vst [vmem:[#allocation4 + $0x58] sm:$0xff] %v1183
          %1207 = vst [vmem:[#allocation4 + $0x60] sm:$0xff] %v1186
          %1208 = vst [vmem:[#allocation4 + $0x68] sm:$0xff] %v1188
          %1209 = vst [vmem:[#allocation4 + $0x70] sm:$0xff] %v1191
          %1210 = vst [vmem:[#allocation4 + $0x78] sm:$0xff] %v1193
          %v1211 = vpack.c.bf16 %v1118, %v1116
          %v1212 = vpack.c.bf16 %v1123, %v1121
          %v1213 = vpack.c.bf16 %v1128, %v1126
          %v1214 = vpack.c.bf16 %v1133, %v1131
          %v1215 = vpack.c.bf16 %v1138, %v1136
          %v1216 = vpack.c.bf16 %v1143, %v1141
          %v1217 = vpack.c.bf16 %v1148, %v1146
          %v1218 = vpack.c.bf16 %v1153, %v1151
          %v1219 = vld [vmem:[#allocation13] sm:$0xf]
          %v1220 = vld [vmem:[#allocation13 + $0x4] sm:$0xf]
          %v1221 = vld [vmem:[#allocation13 + $0x8] sm:$0xf]
          %v1222 = vld [vmem:[#allocation13 + $0xc] sm:$0xf]
          %v1223 = vld [vmem:[#allocation13 + $0x10] sm:$0xf]
          %v1224 = vld [vmem:[#allocation13 + $0x14] sm:$0xf]
          %v1225 = vld [vmem:[#allocation13 + $0x18] sm:$0xf]
          %v1226 = vld [vmem:[#allocation13 + $0x1c] sm:$0xf]
          %v1227 = vld [vmem:[#allocation13 + $0x20] sm:$0xf]
          %v1228 = vld [vmem:[#allocation13 + $0x24] sm:$0xf]
          %v1229 = vld [vmem:[#allocation13 + $0x28] sm:$0xf]
          %v1230 = vld [vmem:[#allocation13 + $0x2c] sm:$0xf]
          %v1231 = vld [vmem:[#allocation13 + $0x30] sm:$0xf]
          %v1232 = vld [vmem:[#allocation13 + $0x34] sm:$0xf]
          %v1233 = vld [vmem:[#allocation13 + $0x38] sm:$0xf]
          %v1234 = vld [vmem:[#allocation13 + $0x3c] sm:$0xf]
          %v1235 = vld [vmem:[%s7] sm:$0x1]
          %v1237 = vperm.slane %v1235, 0
          %v1255 = vunpack.c.l.b16 %v1219
          %v1256 = vunpack.c.l.b16 %v1220
          %v1257 = vunpack.c.l.b16 %v1221
          %v1258 = vunpack.c.l.b16 %v1222
          %v1259 = vunpack.c.l.b16 %v1223
          %v1260 = vunpack.c.l.b16 %v1224
          %v1261 = vunpack.c.l.b16 %v1225
          %v1262 = vunpack.c.l.b16 %v1226
          %v1263 = vunpack.c.l.b16 %v1227
          %v1264 = vunpack.c.l.b16 %v1228
          %v1265 = vunpack.c.l.b16 %v1229
          %v1266 = vunpack.c.l.b16 %v1230
          %v1267 = vunpack.c.l.b16 %v1231
          %v1268 = vunpack.c.l.b16 %v1232
          %v1269 = vunpack.c.l.b16 %v1233
          %v1270 = vunpack.c.l.b16 %v1234
          %v1271 = vpack.c.b16 %v1256, %v1255
          %v1272 = vpack.c.b16 %v1258, %v1257
          %v1273 = vpack.c.b16 %v1260, %v1259
          %v1274 = vpack.c.b16 %v1262, %v1261
          %v1275 = vpack.c.b16 %v1264, %v1263
          %v1276 = vpack.c.b16 %v1266, %v1265
          %v1277 = vpack.c.b16 %v1268, %v1267
          %v1278 = vpack.c.b16 %v1270, %v1269
          %1287 = vmatpush.bf16.msra.mxu0 %v1278
          %1288 = vmatpush.bf16.msra.mxu0 %v1277
          %1289 = vmatpush.bf16.msra.mxu0 %v1276
          %1290 = vmatpush.bf16.msra.mxu0 %v1275
          %1291 = vmatpush.bf16.msra.mxu0 %v1274
          %1292 = vmatpush.bf16.msra.mxu0 %v1273
          %1293 = vmatpush.bf16.msra.mxu0 %v1272
          %1294 = vmatpush.bf16.msra.mxu0 %v1271
          %1295 = vmatmul.bf16.gmra.mxu0 %v1211
          %v1296 = vpop.f32.mrf.mxu0
          %v1297 = vadd.f32 %v1237, %v1296
          %v1298 = vpop.f32.mrf.mxu0
          %v1299 = vadd.f32 %v1237, %v1298
          %1300 = vmatmul.bf16.gmra.mxu0 %v1212
          %v1301 = vpop.f32.mrf.mxu0
          %v1302 = vadd.f32 %v1237, %v1301
          %v1303 = vpop.f32.mrf.mxu0
          %v1304 = vadd.f32 %v1237, %v1303
          %1305 = vmatmul.bf16.gmra.mxu0 %v1213
          %v1306 = vpop.f32.mrf.mxu0
          %v1307 = vadd.f32 %v1237, %v1306
          %v1308 = vpop.f32.mrf.mxu0
          %v1309 = vadd.f32 %v1237, %v1308
          %1310 = vmatmul.bf16.gmra.mxu0 %v1214
          %v1311 = vpop.f32.mrf.mxu0
          %v1312 = vadd.f32 %v1237, %v1311
          %v1313 = vpop.f32.mrf.mxu0
          %v1314 = vadd.f32 %v1237, %v1313
          %1315 = vmatmul.bf16.gmra.mxu0 %v1215
          %v1316 = vpop.f32.mrf.mxu0
          %v1317 = vadd.f32 %v1237, %v1316
          %v1318 = vpop.f32.mrf.mxu0
          %v1319 = vadd.f32 %v1237, %v1318
          %1320 = vmatmul.bf16.gmra.mxu0 %v1216
          %v1321 = vpop.f32.mrf.mxu0
          %v1322 = vadd.f32 %v1237, %v1321
          %v1323 = vpop.f32.mrf.mxu0
          %v1324 = vadd.f32 %v1237, %v1323
          %1325 = vmatmul.bf16.gmra.mxu0 %v1217
          %v1326 = vpop.f32.mrf.mxu0
          %v1327 = vadd.f32 %v1237, %v1326
          %v1328 = vpop.f32.mrf.mxu0
          %v1329 = vadd.f32 %v1237, %v1328
          %1330 = vmatmul.bf16.gmra.mxu0 %v1218
          %v1331 = vpop.f32.mrf.mxu0
          %v1332 = vadd.f32 %v1237, %v1331
          %v1333 = vpop.f32.mrf.mxu0
          %v1334 = vadd.f32 %v1237, %v1333
          %1335 = vdwg.mxu0
          %v1336 = vmax.f32 %v1297, 0.0
          %v1337 = vmax.f32 %v1299, 0.0
          %v1338 = vmax.f32 %v1302, 0.0
          %v1339 = vmax.f32 %v1304, 0.0
          %v1340 = vmax.f32 %v1307, 0.0
          %v1341 = vmax.f32 %v1309, 0.0
          %v1342 = vmax.f32 %v1312, 0.0
          %v1343 = vmax.f32 %v1314, 0.0
          %v1344 = vmax.f32 %v1317, 0.0
          %v1345 = vmax.f32 %v1319, 0.0
          %v1346 = vmax.f32 %v1322, 0.0
          %v1347 = vmax.f32 %v1324, 0.0
          %v1348 = vmax.f32 %v1327, 0.0
          %v1349 = vmax.f32 %v1329, 0.0
          %v1350 = vmax.f32 %v1332, 0.0
          %v1351 = vmax.f32 %v1334, 0.0
          %v1352 = vpack.c.bf16 %v1336, %v1336
          %v1353 = vpack.c.bf16 %v1337, %v1337
          %v1354 = vpack.c.bf16 %v1338, %v1338
          %v1355 = vpack.c.bf16 %v1339, %v1339
          %v1356 = vpack.c.bf16 %v1340, %v1340
          %v1357 = vpack.c.bf16 %v1341, %v1341
          %v1358 = vpack.c.bf16 %v1342, %v1342
          %v1359 = vpack.c.bf16 %v1343, %v1343
          %v1360 = vpack.c.bf16 %v1344, %v1344
          %v1361 = vpack.c.bf16 %v1345, %v1345
          %v1362 = vpack.c.bf16 %v1346, %v1346
          %v1363 = vpack.c.bf16 %v1347, %v1347
          %v1364 = vpack.c.bf16 %v1348, %v1348
          %v1365 = vpack.c.bf16 %v1349, %v1349
          %v1366 = vpack.c.bf16 %v1350, %v1350
          %v1367 = vpack.c.bf16 %v1351, %v1351
          %1368 = vst [vmem:[#allocation3] sm:$0xf] %v1352
          %1369 = vst [vmem:[#allocation3 + $0x4] sm:$0xf] %v1353
          %1370 = vst [vmem:[#allocation3 + $0x8] sm:$0xf] %v1354
          %1371 = vst [vmem:[#allocation3 + $0xc] sm:$0xf] %v1355
          %1372 = vst [vmem:[#allocation3 + $0x10] sm:$0xf] %v1356
          %1373 = vst [vmem:[#allocation3 + $0x14] sm:$0xf] %v1357
          %1374 = vst [vmem:[#allocation3 + $0x18] sm:$0xf] %v1358
          %1375 = vst [vmem:[#allocation3 + $0x1c] sm:$0xf] %v1359
          %1376 = vst [vmem:[#allocation3 + $0x20] sm:$0xf] %v1360
          %1377 = vst [vmem:[#allocation3 + $0x24] sm:$0xf] %v1361
          %1378 = vst [vmem:[#allocation3 + $0x28] sm:$0xf] %v1362
          %1379 = vst [vmem:[#allocation3 + $0x2c] sm:$0xf] %v1363
          %1380 = vst [vmem:[#allocation3 + $0x30] sm:$0xf] %v1364
          %1381 = vst [vmem:[#allocation3 + $0x34] sm:$0xf] %v1365
          %1382 = vst [vmem:[#allocation3 + $0x38] sm:$0xf] %v1366
          %1383 = vst [vmem:[#allocation3 + $0x3c] sm:$0xf] %v1367
        $region88: #{tpu_custom_call.1} parent=59 // pred_fallthru
          _
        %v1384 = vld [vmem:[#allocation3] sm:$0xf]
        %v1385 = vld [vmem:[#allocation3 + $0x4] sm:$0xf]
        %v1386 = vld [vmem:[#allocation3 + $0x8] sm:$0xf]
        %v1387 = vld [vmem:[#allocation3 + $0xc] sm:$0xf]
        %v1388 = vld [vmem:[#allocation3 + $0x10] sm:$0xf]
        %v1389 = vld [vmem:[#allocation3 + $0x14] sm:$0xf]
        %v1390 = vld [vmem:[#allocation3 + $0x18] sm:$0xf]
        %v1391 = vld [vmem:[#allocation3 + $0x1c] sm:$0xf]
        %v1392 = vld [vmem:[#allocation3 + $0x20] sm:$0xf]
        %v1393 = vld [vmem:[#allocation3 + $0x24] sm:$0xf]
        %v1394 = vld [vmem:[#allocation3 + $0x28] sm:$0xf]
        %v1395 = vld [vmem:[#allocation3 + $0x2c] sm:$0xf]
        %v1396 = vld [vmem:[#allocation3 + $0x30] sm:$0xf]
        %v1397 = vld [vmem:[#allocation3 + $0x34] sm:$0xf]
        %v1398 = vld [vmem:[#allocation3 + $0x38] sm:$0xf]
        %v1399 = vld [vmem:[#allocation3 + $0x3c] sm:$0xf]
        %v1400 = vld [vmem:[#allocation14] sm:$0xff]
        %v1401 = vld [vmem:[#allocation14 + $0x8] sm:$0xff]
        %v1402 = vld [vmem:[#allocation14 + $0x10] sm:$0xff]
        %v1403 = vld [vmem:[#allocation14 + $0x18] sm:$0xff]
        %v1404 = vld [vmem:[#allocation14 + $0x20] sm:$0xff]
        %v1405 = vld [vmem:[#allocation14 + $0x28] sm:$0xff]
        %v1406 = vld [vmem:[#allocation14 + $0x30] sm:$0xff]
        %v1407 = vld [vmem:[#allocation14 + $0x38] sm:$0xff]
        %v1408 = vld [vmem:[#allocation14 + $0x40] sm:$0xff]
        %v1409 = vld [vmem:[#allocation14 + $0x48] sm:$0xff]
        %v1410 = vld [vmem:[#allocation14 + $0x50] sm:$0xff]
        %v1411 = vld [vmem:[#allocation14 + $0x58] sm:$0xff]
        %v1412 = vld [vmem:[#allocation14 + $0x60] sm:$0xff]
        %v1413 = vld [vmem:[#allocation14 + $0x68] sm:$0xff]
        %v1414 = vld [vmem:[#allocation14 + $0x70] sm:$0xff]
        %v1415 = vld [vmem:[#allocation14 + $0x78] sm:$0xff]
        %v1416 = vld [vmem:[%s568] sm:$0x3]
        %v1418 = vperm.slane %v1416, 0
        %v1419 = vperm.slane %v1416, 1
        %v1438 = vunpack.c.l.b16 %v1384
        %v1439 = vunpack.c.l.b16 %v1385
        %v1440 = vunpack.c.l.b16 %v1386
        %v1441 = vunpack.c.l.b16 %v1387
        %v1442 = vunpack.c.l.b16 %v1388
        %v1443 = vunpack.c.l.b16 %v1389
        %v1444 = vunpack.c.l.b16 %v1390
        %v1445 = vunpack.c.l.b16 %v1391
        %v1446 = vunpack.c.l.b16 %v1392
        %v1447 = vunpack.c.l.b16 %v1393
        %v1448 = vunpack.c.l.b16 %v1394
        %v1449 = vunpack.c.l.b16 %v1395
        %v1450 = vunpack.c.l.b16 %v1396
        %v1451 = vunpack.c.l.b16 %v1397
        %v1452 = vunpack.c.l.b16 %v1398
        %v1453 = vunpack.c.l.b16 %v1399
        %v1454 = vpack.c.b16 %v1439, %v1438
        %v1455 = vpack.c.b16 %v1441, %v1440
        %v1456 = vpack.c.b16 %v1443, %v1442
        %v1457 = vpack.c.b16 %v1445, %v1444
        %v1458 = vpack.c.b16 %v1447, %v1446
        %v1459 = vpack.c.b16 %v1449, %v1448
        %v1460 = vpack.c.b16 %v1451, %v1450
        %v1461 = vpack.c.b16 %v1453, %v1452
        %v1486 = vunpack.c.l.b16 %v1400
        %v1487 = vunpack.c.h.b16 %v1400
        %v1488 = vunpack.c.l.b16 %v1401
        %v1489 = vunpack.c.h.b16 %v1401
        %v1490 = vunpack.c.l.b16 %v1402
        %v1491 = vunpack.c.h.b16 %v1402
        %v1492 = vunpack.c.l.b16 %v1403
        %v1493 = vunpack.c.h.b16 %v1403
        %v1494 = vunpack.c.l.b16 %v1404
        %v1495 = vunpack.c.h.b16 %v1404
        %v1496 = vunpack.c.l.b16 %v1405
        %v1497 = vunpack.c.h.b16 %v1405
        %v1498 = vunpack.c.l.b16 %v1406
        %v1499 = vunpack.c.h.b16 %v1406
        %v1500 = vunpack.c.l.b16 %v1407
        %v1501 = vunpack.c.h.b16 %v1407
        %v1502 = vunpack.c.l.b16 %v1408
        %v1503 = vunpack.c.h.b16 %v1408
        %v1504 = vunpack.c.l.b16 %v1409
        %v1505 = vunpack.c.h.b16 %v1409
        %v1506 = vunpack.c.l.b16 %v1410
        %v1507 = vunpack.c.h.b16 %v1410
        %v1508 = vunpack.c.l.b16 %v1411
        %v1509 = vunpack.c.h.b16 %v1411
        %v1510 = vunpack.c.l.b16 %v1412
        %v1511 = vunpack.c.h.b16 %v1412
        %v1512 = vunpack.c.l.b16 %v1413
        %v1513 = vunpack.c.h.b16 %v1413
        %v1514 = vunpack.c.l.b16 %v1414
        %v1515 = vunpack.c.h.b16 %v1414
        %v1516 = vunpack.c.l.b16 %v1415
        %v1517 = vunpack.c.h.b16 %v1415
        %v1518 = vpack.c.b16 %v1488, %v1486
        %v1519 = vpack.c.b16 %v1489, %v1487
        %v1520 = vpack.c.b16 %v1492, %v1490
        %v1521 = vpack.c.b16 %v1493, %v1491
        %v1522 = vpack.c.b16 %v1496, %v1494
        %v1523 = vpack.c.b16 %v1497, %v1495
        %v1524 = vpack.c.b16 %v1500, %v1498
        %v1525 = vpack.c.b16 %v1501, %v1499
        %v1526 = vpack.c.b16 %v1504, %v1502
        %v1527 = vpack.c.b16 %v1505, %v1503
        %v1528 = vpack.c.b16 %v1508, %v1506
        %v1529 = vpack.c.b16 %v1509, %v1507
        %v1530 = vpack.c.b16 %v1512, %v1510
        %v1531 = vpack.c.b16 %v1513, %v1511
        %v1532 = vpack.c.b16 %v1516, %v1514
        %v1533 = vpack.c.b16 %v1517, %v1515
        %1550 = vmatpush.bf16.msra.mxu0 %v1532
        %1551 = vmatpush.bf16.msra.mxu0 %v1530
        %1552 = vmatpush.bf16.msra.mxu0 %v1528
        %1553 = vmatpush.bf16.msra.mxu0 %v1526
        %1554 = vmatpush.bf16.msra.mxu0 %v1524
        %1555 = vmatpush.bf16.msra.mxu0 %v1522
        %1556 = vmatpush.bf16.msra.mxu0 %v1520
        %1557 = vmatpush.bf16.msra.mxu0 %v1518
        %1558 = vmatmul.bf16.gmra.mxu0 %v1454
        %v1559 = vpop.f32.mrf.mxu0
        %v1560 = vadd.f32 %v1418, %v1559
        %v1561 = vpop.f32.mrf.mxu0
        %v1562 = vadd.f32 %v1418, %v1561
        %1563 = vmatmul.bf16.gmra.mxu0 %v1455
        %v1564 = vpop.f32.mrf.mxu0
        %v1565 = vadd.f32 %v1418, %v1564
        %v1566 = vpop.f32.mrf.mxu0
        %v1567 = vadd.f32 %v1418, %v1566
        %1568 = vmatmul.bf16.gmra.mxu0 %v1456
        %v1569 = vpop.f32.mrf.mxu0
        %v1570 = vadd.f32 %v1418, %v1569
        %v1571 = vpop.f32.mrf.mxu0
        %v1572 = vadd.f32 %v1418, %v1571
        %1573 = vmatmul.bf16.gmra.mxu0 %v1457
        %v1574 = vpop.f32.mrf.mxu0
        %v1575 = vadd.f32 %v1418, %v1574
        %v1576 = vpop.f32.mrf.mxu0
        %v1577 = vadd.f32 %v1418, %v1576
        %1578 = vmatmul.bf16.gmra.mxu0 %v1458
        %v1579 = vpop.f32.mrf.mxu0
        %v1580 = vadd.f32 %v1418, %v1579
        %v1581 = vpop.f32.mrf.mxu0
        %v1582 = vadd.f32 %v1418, %v1581
        %1583 = vmatmul.bf16.gmra.mxu0 %v1459
        %v1584 = vpop.f32.mrf.mxu0
        %v1585 = vadd.f32 %v1418, %v1584
        %v1586 = vpop.f32.mrf.mxu0
        %v1587 = vadd.f32 %v1418, %v1586
        %1588 = vmatmul.bf16.gmra.mxu0 %v1460
        %v1589 = vpop.f32.mrf.mxu0
        %v1590 = vadd.f32 %v1418, %v1589
        %v1591 = vpop.f32.mrf.mxu0
        %v1592 = vadd.f32 %v1418, %v1591
        %1593 = vmatmul.bf16.gmra.mxu0 %v1461
        %v1594 = vpop.f32.mrf.mxu0
        %v1595 = vadd.f32 %v1418, %v1594
        %v1596 = vpop.f32.mrf.mxu0
        %v1597 = vadd.f32 %v1418, %v1596
        %1598 = vdwg.mxu0
        %1599 = vmatpush.bf16.msra.mxu0 %v1533
        %1600 = vmatpush.bf16.msra.mxu0 %v1531
        %1601 = vmatpush.bf16.msra.mxu0 %v1529
        %1602 = vmatpush.bf16.msra.mxu0 %v1527
        %1603 = vmatpush.bf16.msra.mxu0 %v1525
        %1604 = vmatpush.bf16.msra.mxu0 %v1523
        %1605 = vmatpush.bf16.msra.mxu0 %v1521
        %1606 = vmatpush.bf16.msra.mxu0 %v1519
        %1607 = vmatmul.bf16.gmra.mxu0 %v1454
        %v1608 = vpop.f32.mrf.mxu0
        %v1609 = vadd.f32 %v1419, %v1608
        %v1610 = vpop.f32.mrf.mxu0
        %v1611 = vadd.f32 %v1419, %v1610
        %1612 = vmatmul.bf16.gmra.mxu0 %v1455
        %v1613 = vpop.f32.mrf.mxu0
        %v1614 = vadd.f32 %v1419, %v1613
        %v1615 = vpop.f32.mrf.mxu0
        %v1616 = vadd.f32 %v1419, %v1615
        %1617 = vmatmul.bf16.gmra.mxu0 %v1456
        %v1618 = vpop.f32.mrf.mxu0
        %v1619 = vadd.f32 %v1419, %v1618
        %v1620 = vpop.f32.mrf.mxu0
        %v1621 = vadd.f32 %v1419, %v1620
        %1622 = vmatmul.bf16.gmra.mxu0 %v1457
        %v1623 = vpop.f32.mrf.mxu0
        %v1624 = vadd.f32 %v1419, %v1623
        %v1625 = vpop.f32.mrf.mxu0
        %v1626 = vadd.f32 %v1419, %v1625
        %1627 = vmatmul.bf16.gmra.mxu0 %v1458
        %v1628 = vpop.f32.mrf.mxu0
        %v1629 = vadd.f32 %v1419, %v1628
        %v1630 = vpop.f32.mrf.mxu0
        %v1631 = vadd.f32 %v1419, %v1630
        %1632 = vmatmul.bf16.gmra.mxu0 %v1459
        %v1633 = vpop.f32.mrf.mxu0
        %v1634 = vadd.f32 %v1419, %v1633
        %v1635 = vpop.f32.mrf.mxu0
        %v1636 = vadd.f32 %v1419, %v1635
        %1637 = vmatmul.bf16.gmra.mxu0 %v1460
        %v1638 = vpop.f32.mrf.mxu0
        %v1639 = vadd.f32 %v1419, %v1638
        %v1640 = vpop.f32.mrf.mxu0
        %v1641 = vadd.f32 %v1419, %v1640
        %1642 = vmatmul.bf16.gmra.mxu0 %v1461
        %v1643 = vpop.f32.mrf.mxu0
        %v1644 = vadd.f32 %v1419, %v1643
        %v1645 = vpop.f32.mrf.mxu0
        %v1646 = vadd.f32 %v1419, %v1645
        %1647 = vdwg.mxu0
        %v1648 = vlaneseq
        %v1649 = vand.u32 %v1648, 127
        %v1650 = vadd.s32 %v1649, 128
        %s1651 = smul.u32 %s42, 256
        %v1652 = vstv %s1651
        %v1653 = vadd.s32 %v1649, %v1652
        %v1654 = vadd.s32 %v1650, %v1652
        %v1655 = vmul.f32 %v1560, 1.442695
        %v1656 = vpow.pop %v1655
        %v1657 = vmul.f32 %v1609, 1.442695
        %v1658 = vpow.pop %v1657
        %v1659 = vmul.f32 %v1562, 1.442695
        %v1660 = vpow.pop %v1659
        %v1661 = vmul.f32 %v1611, 1.442695
        %v1662 = vpow.pop %v1661
        %v1663 = vmul.f32 %v1565, 1.442695
        %v1664 = vpow.pop %v1663
        %v1665 = vmul.f32 %v1614, 1.442695
        %v1666 = vpow.pop %v1665
        %v1667 = vmul.f32 %v1567, 1.442695
        %v1668 = vpow.pop %v1667
        %v1669 = vmul.f32 %v1616, 1.442695
        %v1670 = vpow.pop %v1669
        %v1671 = vmul.f32 %v1570, 1.442695
        %v1672 = vpow.pop %v1671
        %v1673 = vmul.f32 %v1619, 1.442695
        %v1674 = vpow.pop %v1673
        %v1675 = vmul.f32 %v1572, 1.442695
        %v1676 = vpow.pop %v1675
        %v1677 = vmul.f32 %v1621, 1.442695
        %v1678 = vpow.pop %v1677
        %v1679 = vmul.f32 %v1575, 1.442695
        %v1680 = vpow.pop %v1679
        %v1681 = vmul.f32 %v1624, 1.442695
        %v1682 = vpow.pop %v1681
        %v1683 = vmul.f32 %v1577, 1.442695
        %v1684 = vpow.pop %v1683
        %v1685 = vmul.f32 %v1626, 1.442695
        %v1686 = vpow.pop %v1685
        %v1687 = vmul.f32 %v1580, 1.442695
        %v1688 = vpow.pop %v1687
        %v1689 = vmul.f32 %v1629, 1.442695
        %v1690 = vpow.pop %v1689
        %v1691 = vmul.f32 %v1582, 1.442695
        %v1692 = vpow.pop %v1691
        %v1693 = vmul.f32 %v1631, 1.442695
        %v1694 = vpow.pop %v1693
        %v1695 = vmul.f32 %v1585, 1.442695
        %v1696 = vpow.pop %v1695
        %v1697 = vmul.f32 %v1634, 1.442695
        %v1698 = vpow.pop %v1697
        %v1699 = vmul.f32 %v1587, 1.442695
        %v1700 = vpow.pop %v1699
        %v1701 = vmul.f32 %v1636, 1.442695
        %v1702 = vpow.pop %v1701
        %v1703 = vmul.f32 %v1590, 1.442695
        %v1704 = vpow.pop %v1703
        %v1705 = vmul.f32 %v1639, 1.442695
        %v1706 = vpow.pop %v1705
        %v1707 = vmul.f32 %v1592, 1.442695
        %v1708 = vpow.pop %v1707
        %v1709 = vmul.f32 %v1641, 1.442695
        %v1710 = vpow.pop %v1709
        %v1711 = vmul.f32 %v1595, 1.442695
        %v1712 = vpow.pop %v1711
        %v1713 = vmul.f32 %v1644, 1.442695
        %v1714 = vpow.pop %v1713
        %v1715 = vmul.f32 %v1597, 1.442695
        %v1716 = vpow.pop %v1715
        %v1717 = vmul.f32 %v1646, 1.442695
        %v1718 = vpow.pop %v1717
        %v1719 = vmax.f32 %v1656, 1e-05
        %v1720 = vmax.f32 %v1658, 1e-05
        %v1721 = vmax.f32 %v1660, 1e-05
        %v1722 = vmax.f32 %v1662, 1e-05
        %v1723 = vmax.f32 %v1664, 1e-05
        %v1724 = vmax.f32 %v1666, 1e-05
        %v1725 = vmax.f32 %v1668, 1e-05
        %v1726 = vmax.f32 %v1670, 1e-05
        %v1727 = vmax.f32 %v1672, 1e-05
        %v1728 = vmax.f32 %v1674, 1e-05
        %v1729 = vmax.f32 %v1676, 1e-05
        %v1730 = vmax.f32 %v1678, 1e-05
        %v1731 = vmax.f32 %v1680, 1e-05
        %v1732 = vmax.f32 %v1682, 1e-05
        %v1733 = vmax.f32 %v1684, 1e-05
        %v1734 = vmax.f32 %v1686, 1e-05
        %v1735 = vmax.f32 %v1688, 1e-05
        %v1736 = vmax.f32 %v1690, 1e-05
        %v1737 = vmax.f32 %v1692, 1e-05
        %v1738 = vmax.f32 %v1694, 1e-05
        %v1739 = vmax.f32 %v1696, 1e-05
        %v1740 = vmax.f32 %v1698, 1e-05
        %v1741 = vmax.f32 %v1700, 1e-05
        %v1742 = vmax.f32 %v1702, 1e-05
        %v1743 = vmax.f32 %v1704, 1e-05
        %v1744 = vmax.f32 %v1706, 1e-05
        %v1745 = vmax.f32 %v1708, 1e-05
        %v1746 = vmax.f32 %v1710, 1e-05
        %v1747 = vmax.f32 %v1712, 1e-05
        %v1748 = vmax.f32 %v1714, 1e-05
        %v1749 = vmax.f32 %v1716, 1e-05
        %v1750 = vmax.f32 %v1718, 1e-05
        %v1751 = vmin.f32 %v1719, 1000000.0
        %v1752 = vmin.f32 %v1720, 1000000.0
        %v1753 = vmin.f32 %v1721, 1000000.0
        %v1754 = vmin.f32 %v1722, 1000000.0
        %v1755 = vmin.f32 %v1723, 1000000.0
        %v1756 = vmin.f32 %v1724, 1000000.0
        %v1757 = vmin.f32 %v1725, 1000000.0
        %v1758 = vmin.f32 %v1726, 1000000.0
        %v1759 = vmin.f32 %v1727, 1000000.0
        %v1760 = vmin.f32 %v1728, 1000000.0
        %v1761 = vmin.f32 %v1729, 1000000.0
        %v1762 = vmin.f32 %v1730, 1000000.0
        %v1763 = vmin.f32 %v1731, 1000000.0
        %v1764 = vmin.f32 %v1732, 1000000.0
        %v1765 = vmin.f32 %v1733, 1000000.0
        %v1766 = vmin.f32 %v1734, 1000000.0
        %v1767 = vmin.f32 %v1735, 1000000.0
        %v1768 = vmin.f32 %v1736, 1000000.0
        %v1769 = vmin.f32 %v1737, 1000000.0
        %v1770 = vmin.f32 %v1738, 1000000.0
        %v1771 = vmin.f32 %v1739, 1000000.0
        %v1772 = vmin.f32 %v1740, 1000000.0
        %v1773 = vmin.f32 %v1741, 1000000.0
        %v1774 = vmin.f32 %v1742, 1000000.0
        %v1775 = vmin.f32 %v1743, 1000000.0
        %v1776 = vmin.f32 %v1744, 1000000.0
        %v1777 = vmin.f32 %v1745, 1000000.0
        %v1778 = vmin.f32 %v1746, 1000000.0
        %v1779 = vmin.f32 %v1747, 1000000.0
        %v1780 = vmin.f32 %v1748, 1000000.0
        %v1781 = vmin.f32 %v1749, 1000000.0
        %v1782 = vmin.f32 %v1750, 1000000.0
        %v1783 = vmax.f32 %v1560, 0.0
        %v1784 = vmax.f32 %v1609, 0.0
        %v1785 = vmax.f32 %v1562, 0.0
        %v1786 = vmax.f32 %v1611, 0.0
        %v1787 = vmax.f32 %v1565, 0.0
        %v1788 = vmax.f32 %v1614, 0.0
        %v1789 = vmax.f32 %v1567, 0.0
        %v1790 = vmax.f32 %v1616, 0.0
        %v1791 = vmax.f32 %v1570, 0.0
        %v1792 = vmax.f32 %v1619, 0.0
        %v1793 = vmax.f32 %v1572, 0.0
        %v1794 = vmax.f32 %v1621, 0.0
        %v1795 = vmax.f32 %v1575, 0.0
        %v1796 = vmax.f32 %v1624, 0.0
        %v1797 = vmax.f32 %v1577, 0.0
        %v1798 = vmax.f32 %v1626, 0.0
        %v1799 = vmax.f32 %v1580, 0.0
        %v1800 = vmax.f32 %v1629, 0.0
        %v1801 = vmax.f32 %v1582, 0.0
        %v1802 = vmax.f32 %v1631, 0.0
        %v1803 = vmax.f32 %v1585, 0.0
        %v1804 = vmax.f32 %v1634, 0.0
        %v1805 = vmax.f32 %v1587, 0.0
        %v1806 = vmax.f32 %v1636, 0.0
        %v1807 = vmax.f32 %v1590, 0.0
        %v1808 = vmax.f32 %v1639, 0.0
        %v1809 = vmax.f32 %v1592, 0.0
        %v1810 = vmax.f32 %v1641, 0.0
        %v1811 = vmax.f32 %v1595, 0.0
        %v1812 = vmax.f32 %v1644, 0.0
        %v1813 = vmax.f32 %v1597, 0.0
        %v1814 = vmax.f32 %v1646, 0.0
        %v1815 = vand.u32 2147483647, %v1560
        %v1816 = vand.u32 2147483647, %v1609
        %v1817 = vand.u32 2147483647, %v1562
        %v1818 = vand.u32 2147483647, %v1611
        %v1819 = vand.u32 2147483647, %v1565
        %v1820 = vand.u32 2147483647, %v1614
        %v1821 = vand.u32 2147483647, %v1567
        %v1822 = vand.u32 2147483647, %v1616
        %v1823 = vand.u32 2147483647, %v1570
        %v1824 = vand.u32 2147483647, %v1619
        %v1825 = vand.u32 2147483647, %v1572
        %v1826 = vand.u32 2147483647, %v1621
        %v1827 = vand.u32 2147483647, %v1575
        %v1828 = vand.u32 2147483647, %v1624
        %v1829 = vand.u32 2147483647, %v1577
        %v1830 = vand.u32 2147483647, %v1626
        %v1831 = vand.u32 2147483647, %v1580
        %v1832 = vand.u32 2147483647, %v1629
        %v1833 = vand.u32 2147483647, %v1582
        %v1834 = vand.u32 2147483647, %v1631
        %v1835 = vand.u32 2147483647, %v1585
        %v1836 = vand.u32 2147483647, %v1634
        %v1837 = vand.u32 2147483647, %v1587
        %v1838 = vand.u32 2147483647, %v1636
        %v1839 = vand.u32 2147483647, %v1590
        %v1840 = vand.u32 2147483647, %v1639
        %v1841 = vand.u32 2147483647, %v1592
        %v1842 = vand.u32 2147483647, %v1641
        %v1843 = vand.u32 2147483647, %v1595
        %v1844 = vand.u32 2147483647, %v1644
        %v1845 = vand.u32 2147483647, %v1597
        %v1846 = vand.u32 2147483647, %v1646
        %v1847 = vsub.f32 0.0, %v1815
        %v1848 = vsub.f32 0.0, %v1816
        %v1849 = vsub.f32 0.0, %v1817
        %v1850 = vsub.f32 0.0, %v1818
        %v1851 = vsub.f32 0.0, %v1819
        %v1852 = vsub.f32 0.0, %v1820
        %v1853 = vsub.f32 0.0, %v1821
        %v1854 = vsub.f32 0.0, %v1822
        %v1855 = vsub.f32 0.0, %v1823
        %v1856 = vsub.f32 0.0, %v1824
        %v1857 = vsub.f32 0.0, %v1825
        %v1858 = vsub.f32 0.0, %v1826
        %v1859 = vsub.f32 0.0, %v1827
        %v1860 = vsub.f32 0.0, %v1828
        %v1861 = vsub.f32 0.0, %v1829
        %v1862 = vsub.f32 0.0, %v1830
        %v1863 = vsub.f32 0.0, %v1831
        %v1864 = vsub.f32 0.0, %v1832
        %v1865 = vsub.f32 0.0, %v1833
        %v1866 = vsub.f32 0.0, %v1834
        %v1867 = vsub.f32 0.0, %v1835
        %v1868 = vsub.f32 0.0, %v1836
        %v1869 = vsub.f32 0.0, %v1837
        %v1870 = vsub.f32 0.0, %v1838
        %v1871 = vsub.f32 0.0, %v1839
        %v1872 = vsub.f32 0.0, %v1840
        %v1873 = vsub.f32 0.0, %v1841
        %v1874 = vsub.f32 0.0, %v1842
        %v1875 = vsub.f32 0.0, %v1843
        %v1876 = vsub.f32 0.0, %v1844
        %v1877 = vsub.f32 0.0, %v1845
        %v1878 = vsub.f32 0.0, %v1846
        %v1879 = vmul.f32 %v1847, 1.442695
        %v1880 = vpow.pop %v1879
        %v1881 = vmul.f32 %v1848, 1.442695
        %v1882 = vpow.pop %v1881
        %v1883 = vmul.f32 %v1849, 1.442695
        %v1884 = vpow.pop %v1883
        %v1885 = vmul.f32 %v1850, 1.442695
        %v1886 = vpow.pop %v1885
        %v1887 = vmul.f32 %v1851, 1.442695
        %v1888 = vpow.pop %v1887
        %v1889 = vmul.f32 %v1852, 1.442695
        %v1890 = vpow.pop %v1889
        %v1891 = vmul.f32 %v1853, 1.442695
        %v1892 = vpow.pop %v1891
        %v1893 = vmul.f32 %v1854, 1.442695
        %v1894 = vpow.pop %v1893
        %v1895 = vmul.f32 %v1855, 1.442695
        %v1896 = vpow.pop %v1895
        %v1897 = vmul.f32 %v1856, 1.442695
        %v1898 = vpow.pop %v1897
        %v1899 = vmul.f32 %v1857, 1.442695
        %v1900 = vpow.pop %v1899
        %v1901 = vmul.f32 %v1858, 1.442695
        %v1902 = vpow.pop %v1901
        %v1903 = vmul.f32 %v1859, 1.442695
        %v1904 = vpow.pop %v1903
        %v1905 = vmul.f32 %v1860, 1.442695
        %v1906 = vpow.pop %v1905
        %v1907 = vmul.f32 %v1861, 1.442695
        %v1908 = vpow.pop %v1907
        %v1909 = vmul.f32 %v1862, 1.442695
        %v1910 = vpow.pop %v1909
        %v1911 = vmul.f32 %v1863, 1.442695
        %v1912 = vpow.pop %v1911
        %v1913 = vmul.f32 %v1864, 1.442695
        %v1914 = vpow.pop %v1913
        %v1915 = vmul.f32 %v1865, 1.442695
        %v1916 = vpow.pop %v1915
        %v1917 = vmul.f32 %v1866, 1.442695
        %v1918 = vpow.pop %v1917
        %v1919 = vmul.f32 %v1867, 1.442695
        %v1920 = vpow.pop %v1919
        %v1921 = vmul.f32 %v1868, 1.442695
        %v1922 = vpow.pop %v1921
        %v1923 = vmul.f32 %v1869, 1.442695
        %v1924 = vpow.pop %v1923
        %v1925 = vmul.f32 %v1870, 1.442695
        %v1926 = vpow.pop %v1925
        %v1927 = vmul.f32 %v1871, 1.442695
        %v1928 = vpow.pop %v1927
        %v1929 = vmul.f32 %v1872, 1.442695
        %v1930 = vpow.pop %v1929
        %v1931 = vmul.f32 %v1873, 1.442695
        %v1932 = vpow.pop %v1931
        %v1933 = vmul.f32 %v1874, 1.442695
        %v1934 = vpow.pop %v1933
        %v1935 = vmul.f32 %v1875, 1.442695
        %v1936 = vpow.pop %v1935
        %v1937 = vmul.f32 %v1876, 1.442695
        %v1938 = vpow.pop %v1937
        %v1939 = vmul.f32 %v1877, 1.442695
        %v1940 = vpow.pop %v1939
        %v1941 = vmul.f32 %v1878, 1.442695
        %v1942 = vpow.pop %v1941
        %v1943 = vadd.f32 %v1880, 1.0
        %v1944 = vlog2.pop %v1943
        %v1945 = vmul.f32 %v1944, 0.6931472
        %v1946 = vmul.f32 -0.5, %v1880
        %v1947 = vadd.f32 %v1946, 1.0
        %v1948 = vmul.f32 %v1947, %v1880
        %v1949 = vand.u32 2147483647, %v1880
        %vm1950 = vcmp.lt.f32.partialorder %v1949, 0.0004427343
        %v1951 = vsel %vm1950, %v1948, %v1945
        %v1952 = vadd.f32 %v1882, 1.0
        %v1953 = vlog2.pop %v1952
        %v1954 = vmul.f32 %v1953, 0.6931472
        %v1955 = vmul.f32 -0.5, %v1882
        %v1956 = vadd.f32 %v1955, 1.0
        %v1957 = vmul.f32 %v1956, %v1882
        %v1958 = vand.u32 2147483647, %v1882
        %vm1959 = vcmp.lt.f32.partialorder %v1958, 0.0004427343
        %v1960 = vsel %vm1959, %v1957, %v1954
        %v1961 = vadd.f32 %v1884, 1.0
        %v1962 = vlog2.pop %v1961
        %v1963 = vmul.f32 %v1962, 0.6931472
        %v1964 = vmul.f32 -0.5, %v1884
        %v1965 = vadd.f32 %v1964, 1.0
        %v1966 = vmul.f32 %v1965, %v1884
        %v1967 = vand.u32 2147483647, %v1884
        %vm1968 = vcmp.lt.f32.partialorder %v1967, 0.0004427343
        %v1969 = vsel %vm1968, %v1966, %v1963
        %v1970 = vadd.f32 %v1886, 1.0
        %v1971 = vlog2.pop %v1970
        %v1972 = vmul.f32 %v1971, 0.6931472
        %v1973 = vmul.f32 -0.5, %v1886
        %v1974 = vadd.f32 %v1973, 1.0
        %v1975 = vmul.f32 %v1974, %v1886
        %v1976 = vand.u32 2147483647, %v1886
        %vm1977 = vcmp.lt.f32.partialorder %v1976, 0.0004427343
        %v1978 = vsel %vm1977, %v1975, %v1972
        %v1979 = vadd.f32 %v1888, 1.0
        %v1980 = vlog2.pop %v1979
        %v1981 = vmul.f32 %v1980, 0.6931472
        %v1982 = vmul.f32 -0.5, %v1888
        %v1983 = vadd.f32 %v1982, 1.0
        %v1984 = vmul.f32 %v1983, %v1888
        %v1985 = vand.u32 2147483647, %v1888
        %vm1986 = vcmp.lt.f32.partialorder %v1985, 0.0004427343
        %v1987 = vsel %vm1986, %v1984, %v1981
        %v1988 = vadd.f32 %v1890, 1.0
        %v1989 = vlog2.pop %v1988
        %v1990 = vmul.f32 %v1989, 0.6931472
        %v1991 = vmul.f32 -0.5, %v1890
        %v1992 = vadd.f32 %v1991, 1.0
        %v1993 = vmul.f32 %v1992, %v1890
        %v1994 = vand.u32 2147483647, %v1890
        %vm1995 = vcmp.lt.f32.partialorder %v1994, 0.0004427343
        %v1996 = vsel %vm1995, %v1993, %v1990
        %v1997 = vadd.f32 %v1892, 1.0
        %v1998 = vlog2.pop %v1997
        %v1999 = vmul.f32 %v1998, 0.6931472
        %v2000 = vmul.f32 -0.5, %v1892
        %v2001 = vadd.f32 %v2000, 1.0
        %v2002 = vmul.f32 %v2001, %v1892
        %v2003 = vand.u32 2147483647, %v1892
        %vm2004 = vcmp.lt.f32.partialorder %v2003, 0.0004427343
        %v2005 = vsel %vm2004, %v2002, %v1999
        %v2006 = vadd.f32 %v1894, 1.0
        %v2007 = vlog2.pop %v2006
        %v2008 = vmul.f32 %v2007, 0.6931472
        %v2009 = vmul.f32 -0.5, %v1894
        %v2010 = vadd.f32 %v2009, 1.0
        %v2011 = vmul.f32 %v2010, %v1894
        %v2012 = vand.u32 2147483647, %v1894
        %vm2013 = vcmp.lt.f32.partialorder %v2012, 0.0004427343
        %v2014 = vsel %vm2013, %v2011, %v2008
        %v2015 = vadd.f32 %v1896, 1.0
        %v2016 = vlog2.pop %v2015
        %v2017 = vmul.f32 %v2016, 0.6931472
        %v2018 = vmul.f32 -0.5, %v1896
        %v2019 = vadd.f32 %v2018, 1.0
        %v2020 = vmul.f32 %v2019, %v1896
        %v2021 = vand.u32 2147483647, %v1896
        %vm2022 = vcmp.lt.f32.partialorder %v2021, 0.0004427343
        %v2023 = vsel %vm2022, %v2020, %v2017
        %v2024 = vadd.f32 %v1898, 1.0
        %v2025 = vlog2.pop %v2024
        %v2026 = vmul.f32 %v2025, 0.6931472
        %v2027 = vmul.f32 -0.5, %v1898
        %v2028 = vadd.f32 %v2027, 1.0
        %v2029 = vmul.f32 %v2028, %v1898
        %v2030 = vand.u32 2147483647, %v1898
        %vm2031 = vcmp.lt.f32.partialorder %v2030, 0.0004427343
        %v2032 = vsel %vm2031, %v2029, %v2026
        %v2033 = vadd.f32 %v1900, 1.0
        %v2034 = vlog2.pop %v2033
        %v2035 = vmul.f32 %v2034, 0.6931472
        %v2036 = vmul.f32 -0.5, %v1900
        %v2037 = vadd.f32 %v2036, 1.0
        %v2038 = vmul.f32 %v2037, %v1900
        %v2039 = vand.u32 2147483647, %v1900
        %vm2040 = vcmp.lt.f32.partialorder %v2039, 0.0004427343
        %v2041 = vsel %vm2040, %v2038, %v2035
        %v2042 = vadd.f32 %v1902, 1.0
        %v2043 = vlog2.pop %v2042
        %v2044 = vmul.f32 %v2043, 0.6931472
        %v2045 = vmul.f32 -0.5, %v1902
        %v2046 = vadd.f32 %v2045, 1.0
        %v2047 = vmul.f32 %v2046, %v1902
        %v2048 = vand.u32 2147483647, %v1902
        %vm2049 = vcmp.lt.f32.partialorder %v2048, 0.0004427343
        %v2050 = vsel %vm2049, %v2047, %v2044
        %v2051 = vadd.f32 %v1904, 1.0
        %v2052 = vlog2.pop %v2051
        %v2053 = vmul.f32 %v2052, 0.6931472
        %v2054 = vmul.f32 -0.5, %v1904
        %v2055 = vadd.f32 %v2054, 1.0
        %v2056 = vmul.f32 %v2055, %v1904
        %v2057 = vand.u32 2147483647, %v1904
        %vm2058 = vcmp.lt.f32.partialorder %v2057, 0.0004427343
        %v2059 = vsel %vm2058, %v2056, %v2053
        %v2060 = vadd.f32 %v1906, 1.0
        %v2061 = vlog2.pop %v2060
        %v2062 = vmul.f32 %v2061, 0.6931472
        %v2063 = vmul.f32 -0.5, %v1906
        %v2064 = vadd.f32 %v2063, 1.0
        %v2065 = vmul.f32 %v2064, %v1906
        %v2066 = vand.u32 2147483647, %v1906
        %vm2067 = vcmp.lt.f32.partialorder %v2066, 0.0004427343
        %v2068 = vsel %vm2067, %v2065, %v2062
        %v2069 = vadd.f32 %v1908, 1.0
        %v2070 = vlog2.pop %v2069
        %v2071 = vmul.f32 %v2070, 0.6931472
        %v2072 = vmul.f32 -0.5, %v1908
        %v2073 = vadd.f32 %v2072, 1.0
        %v2074 = vmul.f32 %v2073, %v1908
        %v2075 = vand.u32 2147483647, %v1908
        %vm2076 = vcmp.lt.f32.partialorder %v2075, 0.0004427343
        %v2077 = vsel %vm2076, %v2074, %v2071
        %v2078 = vadd.f32 %v1910, 1.0
        %v2079 = vlog2.pop %v2078
        %v2080 = vmul.f32 %v2079, 0.6931472
        %v2081 = vmul.f32 -0.5, %v1910
        %v2082 = vadd.f32 %v2081, 1.0
        %v2083 = vmul.f32 %v2082, %v1910
        %v2084 = vand.u32 2147483647, %v1910
        %vm2085 = vcmp.lt.f32.partialorder %v2084, 0.0004427343
        %v2086 = vsel %vm2085, %v2083, %v2080
        %v2087 = vadd.f32 %v1912, 1.0
        %v2088 = vlog2.pop %v2087
        %v2089 = vmul.f32 %v2088, 0.6931472
        %v2090 = vmul.f32 -0.5, %v1912
        %v2091 = vadd.f32 %v2090, 1.0
        %v2092 = vmul.f32 %v2091, %v1912
        %v2093 = vand.u32 2147483647, %v1912
        %vm2094 = vcmp.lt.f32.partialorder %v2093, 0.0004427343
        %v2095 = vsel %vm2094, %v2092, %v2089
        %v2096 = vadd.f32 %v1914, 1.0
        %v2097 = vlog2.pop %v2096
        %v2098 = vmul.f32 %v2097, 0.6931472
        %v2099 = vmul.f32 -0.5, %v1914
        %v2100 = vadd.f32 %v2099, 1.0
        %v2101 = vmul.f32 %v2100, %v1914
        %v2102 = vand.u32 2147483647, %v1914
        %vm2103 = vcmp.lt.f32.partialorder %v2102, 0.0004427343
        %v2104 = vsel %vm2103, %v2101, %v2098
        %v2105 = vadd.f32 %v1916, 1.0
        %v2106 = vlog2.pop %v2105
        %v2107 = vmul.f32 %v2106, 0.6931472
        %v2108 = vmul.f32 -0.5, %v1916
        %v2109 = vadd.f32 %v2108, 1.0
        %v2110 = vmul.f32 %v2109, %v1916
        %v2111 = vand.u32 2147483647, %v1916
        %vm2112 = vcmp.lt.f32.partialorder %v2111, 0.0004427343
        %v2113 = vsel %vm2112, %v2110, %v2107
        %v2114 = vadd.f32 %v1918, 1.0
        %v2115 = vlog2.pop %v2114
        %v2116 = vmul.f32 %v2115, 0.6931472
        %v2117 = vmul.f32 -0.5, %v1918
        %v2118 = vadd.f32 %v2117, 1.0
        %v2119 = vmul.f32 %v2118, %v1918
        %v2120 = vand.u32 2147483647, %v1918
        %vm2121 = vcmp.lt.f32.partialorder %v2120, 0.0004427343
        %v2122 = vsel %vm2121, %v2119, %v2116
        %v2123 = vadd.f32 %v1920, 1.0
        %v2124 = vlog2.pop %v2123
        %v2125 = vmul.f32 %v2124, 0.6931472
        %v2126 = vmul.f32 -0.5, %v1920
        %v2127 = vadd.f32 %v2126, 1.0
        %v2128 = vmul.f32 %v2127, %v1920
        %v2129 = vand.u32 2147483647, %v1920
        %vm2130 = vcmp.lt.f32.partialorder %v2129, 0.0004427343
        %v2131 = vsel %vm2130, %v2128, %v2125
        %v2132 = vadd.f32 %v1922, 1.0
        %v2133 = vlog2.pop %v2132
        %v2134 = vmul.f32 %v2133, 0.6931472
        %v2135 = vmul.f32 -0.5, %v1922
        %v2136 = vadd.f32 %v2135, 1.0
        %v2137 = vmul.f32 %v2136, %v1922
        %v2138 = vand.u32 2147483647, %v1922
        %vm2139 = vcmp.lt.f32.partialorder %v2138, 0.0004427343
        %v2140 = vsel %vm2139, %v2137, %v2134
        %v2141 = vadd.f32 %v1924, 1.0
        %v2142 = vlog2.pop %v2141
        %v2143 = vmul.f32 %v2142, 0.6931472
        %v2144 = vmul.f32 -0.5, %v1924
        %v2145 = vadd.f32 %v2144, 1.0
        %v2146 = vmul.f32 %v2145, %v1924
        %v2147 = vand.u32 2147483647, %v1924
        %vm2148 = vcmp.lt.f32.partialorder %v2147, 0.0004427343
        %v2149 = vsel %vm2148, %v2146, %v2143
        %v2150 = vadd.f32 %v1926, 1.0
        %v2151 = vlog2.pop %v2150
        %v2152 = vmul.f32 %v2151, 0.6931472
        %v2153 = vmul.f32 -0.5, %v1926
        %v2154 = vadd.f32 %v2153, 1.0
        %v2155 = vmul.f32 %v2154, %v1926
        %v2156 = vand.u32 2147483647, %v1926
        %vm2157 = vcmp.lt.f32.partialorder %v2156, 0.0004427343
        %v2158 = vsel %vm2157, %v2155, %v2152
        %v2159 = vadd.f32 %v1928, 1.0
        %v2160 = vlog2.pop %v2159
        %v2161 = vmul.f32 %v2160, 0.6931472
        %v2162 = vmul.f32 -0.5, %v1928
        %v2163 = vadd.f32 %v2162, 1.0
        %v2164 = vmul.f32 %v2163, %v1928
        %v2165 = vand.u32 2147483647, %v1928
        %vm2166 = vcmp.lt.f32.partialorder %v2165, 0.0004427343
        %v2167 = vsel %vm2166, %v2164, %v2161
        %v2168 = vadd.f32 %v1930, 1.0
        %v2169 = vlog2.pop %v2168
        %v2170 = vmul.f32 %v2169, 0.6931472
        %v2171 = vmul.f32 -0.5, %v1930
        %v2172 = vadd.f32 %v2171, 1.0
        %v2173 = vmul.f32 %v2172, %v1930
        %v2174 = vand.u32 2147483647, %v1930
        %vm2175 = vcmp.lt.f32.partialorder %v2174, 0.0004427343
        %v2176 = vsel %vm2175, %v2173, %v2170
        %v2177 = vadd.f32 %v1932, 1.0
        %v2178 = vlog2.pop %v2177
        %v2179 = vmul.f32 %v2178, 0.6931472
        %v2180 = vmul.f32 -0.5, %v1932
        %v2181 = vadd.f32 %v2180, 1.0
        %v2182 = vmul.f32 %v2181, %v1932
        %v2183 = vand.u32 2147483647, %v1932
        %vm2184 = vcmp.lt.f32.partialorder %v2183, 0.0004427343
        %v2185 = vsel %vm2184, %v2182, %v2179
        %v2186 = vadd.f32 %v1934, 1.0
        %v2187 = vlog2.pop %v2186
        %v2188 = vmul.f32 %v2187, 0.6931472
        %v2189 = vmul.f32 -0.5, %v1934
        %v2190 = vadd.f32 %v2189, 1.0
        %v2191 = vmul.f32 %v2190, %v1934
        %v2192 = vand.u32 2147483647, %v1934
        %vm2193 = vcmp.lt.f32.partialorder %v2192, 0.0004427343
        %v2194 = vsel %vm2193, %v2191, %v2188
        %v2195 = vadd.f32 %v1936, 1.0
        %v2196 = vlog2.pop %v2195
        %v2197 = vmul.f32 %v2196, 0.6931472
        %v2198 = vmul.f32 -0.5, %v1936
        %v2199 = vadd.f32 %v2198, 1.0
        %v2200 = vmul.f32 %v2199, %v1936
        %v2201 = vand.u32 2147483647, %v1936
        %vm2202 = vcmp.lt.f32.partialorder %v2201, 0.0004427343
        %v2203 = vsel %vm2202, %v2200, %v2197
        %v2204 = vadd.f32 %v1938, 1.0
        %v2205 = vlog2.pop %v2204
        %v2206 = vmul.f32 %v2205, 0.6931472
        %v2207 = vmul.f32 -0.5, %v1938
        %v2208 = vadd.f32 %v2207, 1.0
        %v2209 = vmul.f32 %v2208, %v1938
        %v2210 = vand.u32 2147483647, %v1938
        %vm2211 = vcmp.lt.f32.partialorder %v2210, 0.0004427343
        %v2212 = vsel %vm2211, %v2209, %v2206
        %v2213 = vadd.f32 %v1940, 1.0
        %v2214 = vlog2.pop %v2213
        %v2215 = vmul.f32 %v2214, 0.6931472
        %v2216 = vmul.f32 -0.5, %v1940
        %v2217 = vadd.f32 %v2216, 1.0
        %v2218 = vmul.f32 %v2217, %v1940
        %v2219 = vand.u32 2147483647, %v1940
        %vm2220 = vcmp.lt.f32.partialorder %v2219, 0.0004427343
        %v2221 = vsel %vm2220, %v2218, %v2215
        %v2222 = vadd.f32 %v1942, 1.0
        %v2223 = vlog2.pop %v2222
        %v2224 = vmul.f32 %v2223, 0.6931472
        %v2225 = vmul.f32 -0.5, %v1942
        %v2226 = vadd.f32 %v2225, 1.0
        %v2227 = vmul.f32 %v2226, %v1942
        %v2228 = vand.u32 2147483647, %v1942
        %vm2229 = vcmp.lt.f32.partialorder %v2228, 0.0004427343
        %v2230 = vsel %vm2229, %v2227, %v2224
        %v2231 = vadd.f32 %v1783, %v1951
        %v2232 = vadd.f32 %v1784, %v1960
        %v2233 = vadd.f32 %v1785, %v1969
        %v2234 = vadd.f32 %v1786, %v1978
        %v2235 = vadd.f32 %v1787, %v1987
        %v2236 = vadd.f32 %v1788, %v1996
        %v2237 = vadd.f32 %v1789, %v2005
        %v2238 = vadd.f32 %v1790, %v2014
        %v2239 = vadd.f32 %v1791, %v2023
        %v2240 = vadd.f32 %v1792, %v2032
        %v2241 = vadd.f32 %v1793, %v2041
        %v2242 = vadd.f32 %v1794, %v2050
        %v2243 = vadd.f32 %v1795, %v2059
        %v2244 = vadd.f32 %v1796, %v2068
        %v2245 = vadd.f32 %v1797, %v2077
        %v2246 = vadd.f32 %v1798, %v2086
        %v2247 = vadd.f32 %v1799, %v2095
        %v2248 = vadd.f32 %v1800, %v2104
        %v2249 = vadd.f32 %v1801, %v2113
        %v2250 = vadd.f32 %v1802, %v2122
        %v2251 = vadd.f32 %v1803, %v2131
        %v2252 = vadd.f32 %v1804, %v2140
        %v2253 = vadd.f32 %v1805, %v2149
        %v2254 = vadd.f32 %v1806, %v2158
        %v2255 = vadd.f32 %v1807, %v2167
        %v2256 = vadd.f32 %v1808, %v2176
        %v2257 = vadd.f32 %v1809, %v2185
        %v2258 = vadd.f32 %v1810, %v2194
        %v2259 = vadd.f32 %v1811, %v2203
        %v2260 = vadd.f32 %v1812, %v2212
        %v2261 = vadd.f32 %v1813, %v2221
        %v2262 = vadd.f32 %v1814, %v2230
        %v2263 = vmax.f32 %v2231, 0.0001
        %v2264 = vmax.f32 %v2232, 0.0001
        %v2265 = vmax.f32 %v2233, 0.0001
        %v2266 = vmax.f32 %v2234, 0.0001
        %v2267 = vmax.f32 %v2235, 0.0001
        %v2268 = vmax.f32 %v2236, 0.0001
        %v2269 = vmax.f32 %v2237, 0.0001
        %v2270 = vmax.f32 %v2238, 0.0001
        %v2271 = vmax.f32 %v2239, 0.0001
        %v2272 = vmax.f32 %v2240, 0.0001
        %v2273 = vmax.f32 %v2241, 0.0001
        %v2274 = vmax.f32 %v2242, 0.0001
        %v2275 = vmax.f32 %v2243, 0.0001
        %v2276 = vmax.f32 %v2244, 0.0001
        %v2277 = vmax.f32 %v2245, 0.0001
        %v2278 = vmax.f32 %v2246, 0.0001
        %v2279 = vmax.f32 %v2247, 0.0001
        %v2280 = vmax.f32 %v2248, 0.0001
        %v2281 = vmax.f32 %v2249, 0.0001
        %v2282 = vmax.f32 %v2250, 0.0001
        %v2283 = vmax.f32 %v2251, 0.0001
        %v2284 = vmax.f32 %v2252, 0.0001
        %v2285 = vmax.f32 %v2253, 0.0001
        %v2286 = vmax.f32 %v2254, 0.0001
        %v2287 = vmax.f32 %v2255, 0.0001
        %v2288 = vmax.f32 %v2256, 0.0001
        %v2289 = vmax.f32 %v2257, 0.0001
        %v2290 = vmax.f32 %v2258, 0.0001
        %v2291 = vmax.f32 %v2259, 0.0001
        %v2292 = vmax.f32 %v2260, 0.0001
        %v2293 = vmax.f32 %v2261, 0.0001
        %v2294 = vmax.f32 %v2262, 0.0001
        %v2295 = vmin.f32 %v2263, 10000.0
        %v2296 = vmin.f32 %v2264, 10000.0
        %v2297 = vmin.f32 %v2265, 10000.0
        %v2298 = vmin.f32 %v2266, 10000.0
        %v2299 = vmin.f32 %v2267, 10000.0
        %v2300 = vmin.f32 %v2268, 10000.0
        %v2301 = vmin.f32 %v2269, 10000.0
        %v2302 = vmin.f32 %v2270, 10000.0
        %v2303 = vmin.f32 %v2271, 10000.0
        %v2304 = vmin.f32 %v2272, 10000.0
        %v2305 = vmin.f32 %v2273, 10000.0
        %v2306 = vmin.f32 %v2274, 10000.0
        %v2307 = vmin.f32 %v2275, 10000.0
        %v2308 = vmin.f32 %v2276, 10000.0
        %v2309 = vmin.f32 %v2277, 10000.0
        %v2310 = vmin.f32 %v2278, 10000.0
        %v2311 = vmin.f32 %v2279, 10000.0
        %v2312 = vmin.f32 %v2280, 10000.0
        %v2313 = vmin.f32 %v2281, 10000.0
        %v2314 = vmin.f32 %v2282, 10000.0
        %v2315 = vmin.f32 %v2283, 10000.0
        %v2316 = vmin.f32 %v2284, 10000.0
        %v2317 = vmin.f32 %v2285, 10000.0
        %v2318 = vmin.f32 %v2286, 10000.0
        %v2319 = vmin.f32 %v2287, 10000.0
        %v2320 = vmin.f32 %v2288, 10000.0
        %v2321 = vmin.f32 %v2289, 10000.0
        %v2322 = vmin.f32 %v2290, 10000.0
        %v2323 = vmin.f32 %v2291, 10000.0
        %v2324 = vmin.f32 %v2292, 10000.0
        %v2325 = vmin.f32 %v2293, 10000.0
        %v2326 = vmin.f32 %v2294, 10000.0
        %v2327 = vxor.u32 %v1560, 2147483648
        %v2328 = vxor.u32 %v1609, 2147483648
        %v2329 = vxor.u32 %v1562, 2147483648
        %v2330 = vxor.u32 %v1611, 2147483648
        %v2331 = vxor.u32 %v1565, 2147483648
        %v2332 = vxor.u32 %v1614, 2147483648
        %v2333 = vxor.u32 %v1567, 2147483648
        %v2334 = vxor.u32 %v1616, 2147483648
        %v2335 = vxor.u32 %v1570, 2147483648
        %v2336 = vxor.u32 %v1619, 2147483648
        %v2337 = vxor.u32 %v1572, 2147483648
        %v2338 = vxor.u32 %v1621, 2147483648
        %v2339 = vxor.u32 %v1575, 2147483648
        %v2340 = vxor.u32 %v1624, 2147483648
        %v2341 = vxor.u32 %v1577, 2147483648
        %v2342 = vxor.u32 %v1626, 2147483648
        %v2343 = vxor.u32 %v1580, 2147483648
        %v2344 = vxor.u32 %v1629, 2147483648
        %v2345 = vxor.u32 %v1582, 2147483648
        %v2346 = vxor.u32 %v1631, 2147483648
        %v2347 = vxor.u32 %v1585, 2147483648
        %v2348 = vxor.u32 %v1634, 2147483648
        %v2349 = vxor.u32 %v1587, 2147483648
        %v2350 = vxor.u32 %v1636, 2147483648
        %v2351 = vxor.u32 %v1590, 2147483648
        %v2352 = vxor.u32 %v1639, 2147483648
        %v2353 = vxor.u32 %v1592, 2147483648
        %v2354 = vxor.u32 %v1641, 2147483648
        %v2355 = vxor.u32 %v1595, 2147483648
        %v2356 = vxor.u32 %v1644, 2147483648
        %v2357 = vxor.u32 %v1597, 2147483648
        %v2358 = vxor.u32 %v1646, 2147483648
        %v2359 = vmul.f32 %v2327, 1.442695
        %v2360 = vpow.pop %v2359
        %v2361 = vmul.f32 %v2328, 1.442695
        %v2362 = vpow.pop %v2361
        %v2363 = vmul.f32 %v2329, 1.442695
        %v2364 = vpow.pop %v2363
        %v2365 = vmul.f32 %v2330, 1.442695
        %v2366 = vpow.pop %v2365
        %v2367 = vmul.f32 %v2331, 1.442695
        %v2368 = vpow.pop %v2367
        %v2369 = vmul.f32 %v2332, 1.442695
        %v2370 = vpow.pop %v2369
        %v2371 = vmul.f32 %v2333, 1.442695
        %v2372 = vpow.pop %v2371
        %v2373 = vmul.f32 %v2334, 1.442695
        %v2374 = vpow.pop %v2373
        %v2375 = vmul.f32 %v2335, 1.442695
        %v2376 = vpow.pop %v2375
        %v2377 = vmul.f32 %v2336, 1.442695
        %v2378 = vpow.pop %v2377
        %v2379 = vmul.f32 %v2337, 1.442695
        %v2380 = vpow.pop %v2379
        %v2381 = vmul.f32 %v2338, 1.442695
        %v2382 = vpow.pop %v2381
        %v2383 = vmul.f32 %v2339, 1.442695
        %v2384 = vpow.pop %v2383
        %v2385 = vmul.f32 %v2340, 1.442695
        %v2386 = vpow.pop %v2385
        %v2387 = vmul.f32 %v2341, 1.442695
        %v2388 = vpow.pop %v2387
        %v2389 = vmul.f32 %v2342, 1.442695
        %v2390 = vpow.pop %v2389
        %v2391 = vmul.f32 %v2343, 1.442695
        %v2392 = vpow.pop %v2391
        %v2393 = vmul.f32 %v2344, 1.442695
        %v2394 = vpow.pop %v2393
        %v2395 = vmul.f32 %v2345, 1.442695
        %v2396 = vpow.pop %v2395
        %v2397 = vmul.f32 %v2346, 1.442695
        %v2398 = vpow.pop %v2397
        %v2399 = vmul.f32 %v2347, 1.442695
        %v2400 = vpow.pop %v2399
        %v2401 = vmul.f32 %v2348, 1.442695
        %v2402 = vpow.pop %v2401
        %v2403 = vmul.f32 %v2349, 1.442695
        %v2404 = vpow.pop %v2403
        %v2405 = vmul.f32 %v2350, 1.442695
        %v2406 = vpow.pop %v2405
        %v2407 = vmul.f32 %v2351, 1.442695
        %v2408 = vpow.pop %v2407
        %v2409 = vmul.f32 %v2352, 1.442695
        %v2410 = vpow.pop %v2409
        %v2411 = vmul.f32 %v2353, 1.442695
        %v2412 = vpow.pop %v2411
        %v2413 = vmul.f32 %v2354, 1.442695
        %v2414 = vpow.pop %v2413
        %v2415 = vmul.f32 %v2355, 1.442695
        %v2416 = vpow.pop %v2415
        %v2417 = vmul.f32 %v2356, 1.442695
        %v2418 = vpow.pop %v2417
        %v2419 = vmul.f32 %v2357, 1.442695
        %v2420 = vpow.pop %v2419
        %v2421 = vmul.f32 %v2358, 1.442695
        %v2422 = vpow.pop %v2421
        %v2423 = vadd.f32 %v2360, 1.0
        %v2424 = vadd.f32 %v2362, 1.0
        %v2425 = vadd.f32 %v2364, 1.0
        %v2426 = vadd.f32 %v2366, 1.0
        %v2427 = vadd.f32 %v2368, 1.0
        %v2428 = vadd.f32 %v2370, 1.0
        %v2429 = vadd.f32 %v2372, 1.0
        %v2430 = vadd.f32 %v2374, 1.0
        %v2431 = vadd.f32 %v2376, 1.0
        %v2432 = vadd.f32 %v2378, 1.0
        %v2433 = vadd.f32 %v2380, 1.0
        %v2434 = vadd.f32 %v2382, 1.0
        %v2435 = vadd.f32 %v2384, 1.0
        %v2436 = vadd.f32 %v2386, 1.0
        %v2437 = vadd.f32 %v2388, 1.0
        %v2438 = vadd.f32 %v2390, 1.0
        %v2439 = vadd.f32 %v2392, 1.0
        %v2440 = vadd.f32 %v2394, 1.0
        %v2441 = vadd.f32 %v2396, 1.0
        %v2442 = vadd.f32 %v2398, 1.0
        %v2443 = vadd.f32 %v2400, 1.0
        %v2444 = vadd.f32 %v2402, 1.0
        %v2445 = vadd.f32 %v2404, 1.0
        %v2446 = vadd.f32 %v2406, 1.0
        %v2447 = vadd.f32 %v2408, 1.0
        %v2448 = vadd.f32 %v2410, 1.0
        %v2449 = vadd.f32 %v2412, 1.0
        %v2450 = vadd.f32 %v2414, 1.0
        %v2451 = vadd.f32 %v2416, 1.0
        %v2452 = vadd.f32 %v2418, 1.0
        %v2453 = vadd.f32 %v2420, 1.0
        %v2454 = vadd.f32 %v2422, 1.0
        %v2455 = vrcp.pop %v2423
        %v2456 = vmul.f32 %v2423, %v2455
        %v2457 = vsub.f32 1.0, %v2456
        %v2458 = vmul.f32 %v2455, %v2457
        %v2459 = vadd.f32 %v2455, %v2458
        %vm2460 = vweird.f32 %v2423
        %vm2461 = vweird.f32 %v2455
        %vm2462 = vmor %vm2460, %vm2461
        %v2463 = vsel %vm2462, %v2455, %v2459
        %v2464 = vand.u32 2147483647, %v2423
        %vm2465 = vcmp.eq.f32.partialorder %v2464, 8.507059e+37
        %v2466 = vand.u32 %v2423, 2147483648
        %v2467 = vor.u32 1.1754944e-38, %v2466
        %v2468 = vsel %vm2465, %v2467, %v2463
        %v2469 = vmul.f32 1.0, %v2468
        %v2470 = vrcp.pop %v2424
        %v2471 = vmul.f32 %v2424, %v2470
        %v2472 = vsub.f32 1.0, %v2471
        %v2473 = vmul.f32 %v2470, %v2472
        %v2474 = vadd.f32 %v2470, %v2473
        %vm2475 = vweird.f32 %v2424
        %vm2476 = vweird.f32 %v2470
        %vm2477 = vmor %vm2475, %vm2476
        %v2478 = vsel %vm2477, %v2470, %v2474
        %v2479 = vand.u32 2147483647, %v2424
        %vm2480 = vcmp.eq.f32.partialorder %v2479, 8.507059e+37
        %v2481 = vand.u32 %v2424, 2147483648
        %v2482 = vor.u32 1.1754944e-38, %v2481
        %v2483 = vsel %vm2480, %v2482, %v2478
        %v2484 = vmul.f32 1.0, %v2483
        %v2485 = vrcp.pop %v2425
        %v2486 = vmul.f32 %v2425, %v2485
        %v2487 = vsub.f32 1.0, %v2486
        %v2488 = vmul.f32 %v2485, %v2487
        %v2489 = vadd.f32 %v2485, %v2488
        %vm2490 = vweird.f32 %v2425
        %vm2491 = vweird.f32 %v2485
        %vm2492 = vmor %vm2490, %vm2491
        %v2493 = vsel %vm2492, %v2485, %v2489
        %v2494 = vand.u32 2147483647, %v2425
        %vm2495 = vcmp.eq.f32.partialorder %v2494, 8.507059e+37
        %v2496 = vand.u32 %v2425, 2147483648
        %v2497 = vor.u32 1.1754944e-38, %v2496
        %v2498 = vsel %vm2495, %v2497, %v2493
        %v2499 = vmul.f32 1.0, %v2498
        %v2500 = vrcp.pop %v2426
        %v2501 = vmul.f32 %v2426, %v2500
        %v2502 = vsub.f32 1.0, %v2501
        %v2503 = vmul.f32 %v2500, %v2502
        %v2504 = vadd.f32 %v2500, %v2503
        %vm2505 = vweird.f32 %v2426
        %vm2506 = vweird.f32 %v2500
        %vm2507 = vmor %vm2505, %vm2506
        %v2508 = vsel %vm2507, %v2500, %v2504
        %v2509 = vand.u32 2147483647, %v2426
        %vm2510 = vcmp.eq.f32.partialorder %v2509, 8.507059e+37
        %v2511 = vand.u32 %v2426, 2147483648
        %v2512 = vor.u32 1.1754944e-38, %v2511
        %v2513 = vsel %vm2510, %v2512, %v2508
        %v2514 = vmul.f32 1.0, %v2513
        %v2515 = vrcp.pop %v2427
        %v2516 = vmul.f32 %v2427, %v2515
        %v2517 = vsub.f32 1.0, %v2516
        %v2518 = vmul.f32 %v2515, %v2517
        %v2519 = vadd.f32 %v2515, %v2518
        %vm2520 = vweird.f32 %v2427
        %vm2521 = vweird.f32 %v2515
        %vm2522 = vmor %vm2520, %vm2521
        %v2523 = vsel %vm2522, %v2515, %v2519
        %v2524 = vand.u32 2147483647, %v2427
        %vm2525 = vcmp.eq.f32.partialorder %v2524, 8.507059e+37
        %v2526 = vand.u32 %v2427, 2147483648
        %v2527 = vor.u32 1.1754944e-38, %v2526
        %v2528 = vsel %vm2525, %v2527, %v2523
        %v2529 = vmul.f32 1.0, %v2528
        %v2530 = vrcp.pop %v2428
        %v2531 = vmul.f32 %v2428, %v2530
        %v2532 = vsub.f32 1.0, %v2531
        %v2533 = vmul.f32 %v2530, %v2532
        %v2534 = vadd.f32 %v2530, %v2533
        %vm2535 = vweird.f32 %v2428
        %vm2536 = vweird.f32 %v2530
        %vm2537 = vmor %vm2535, %vm2536
        %v2538 = vsel %vm2537, %v2530, %v2534
        %v2539 = vand.u32 2147483647, %v2428
        %vm2540 = vcmp.eq.f32.partialorder %v2539, 8.507059e+37
        %v2541 = vand.u32 %v2428, 2147483648
        %v2542 = vor.u32 1.1754944e-38, %v2541
        %v2543 = vsel %vm2540, %v2542, %v2538
        %v2544 = vmul.f32 1.0, %v2543
        %v2545 = vrcp.pop %v2429
        %v2546 = vmul.f32 %v2429, %v2545
        %v2547 = vsub.f32 1.0, %v2546
        %v2548 = vmul.f32 %v2545, %v2547
        %v2549 = vadd.f32 %v2545, %v2548
        %vm2550 = vweird.f32 %v2429
        %vm2551 = vweird.f32 %v2545
        %vm2552 = vmor %vm2550, %vm2551
        %v2553 = vsel %vm2552, %v2545, %v2549
        %v2554 = vand.u32 2147483647, %v2429
        %vm2555 = vcmp.eq.f32.partialorder %v2554, 8.507059e+37
        %v2556 = vand.u32 %v2429, 2147483648
        %v2557 = vor.u32 1.1754944e-38, %v2556
        %v2558 = vsel %vm2555, %v2557, %v2553
        %v2559 = vmul.f32 1.0, %v2558
        %v2560 = vrcp.pop %v2430
        %v2561 = vmul.f32 %v2430, %v2560
        %v2562 = vsub.f32 1.0, %v2561
        %v2563 = vmul.f32 %v2560, %v2562
        %v2564 = vadd.f32 %v2560, %v2563
        %vm2565 = vweird.f32 %v2430
        %vm2566 = vweird.f32 %v2560
        %vm2567 = vmor %vm2565, %vm2566
        %v2568 = vsel %vm2567, %v2560, %v2564
        %v2569 = vand.u32 2147483647, %v2430
        %vm2570 = vcmp.eq.f32.partialorder %v2569, 8.507059e+37
        %v2571 = vand.u32 %v2430, 2147483648
        %v2572 = vor.u32 1.1754944e-38, %v2571
        %v2573 = vsel %vm2570, %v2572, %v2568
        %v2574 = vmul.f32 1.0, %v2573
        %v2575 = vrcp.pop %v2431
        %v2576 = vmul.f32 %v2431, %v2575
        %v2577 = vsub.f32 1.0, %v2576
        %v2578 = vmul.f32 %v2575, %v2577
        %v2579 = vadd.f32 %v2575, %v2578
        %vm2580 = vweird.f32 %v2431
        %vm2581 = vweird.f32 %v2575
        %vm2582 = vmor %vm2580, %vm2581
        %v2583 = vsel %vm2582, %v2575, %v2579
        %v2584 = vand.u32 2147483647, %v2431
        %vm2585 = vcmp.eq.f32.partialorder %v2584, 8.507059e+37
        %v2586 = vand.u32 %v2431, 2147483648
        %v2587 = vor.u32 1.1754944e-38, %v2586
        %v2588 = vsel %vm2585, %v2587, %v2583
        %v2589 = vmul.f32 1.0, %v2588
        %v2590 = vrcp.pop %v2432
        %v2591 = vmul.f32 %v2432, %v2590
        %v2592 = vsub.f32 1.0, %v2591
        %v2593 = vmul.f32 %v2590, %v2592
        %v2594 = vadd.f32 %v2590, %v2593
        %vm2595 = vweird.f32 %v2432
        %vm2596 = vweird.f32 %v2590
        %vm2597 = vmor %vm2595, %vm2596
        %v2598 = vsel %vm2597, %v2590, %v2594
        %v2599 = vand.u32 2147483647, %v2432
        %vm2600 = vcmp.eq.f32.partialorder %v2599, 8.507059e+37
        %v2601 = vand.u32 %v2432, 2147483648
        %v2602 = vor.u32 1.1754944e-38, %v2601
        %v2603 = vsel %vm2600, %v2602, %v2598
        %v2604 = vmul.f32 1.0, %v2603
        %v2605 = vrcp.pop %v2433
        %v2606 = vmul.f32 %v2433, %v2605
        %v2607 = vsub.f32 1.0, %v2606
        %v2608 = vmul.f32 %v2605, %v2607
        %v2609 = vadd.f32 %v2605, %v2608
        %vm2610 = vweird.f32 %v2433
        %vm2611 = vweird.f32 %v2605
        %vm2612 = vmor %vm2610, %vm2611
        %v2613 = vsel %vm2612, %v2605, %v2609
        %v2614 = vand.u32 2147483647, %v2433
        %vm2615 = vcmp.eq.f32.partialorder %v2614, 8.507059e+37
        %v2616 = vand.u32 %v2433, 2147483648
        %v2617 = vor.u32 1.1754944e-38, %v2616
        %v2618 = vsel %vm2615, %v2617, %v2613
        %v2619 = vmul.f32 1.0, %v2618
        %v2620 = vrcp.pop %v2434
        %v2621 = vmul.f32 %v2434, %v2620
        %v2622 = vsub.f32 1.0, %v2621
        %v2623 = vmul.f32 %v2620, %v2622
        %v2624 = vadd.f32 %v2620, %v2623
        %vm2625 = vweird.f32 %v2434
        %vm2626 = vweird.f32 %v2620
        %vm2627 = vmor %vm2625, %vm2626
        %v2628 = vsel %vm2627, %v2620, %v2624
        %v2629 = vand.u32 2147483647, %v2434
        %vm2630 = vcmp.eq.f32.partialorder %v2629, 8.507059e+37
        %v2631 = vand.u32 %v2434, 2147483648
        %v2632 = vor.u32 1.1754944e-38, %v2631
        %v2633 = vsel %vm2630, %v2632, %v2628
        %v2634 = vmul.f32 1.0, %v2633
        %v2635 = vrcp.pop %v2435
        %v2636 = vmul.f32 %v2435, %v2635
        %v2637 = vsub.f32 1.0, %v2636
        %v2638 = vmul.f32 %v2635, %v2637
        %v2639 = vadd.f32 %v2635, %v2638
        %vm2640 = vweird.f32 %v2435
        %vm2641 = vweird.f32 %v2635
        %vm2642 = vmor %vm2640, %vm2641
        %v2643 = vsel %vm2642, %v2635, %v2639
        %v2644 = vand.u32 2147483647, %v2435
        %vm2645 = vcmp.eq.f32.partialorder %v2644, 8.507059e+37
        %v2646 = vand.u32 %v2435, 2147483648
        %v2647 = vor.u32 1.1754944e-38, %v2646
        %v2648 = vsel %vm2645, %v2647, %v2643
        %v2649 = vmul.f32 1.0, %v2648
        %v2650 = vrcp.pop %v2436
        %v2651 = vmul.f32 %v2436, %v2650
        %v2652 = vsub.f32 1.0, %v2651
        %v2653 = vmul.f32 %v2650, %v2652
        %v2654 = vadd.f32 %v2650, %v2653
        %vm2655 = vweird.f32 %v2436
        %vm2656 = vweird.f32 %v2650
        %vm2657 = vmor %vm2655, %vm2656
        %v2658 = vsel %vm2657, %v2650, %v2654
        %v2659 = vand.u32 2147483647, %v2436
        %vm2660 = vcmp.eq.f32.partialorder %v2659, 8.507059e+37
        %v2661 = vand.u32 %v2436, 2147483648
        %v2662 = vor.u32 1.1754944e-38, %v2661
        %v2663 = vsel %vm2660, %v2662, %v2658
        %v2664 = vmul.f32 1.0, %v2663
        %v2665 = vrcp.pop %v2437
        %v2666 = vmul.f32 %v2437, %v2665
        %v2667 = vsub.f32 1.0, %v2666
        %v2668 = vmul.f32 %v2665, %v2667
        %v2669 = vadd.f32 %v2665, %v2668
        %vm2670 = vweird.f32 %v2437
        %vm2671 = vweird.f32 %v2665
        %vm2672 = vmor %vm2670, %vm2671
        %v2673 = vsel %vm2672, %v2665, %v2669
        %v2674 = vand.u32 2147483647, %v2437
        %vm2675 = vcmp.eq.f32.partialorder %v2674, 8.507059e+37
        %v2676 = vand.u32 %v2437, 2147483648
        %v2677 = vor.u32 1.1754944e-38, %v2676
        %v2678 = vsel %vm2675, %v2677, %v2673
        %v2679 = vmul.f32 1.0, %v2678
        %v2680 = vrcp.pop %v2438
        %v2681 = vmul.f32 %v2438, %v2680
        %v2682 = vsub.f32 1.0, %v2681
        %v2683 = vmul.f32 %v2680, %v2682
        %v2684 = vadd.f32 %v2680, %v2683
        %vm2685 = vweird.f32 %v2438
        %vm2686 = vweird.f32 %v2680
        %vm2687 = vmor %vm2685, %vm2686
        %v2688 = vsel %vm2687, %v2680, %v2684
        %v2689 = vand.u32 2147483647, %v2438
        %vm2690 = vcmp.eq.f32.partialorder %v2689, 8.507059e+37
        %v2691 = vand.u32 %v2438, 2147483648
        %v2692 = vor.u32 1.1754944e-38, %v2691
        %v2693 = vsel %vm2690, %v2692, %v2688
        %v2694 = vmul.f32 1.0, %v2693
        %v2695 = vrcp.pop %v2439
        %v2696 = vmul.f32 %v2439, %v2695
        %v2697 = vsub.f32 1.0, %v2696
        %v2698 = vmul.f32 %v2695, %v2697
        %v2699 = vadd.f32 %v2695, %v2698
        %vm2700 = vweird.f32 %v2439
        %vm2701 = vweird.f32 %v2695
        %vm2702 = vmor %vm2700, %vm2701
        %v2703 = vsel %vm2702, %v2695, %v2699
        %v2704 = vand.u32 2147483647, %v2439
        %vm2705 = vcmp.eq.f32.partialorder %v2704, 8.507059e+37
        %v2706 = vand.u32 %v2439, 2147483648
        %v2707 = vor.u32 1.1754944e-38, %v2706
        %v2708 = vsel %vm2705, %v2707, %v2703
        %v2709 = vmul.f32 1.0, %v2708
        %v2710 = vrcp.pop %v2440
        %v2711 = vmul.f32 %v2440, %v2710
        %v2712 = vsub.f32 1.0, %v2711
        %v2713 = vmul.f32 %v2710, %v2712
        %v2714 = vadd.f32 %v2710, %v2713
        %vm2715 = vweird.f32 %v2440
        %vm2716 = vweird.f32 %v2710
        %vm2717 = vmor %vm2715, %vm2716
        %v2718 = vsel %vm2717, %v2710, %v2714
        %v2719 = vand.u32 2147483647, %v2440
        %vm2720 = vcmp.eq.f32.partialorder %v2719, 8.507059e+37
        %v2721 = vand.u32 %v2440, 2147483648
        %v2722 = vor.u32 1.1754944e-38, %v2721
        %v2723 = vsel %vm2720, %v2722, %v2718
        %v2724 = vmul.f32 1.0, %v2723
        %v2725 = vrcp.pop %v2441
        %v2726 = vmul.f32 %v2441, %v2725
        %v2727 = vsub.f32 1.0, %v2726
        %v2728 = vmul.f32 %v2725, %v2727
        %v2729 = vadd.f32 %v2725, %v2728
        %vm2730 = vweird.f32 %v2441
        %vm2731 = vweird.f32 %v2725
        %vm2732 = vmor %vm2730, %vm2731
        %v2733 = vsel %vm2732, %v2725, %v2729
        %v2734 = vand.u32 2147483647, %v2441
        %vm2735 = vcmp.eq.f32.partialorder %v2734, 8.507059e+37
        %v2736 = vand.u32 %v2441, 2147483648
        %v2737 = vor.u32 1.1754944e-38, %v2736
        %v2738 = vsel %vm2735, %v2737, %v2733
        %v2739 = vmul.f32 1.0, %v2738
        %v2740 = vrcp.pop %v2442
        %v2741 = vmul.f32 %v2442, %v2740
        %v2742 = vsub.f32 1.0, %v2741
        %v2743 = vmul.f32 %v2740, %v2742
        %v2744 = vadd.f32 %v2740, %v2743
        %vm2745 = vweird.f32 %v2442
        %vm2746 = vweird.f32 %v2740
        %vm2747 = vmor %vm2745, %vm2746
        %v2748 = vsel %vm2747, %v2740, %v2744
        %v2749 = vand.u32 2147483647, %v2442
        %vm2750 = vcmp.eq.f32.partialorder %v2749, 8.507059e+37
        %v2751 = vand.u32 %v2442, 2147483648
        %v2752 = vor.u32 1.1754944e-38, %v2751
        %v2753 = vsel %vm2750, %v2752, %v2748
        %v2754 = vmul.f32 1.0, %v2753
        %v2755 = vrcp.pop %v2443
        %v2756 = vmul.f32 %v2443, %v2755
        %v2757 = vsub.f32 1.0, %v2756
        %v2758 = vmul.f32 %v2755, %v2757
        %v2759 = vadd.f32 %v2755, %v2758
        %vm2760 = vweird.f32 %v2443
        %vm2761 = vweird.f32 %v2755
        %vm2762 = vmor %vm2760, %vm2761
        %v2763 = vsel %vm2762, %v2755, %v2759
        %v2764 = vand.u32 2147483647, %v2443
        %vm2765 = vcmp.eq.f32.partialorder %v2764, 8.507059e+37
        %v2766 = vand.u32 %v2443, 2147483648
        %v2767 = vor.u32 1.1754944e-38, %v2766
        %v2768 = vsel %vm2765, %v2767, %v2763
        %v2769 = vmul.f32 1.0, %v2768
        %v2770 = vrcp.pop %v2444
        %v2771 = vmul.f32 %v2444, %v2770
        %v2772 = vsub.f32 1.0, %v2771
        %v2773 = vmul.f32 %v2770, %v2772
        %v2774 = vadd.f32 %v2770, %v2773
        %vm2775 = vweird.f32 %v2444
        %vm2776 = vweird.f32 %v2770
        %vm2777 = vmor %vm2775, %vm2776
        %v2778 = vsel %vm2777, %v2770, %v2774
        %v2779 = vand.u32 2147483647, %v2444
        %vm2780 = vcmp.eq.f32.partialorder %v2779, 8.507059e+37
        %v2781 = vand.u32 %v2444, 2147483648
        %v2782 = vor.u32 1.1754944e-38, %v2781
        %v2783 = vsel %vm2780, %v2782, %v2778
        %v2784 = vmul.f32 1.0, %v2783
        %v2785 = vrcp.pop %v2445
        %v2786 = vmul.f32 %v2445, %v2785
        %v2787 = vsub.f32 1.0, %v2786
        %v2788 = vmul.f32 %v2785, %v2787
        %v2789 = vadd.f32 %v2785, %v2788
        %vm2790 = vweird.f32 %v2445
        %vm2791 = vweird.f32 %v2785
        %vm2792 = vmor %vm2790, %vm2791
        %v2793 = vsel %vm2792, %v2785, %v2789
        %v2794 = vand.u32 2147483647, %v2445
        %vm2795 = vcmp.eq.f32.partialorder %v2794, 8.507059e+37
        %v2796 = vand.u32 %v2445, 2147483648
        %v2797 = vor.u32 1.1754944e-38, %v2796
        %v2798 = vsel %vm2795, %v2797, %v2793
        %v2799 = vmul.f32 1.0, %v2798
        %v2800 = vrcp.pop %v2446
        %v2801 = vmul.f32 %v2446, %v2800
        %v2802 = vsub.f32 1.0, %v2801
        %v2803 = vmul.f32 %v2800, %v2802
        %v2804 = vadd.f32 %v2800, %v2803
        %vm2805 = vweird.f32 %v2446
        %vm2806 = vweird.f32 %v2800
        %vm2807 = vmor %vm2805, %vm2806
        %v2808 = vsel %vm2807, %v2800, %v2804
        %v2809 = vand.u32 2147483647, %v2446
        %vm2810 = vcmp.eq.f32.partialorder %v2809, 8.507059e+37
        %v2811 = vand.u32 %v2446, 2147483648
        %v2812 = vor.u32 1.1754944e-38, %v2811
        %v2813 = vsel %vm2810, %v2812, %v2808
        %v2814 = vmul.f32 1.0, %v2813
        %v2815 = vrcp.pop %v2447
        %v2816 = vmul.f32 %v2447, %v2815
        %v2817 = vsub.f32 1.0, %v2816
        %v2818 = vmul.f32 %v2815, %v2817
        %v2819 = vadd.f32 %v2815, %v2818
        %vm2820 = vweird.f32 %v2447
        %vm2821 = vweird.f32 %v2815
        %vm2822 = vmor %vm2820, %vm2821
        %v2823 = vsel %vm2822, %v2815, %v2819
        %v2824 = vand.u32 2147483647, %v2447
        %vm2825 = vcmp.eq.f32.partialorder %v2824, 8.507059e+37
        %v2826 = vand.u32 %v2447, 2147483648
        %v2827 = vor.u32 1.1754944e-38, %v2826
        %v2828 = vsel %vm2825, %v2827, %v2823
        %v2829 = vmul.f32 1.0, %v2828
        %v2830 = vrcp.pop %v2448
        %v2831 = vmul.f32 %v2448, %v2830
        %v2832 = vsub.f32 1.0, %v2831
        %v2833 = vmul.f32 %v2830, %v2832
        %v2834 = vadd.f32 %v2830, %v2833
        %vm2835 = vweird.f32 %v2448
        %vm2836 = vweird.f32 %v2830
        %vm2837 = vmor %vm2835, %vm2836
        %v2838 = vsel %vm2837, %v2830, %v2834
        %v2839 = vand.u32 2147483647, %v2448
        %vm2840 = vcmp.eq.f32.partialorder %v2839, 8.507059e+37
        %v2841 = vand.u32 %v2448, 2147483648
        %v2842 = vor.u32 1.1754944e-38, %v2841
        %v2843 = vsel %vm2840, %v2842, %v2838
        %v2844 = vmul.f32 1.0, %v2843
        %v2845 = vrcp.pop %v2449
        %v2846 = vmul.f32 %v2449, %v2845
        %v2847 = vsub.f32 1.0, %v2846
        %v2848 = vmul.f32 %v2845, %v2847
        %v2849 = vadd.f32 %v2845, %v2848
        %vm2850 = vweird.f32 %v2449
        %vm2851 = vweird.f32 %v2845
        %vm2852 = vmor %vm2850, %vm2851
        %v2853 = vsel %vm2852, %v2845, %v2849
        %v2854 = vand.u32 2147483647, %v2449
        %vm2855 = vcmp.eq.f32.partialorder %v2854, 8.507059e+37
        %v2856 = vand.u32 %v2449, 2147483648
        %v2857 = vor.u32 1.1754944e-38, %v2856
        %v2858 = vsel %vm2855, %v2857, %v2853
        %v2859 = vmul.f32 1.0, %v2858
        %v2860 = vrcp.pop %v2450
        %v2861 = vmul.f32 %v2450, %v2860
        %v2862 = vsub.f32 1.0, %v2861
        %v2863 = vmul.f32 %v2860, %v2862
        %v2864 = vadd.f32 %v2860, %v2863
        %vm2865 = vweird.f32 %v2450
        %vm2866 = vweird.f32 %v2860
        %vm2867 = vmor %vm2865, %vm2866
        %v2868 = vsel %vm2867, %v2860, %v2864
        %v2869 = vand.u32 2147483647, %v2450
        %vm2870 = vcmp.eq.f32.partialorder %v2869, 8.507059e+37
        %v2871 = vand.u32 %v2450, 2147483648
        %v2872 = vor.u32 1.1754944e-38, %v2871
        %v2873 = vsel %vm2870, %v2872, %v2868
        %v2874 = vmul.f32 1.0, %v2873
        %v2875 = vrcp.pop %v2451
        %v2876 = vmul.f32 %v2451, %v2875
        %v2877 = vsub.f32 1.0, %v2876
        %v2878 = vmul.f32 %v2875, %v2877
        %v2879 = vadd.f32 %v2875, %v2878
        %vm2880 = vweird.f32 %v2451
        %vm2881 = vweird.f32 %v2875
        %vm2882 = vmor %vm2880, %vm2881
        %v2883 = vsel %vm2882, %v2875, %v2879
        %v2884 = vand.u32 2147483647, %v2451
        %vm2885 = vcmp.eq.f32.partialorder %v2884, 8.507059e+37
        %v2886 = vand.u32 %v2451, 2147483648
        %v2887 = vor.u32 1.1754944e-38, %v2886
        %v2888 = vsel %vm2885, %v2887, %v2883
        %v2889 = vmul.f32 1.0, %v2888
        %v2890 = vrcp.pop %v2452
        %v2891 = vmul.f32 %v2452, %v2890
        %v2892 = vsub.f32 1.0, %v2891
        %v2893 = vmul.f32 %v2890, %v2892
        %v2894 = vadd.f32 %v2890, %v2893
        %vm2895 = vweird.f32 %v2452
        %vm2896 = vweird.f32 %v2890
        %vm2897 = vmor %vm2895, %vm2896
        %v2898 = vsel %vm2897, %v2890, %v2894
        %v2899 = vand.u32 2147483647, %v2452
        %vm2900 = vcmp.eq.f32.partialorder %v2899, 8.507059e+37
        %v2901 = vand.u32 %v2452, 2147483648
        %v2902 = vor.u32 1.1754944e-38, %v2901
        %v2903 = vsel %vm2900, %v2902, %v2898
        %v2904 = vmul.f32 1.0, %v2903
        %v2905 = vrcp.pop %v2453
        %v2906 = vmul.f32 %v2453, %v2905
        %v2907 = vsub.f32 1.0, %v2906
        %v2908 = vmul.f32 %v2905, %v2907
        %v2909 = vadd.f32 %v2905, %v2908
        %vm2910 = vweird.f32 %v2453
        %vm2911 = vweird.f32 %v2905
        %vm2912 = vmor %vm2910, %vm2911
        %v2913 = vsel %vm2912, %v2905, %v2909
        %v2914 = vand.u32 2147483647, %v2453
        %vm2915 = vcmp.eq.f32.partialorder %v2914, 8.507059e+37
        %v2916 = vand.u32 %v2453, 2147483648
        %v2917 = vor.u32 1.1754944e-38, %v2916
        %v2918 = vsel %vm2915, %v2917, %v2913
        %v2919 = vmul.f32 1.0, %v2918
        %v2920 = vrcp.pop %v2454
        %v2921 = vmul.f32 %v2454, %v2920
        %v2922 = vsub.f32 1.0, %v2921
        %v2923 = vmul.f32 %v2920, %v2922
        %v2924 = vadd.f32 %v2920, %v2923
        %vm2925 = vweird.f32 %v2454
        %vm2926 = vweird.f32 %v2920
        %vm2927 = vmor %vm2925, %vm2926
        %v2928 = vsel %vm2927, %v2920, %v2924
        %v2929 = vand.u32 2147483647, %v2454
        %vm2930 = vcmp.eq.f32.partialorder %v2929, 8.507059e+37
        %v2931 = vand.u32 %v2454, 2147483648
        %v2932 = vor.u32 1.1754944e-38, %v2931
        %v2933 = vsel %vm2930, %v2932, %v2928
        %v2934 = vmul.f32 1.0, %v2933
        %vm2935 = vcmp.lt.s32.totalorder %v1653, 64
        %vm2936 = vcmp.lt.s32.totalorder %v1654, 64
        %vm2937 = vcmp.lt.s32.totalorder %v1653, 128
        %vm2938 = vcmp.lt.s32.totalorder %v1654, 128
        %v2939 = vsel %vm2937, %v2295, %v2469
        %v2940 = vsel %vm2938, %v2296, %v2484
        %v2941 = vsel %vm2937, %v2297, %v2499
        %v2942 = vsel %vm2938, %v2298, %v2514
        %v2943 = vsel %vm2937, %v2299, %v2529
        %v2944 = vsel %vm2938, %v2300, %v2544
        %v2945 = vsel %vm2937, %v2301, %v2559
        %v2946 = vsel %vm2938, %v2302, %v2574
        %v2947 = vsel %vm2937, %v2303, %v2589
        %v2948 = vsel %vm2938, %v2304, %v2604
        %v2949 = vsel %vm2937, %v2305, %v2619
        %v2950 = vsel %vm2938, %v2306, %v2634
        %v2951 = vsel %vm2937, %v2307, %v2649
        %v2952 = vsel %vm2938, %v2308, %v2664
        %v2953 = vsel %vm2937, %v2309, %v2679
        %v2954 = vsel %vm2938, %v2310, %v2694
        %v2955 = vsel %vm2937, %v2311, %v2709
        %v2956 = vsel %vm2938, %v2312, %v2724
        %v2957 = vsel %vm2937, %v2313, %v2739
        %v2958 = vsel %vm2938, %v2314, %v2754
        %v2959 = vsel %vm2937, %v2315, %v2769
        %v2960 = vsel %vm2938, %v2316, %v2784
        %v2961 = vsel %vm2937, %v2317, %v2799
        %v2962 = vsel %vm2938, %v2318, %v2814
        %v2963 = vsel %vm2937, %v2319, %v2829
        %v2964 = vsel %vm2938, %v2320, %v2844
        %v2965 = vsel %vm2937, %v2321, %v2859
        %v2966 = vsel %vm2938, %v2322, %v2874
        %v2967 = vsel %vm2937, %v2323, %v2889
        %v2968 = vsel %vm2938, %v2324, %v2904
        %v2969 = vsel %vm2937, %v2325, %v2919
        %v2970 = vsel %vm2938, %v2326, %v2934
        %v2971 = vsel %vm2935, %v1751, %v2939
        %v2972 = vsel %vm2936, %v1752, %v2940
        %v2973 = vsel %vm2935, %v1753, %v2941
        %v2974 = vsel %vm2936, %v1754, %v2942
        %v2975 = vsel %vm2935, %v1755, %v2943
        %v2976 = vsel %vm2936, %v1756, %v2944
        %v2977 = vsel %vm2935, %v1757, %v2945
        %v2978 = vsel %vm2936, %v1758, %v2946
        %v2979 = vsel %vm2935, %v1759, %v2947
        %v2980 = vsel %vm2936, %v1760, %v2948
        %v2981 = vsel %vm2935, %v1761, %v2949
        %v2982 = vsel %vm2936, %v1762, %v2950
        %v2983 = vsel %vm2935, %v1763, %v2951
        %v2984 = vsel %vm2936, %v1764, %v2952
        %v2985 = vsel %vm2935, %v1765, %v2953
        %v2986 = vsel %vm2936, %v1766, %v2954
        %v2987 = vsel %vm2935, %v1767, %v2955
        %v2988 = vsel %vm2936, %v1768, %v2956
        %v2989 = vsel %vm2935, %v1769, %v2957
        %v2990 = vsel %vm2936, %v1770, %v2958
        %v2991 = vsel %vm2935, %v1771, %v2959
        %v2992 = vsel %vm2936, %v1772, %v2960
        %v2993 = vsel %vm2935, %v1773, %v2961
        %v2994 = vsel %vm2936, %v1774, %v2962
        %v2995 = vsel %vm2935, %v1775, %v2963
        %v2996 = vsel %vm2936, %v1776, %v2964
        %v2997 = vsel %vm2935, %v1777, %v2965
        %v2998 = vsel %vm2936, %v1778, %v2966
        %v2999 = vsel %vm2935, %v1779, %v2967
        %v3000 = vsel %vm2936, %v1780, %v2968
        %v3001 = vsel %vm2935, %v1781, %v2969
        %v3002 = vsel %vm2936, %v1782, %v2970
        %3003 = vst [vmem:[%s561] sm:$0xff] %v2971
        %3004 = vst [vmem:[%s561 + $0x8] sm:$0xff] %v2972
        %3005 = vst [vmem:[%s561 + $0x10] sm:$0xff] %v2973
        %3006 = vst [vmem:[%s561 + $0x18] sm:$0xff] %v2974
        %3007 = vst [vmem:[%s561 + $0x20] sm:$0xff] %v2975
        %3008 = vst [vmem:[%s561 + $0x28] sm:$0xff] %v2976
        %3009 = vst [vmem:[%s561 + $0x30] sm:$0xff] %v2977
        %3010 = vst [vmem:[%s561 + $0x38] sm:$0xff] %v2978
        %3011 = vst [vmem:[%s561 + $0x40] sm:$0xff] %v2979
        %3012 = vst [vmem:[%s561 + $0x48] sm:$0xff] %v2980
        %3013 = vst [vmem:[%s561 + $0x50] sm:$0xff] %v2981
        %3014 = vst [vmem:[%s561 + $0x58] sm:$0xff] %v2982
        %3015 = vst [vmem:[%s561 + $0x60] sm:$0xff] %v2983
        %3016 = vst [vmem:[%s561 + $0x68] sm:$0xff] %v2984
        %3017 = vst [vmem:[%s561 + $0x70] sm:$0xff] %v2985
        %3018 = vst [vmem:[%s561 + $0x78] sm:$0xff] %v2986
        %3019 = vst [vmem:[%s561 + $0x80] sm:$0xff] %v2987
        %3020 = vst [vmem:[%s561 + $0x88] sm:$0xff] %v2988
        %3021 = vst [vmem:[%s561 + $0x90] sm:$0xff] %v2989
        %3022 = vst [vmem:[%s561 + $0x98] sm:$0xff] %v2990
        %3023 = vst [vmem:[%s561 + $0xa0] sm:$0xff] %v2991
        %3024 = vst [vmem:[%s561 + $0xa8] sm:$0xff] %v2992
        %3025 = vst [vmem:[%s561 + $0xb0] sm:$0xff] %v2993
        %3026 = vst [vmem:[%s561 + $0xb8] sm:$0xff] %v2994
        %3027 = vst [vmem:[%s561 + $0xc0] sm:$0xff] %v2995
        %3028 = vst [vmem:[%s561 + $0xc8] sm:$0xff] %v2996
        %3029 = vst [vmem:[%s561 + $0xd0] sm:$0xff] %v2997
        %3030 = vst [vmem:[%s561 + $0xd8] sm:$0xff] %v2998
        %3031 = vst [vmem:[%s561 + $0xe0] sm:$0xff] %v2999
        %3032 = vst [vmem:[%s561 + $0xe8] sm:$0xff] %v3000
        %3033 = vst [vmem:[%s561 + $0xf0] sm:$0xff] %v3001
        %3034 = vst [vmem:[%s561 + $0xf8] sm:$0xff] %v3002
        // Predicated region
        $region89: #{tpu_custom_call.1} parent=59 // pred_check
          %p3035 = pneg %p573
        $region90: #{tpu_custom_call.1} parent=59 // pred_check_branch
          %3037 = sbr.rel (%p3035) target = $region92
        $region91: #{tpu_custom_call.1} parent=59 // pred_region
          %v3038 = vld [vmem:[#allocation4] sm:$0xff]
          %v3039 = vld [vmem:[#allocation4 + $0x8] sm:$0xff]
          %v3040 = vld [vmem:[#allocation4 + $0x10] sm:$0xff]
          %v3041 = vld [vmem:[#allocation4 + $0x18] sm:$0xff]
          %v3042 = vld [vmem:[#allocation4 + $0x20] sm:$0xff]
          %v3043 = vld [vmem:[#allocation4 + $0x28] sm:$0xff]
          %v3044 = vld [vmem:[#allocation4 + $0x30] sm:$0xff]
          %v3045 = vld [vmem:[#allocation4 + $0x38] sm:$0xff]
          %v3046 = vld [vmem:[#allocation4 + $0x40] sm:$0xff]
          %v3047 = vld [vmem:[#allocation4 + $0x48] sm:$0xff]
          %v3048 = vld [vmem:[#allocation4 + $0x50] sm:$0xff]
          %v3049 = vld [vmem:[#allocation4 + $0x58] sm:$0xff]
          %v3050 = vld [vmem:[#allocation4 + $0x60] sm:$0xff]
          %v3051 = vld [vmem:[#allocation4 + $0x68] sm:$0xff]
          %v3052 = vld [vmem:[#allocation4 + $0x70] sm:$0xff]
          %v3053 = vld [vmem:[#allocation4 + $0x78] sm:$0xff]
          %3054 = vst [vmem:[%s554] sm:$0xff] %v3038
          %3055 = vst [vmem:[%s554 + $0x8] sm:$0xff] %v3039
          %3056 = vst [vmem:[%s554 + $0x10] sm:$0xff] %v3040
          %3057 = vst [vmem:[%s554 + $0x18] sm:$0xff] %v3041
          %3058 = vst [vmem:[%s554 + $0x20] sm:$0xff] %v3042
          %3059 = vst [vmem:[%s554 + $0x28] sm:$0xff] %v3043
          %3060 = vst [vmem:[%s554 + $0x30] sm:$0xff] %v3044
          %3061 = vst [vmem:[%s554 + $0x38] sm:$0xff] %v3045
          %3062 = vst [vmem:[%s554 + $0x40] sm:$0xff] %v3046
          %3063 = vst [vmem:[%s554 + $0x48] sm:$0xff] %v3047
          %3064 = vst [vmem:[%s554 + $0x50] sm:$0xff] %v3048
          %3065 = vst [vmem:[%s554 + $0x58] sm:$0xff] %v3049
          %3066 = vst [vmem:[%s554 + $0x60] sm:$0xff] %v3050
          %3067 = vst [vmem:[%s554 + $0x68] sm:$0xff] %v3051
          %3068 = vst [vmem:[%s554 + $0x70] sm:$0xff] %v3052
          %3069 = vst [vmem:[%s554 + $0x78] sm:$0xff] %v3053
        $region92: #{tpu_custom_call.1} parent=59 // pred_fallthru
          _
        %s3070 = sand.u32 %s287, 1
        %s3071 = scalar_lea.sflag [#allocation7], %s3070
        %s3072 = sand.u32 %s287, 1
        %s3073 = smul.addr %s3072, 128
        %s3074 = scalar_lea.vmem [#allocation16], %s3073
        %s3075 = sand.u32 %s315, 1
        %s3076 = scalar_lea.sflag [#allocation18], %s3075
        %s3077 = sand.u32 %s315, 1
        %s3078 = smul.addr %s3077, 256
        %s3079 = scalar_lea.vmem [#allocation17], %s3078
        // Predicated region
        $region93: #{tpu_custom_call.1} parent=59 // pred_check
          %p3080 = pneg %p297
        $region94: #{tpu_custom_call.1} parent=59 // pred_check_branch
          %3082 = sbr.rel (%p3080) target = $region96
        $region95: #{tpu_custom_call.1} parent=59 // pred_region
          %s3083 = smul.u32 16, %s41
          %3085 = vsyncadd %s3071, 0
          %s3086 = smul.addr %s3083, 8
          %s3087 = scalar_lea.hbm %s10, %s3086
          %s3088 = sshll.u32 %s3074, 4
          %s3089 = int_to_ptr.vmem [resolvable:$true] %s3088
          %s3090 = sshll.u32 %s3087, 4
          %s3091 = int_to_ptr.hbm [resolvable:$true] %s3090
          %3096 = dma.vmem_to_hbm [thread:$0]  %s3089, 2048, %s3091, %s3071, 128, 128, 8
        $region96: #{tpu_custom_call.1} parent=59 // pred_fallthru
          _
        // Predicated region
        $region97: #{tpu_custom_call.1} parent=59 // pred_check
          %p3097 = pneg %p325
        $region98: #{tpu_custom_call.1} parent=59 // pred_check_branch
          %3099 = sbr.rel (%p3097) target = $region100
        $region99: #{tpu_custom_call.1} parent=59 // pred_region
          %s3100 = smul.u32 16, %s41
          %s3101 = smul.u32 2, %s42
          %3103 = vsyncadd %s3076, 0
          %s3104 = smul.addr %s3100, 2
          %s3105 = sadd.s32 %s3101, %s3104
          %s3106 = smul.addr %s3105, 8
          %s3107 = scalar_lea.hbm %s11, %s3106
          %s3108 = sshll.u32 %s3079, 4
          %s3109 = int_to_ptr.vmem [resolvable:$true] %s3108
          %s3110 = sshll.u32 %s3107, 4
          %s3111 = int_to_ptr.hbm [resolvable:$true] %s3110
          %3116 = dma.vmem_to_hbm [thread:$0]  %s3109, 4096, %s3111, %s3076, 256, 256, 16
        $region100: #{tpu_custom_call.1} parent=59 // pred_fallthru
          _
      $region60: #{tpu_custom_call.1} parent=5 // pred_fallthru
        _
      %p3117 = scmp.le.s32.totalorder 2, %s32
      // Predicated region
      $region101: #{tpu_custom_call.1} parent=5 // pred_check
        %p3118 = pneg %p3117
      $region102: #{tpu_custom_call.1} parent=5 // pred_check_branch
        %3120 = sbr.rel (%p3118) target = $region104
      $region103: #{tpu_custom_call.1} parent=5 // pred_region
        %s3121 = ssub.s32 %s32, 2
        // Predicated region
        $region105: #{tpu_custom_call.1} parent=103 // pred_check
          %p3122 = pneg %p303
        $region106: #{tpu_custom_call.1} parent=103 // pred_check_branch
          %3124 = sbr.rel (%p3122) target = $region108
        $region107: #{tpu_custom_call.1} parent=103 // pred_region
          %s3125 = sand.u32 %s288, 1
          %s3126 = scalar_lea.sflag [#allocation7], %s3125
          %s3127 = sand.u32 %s288, 1
          %s3128 = smul.addr %s3127, 128
          %s3129 = scalar_lea.vmem [#allocation16], %s3128
          %3131 = dma.done %s3126, 2048
        $region108: #{tpu_custom_call.1} parent=103 // pred_fallthru
          _
        // Predicated region
        $region109: #{tpu_custom_call.1} parent=103 // pred_check
          %p3132 = pneg %p331
        $region110: #{tpu_custom_call.1} parent=103 // pred_check_branch
          %3134 = sbr.rel (%p3132) target = $region112
        $region111: #{tpu_custom_call.1} parent=103 // pred_region
          %s3135 = sand.u32 %s316, 1
          %s3136 = scalar_lea.sflag [#allocation18], %s3135
          %s3137 = sand.u32 %s316, 1
          %s3138 = smul.addr %s3137, 256
          %s3139 = scalar_lea.vmem [#allocation17], %s3138
          %3141 = dma.done %s3136, 4096
        $region112: #{tpu_custom_call.1} parent=103 // pred_fallthru
          _
      $region104: #{tpu_custom_call.1} parent=5 // pred_fallthru
        _
    $region6: #{tpu_custom_call.1} parent=1 // loop_footer
      %s36 = sadd.s32 1, %s32
    $region7: #{tpu_custom_call.1} parent=1 // loop_footer_branch
      %31 = sbr.rel target = $region3
    $region8: #{tpu_custom_call.1} parent=1 // loop_exit
      _
    %3142 = vsyncpa [#allocation6], 1
    %s3143 = scalar_lea.sflag [#allocation6], 1
    %3144 = vsyncpa %s3143, 1
    %3145 = vsyncpa [#allocation9], 1
    %s3146 = scalar_lea.sflag [#allocation9], 1
    %3147 = vsyncpa %s3146, 1
    %3148 = vsyncpa [#allocation12], 1
    %3149 = vsyncpa [#allocation15], 1
    %3150 = vsyncpa [#allocation7], 1
    %s3151 = scalar_lea.sflag [#allocation7], 1
    %3152 = vsyncpa %s3151, 1
    %3153 = vsyncpa [#allocation18], 1
    %s3154 = scalar_lea.sflag [#allocation18], 1
    %3155 = vsyncpa %s3154, 1

</llo_original>
